<compile_context>
chip_gen: v7x
topology: tpu7x:2x2x1
jax: 0.10.0
libtpu: 0.0.40
codegen_flags: <defaults>
</compile_context>

<pallas_src>
import jax
import jax.numpy as jnp
from jax.experimental import pallas as pl

# ---- small synthetic dims (PyTorch module uses emb=256, hid=512, big vocab) ----
S = 8         # src sequence length
B = 2         # batch
SRC_V = 32    # source vocab size (input_dim)
EMB = 16      # emb_dim
HID = 32      # hid_dim
PAD_IDX = 1


def _gru_step(gi, h, whh, bhh):
    """PyTorch GRU cell; gi = x @ W_ih + b_ih is precomputed. gi/gh: [B, 3H]."""
    gh = jnp.dot(h, whh, preferred_element_type=jnp.float32) + bhh
    r = jax.nn.sigmoid(gi[:, 0:HID] + gh[:, 0:HID])
    z = jax.nn.sigmoid(gi[:, HID:2 * HID] + gh[:, HID:2 * HID])
    n = jnp.tanh(gi[:, 2 * HID:3 * HID] + r * gh[:, 2 * HID:3 * HID])
    return (1.0 - z) * n + z * h


def encoder_kernel(src_ref, len_ref, emb_ref,
                   wih_f_ref, whh_f_ref, bih_f_ref, bhh_f_ref,
                   wih_b_ref, whh_b_ref, bih_b_ref, bhh_b_ref,
                   fc_w_ref, fc_b_ref,
                   out_f_ref, out_b_ref, hid_ref):
    # --- embedding lookup as one-hot matmul (dropout == identity at inference) ---
    src = src_ref[...]                                                # [S*B, 1] int32
    onehot = (src == jax.lax.broadcasted_iota(jnp.int32, (S * B, SRC_V), 1)
              ).astype(jnp.float32)                                   # [S*B, SRC_V]
    embedded = jnp.dot(onehot, emb_ref[...],
                       preferred_element_type=jnp.float32)            # [S*B, EMB]

    # --- pack_padded_sequence emulation: validity mask [B, S] ---
    lens = len_ref[...]                                               # [B, 1] int32
    pos = jax.lax.broadcasted_iota(jnp.int32, (B, S), 1)
    valid = (pos < lens).astype(jnp.float32)                          # [B, S]

    # --- hoist loop-invariant input gates: one batched matmul per direction ---
    gi_f_all = jnp.dot(embedded, wih_f_ref[...],
                       preferred_element_type=jnp.float32) + bih_f_ref[...]   # [S*B, 3H]
    gi_b_all = jnp.dot(embedded, wih_b_ref[...],
                       preferred_element_type=jnp.float32) + bih_b_ref[...]   # [S*B, 3H]

    whh_f = whh_f_ref[...]; bhh_f = bhh_f_ref[...]
    whh_b = whh_b_ref[...]; bhh_b = bhh_b_ref[...]

    # --- forward recurrence (statically unrolled; only h @ W_hh left per step) ---
    hf = jnp.zeros((B, HID), jnp.float32)
    for s in range(S):
        gi = gi_f_all[s * B:(s + 1) * B, :]                           # [B, 3H]
        v = valid[:, s:s + 1]                                         # [B, 1]
        h_new = _gru_step(gi, hf, whh_f, bhh_f)
        hf = v * h_new + (1.0 - v) * hf            # packed: carry hidden through pads
        out_f_ref[s] = hf * v                      # pad_packed zero-fills pads

    # --- backward recurrence ---
    hb = jnp.zeros((B, HID), jnp.float32)
    for s in range(S - 1, -1, -1):
        gi = gi_b_all[s * B:(s + 1) * B, :]
        v = valid[:, s:s + 1]
        h_new = _gru_step(gi, hb, whh_b, bhh_b)
        hb = v * h_new + (1.0 - v) * hb
        out_b_ref[s] = hb * v

    # --- hidden = tanh(fc(cat(h_fwd_final, h_bwd_final))) as split-weight matmuls ---
    fcw = fc_w_ref[...]                                               # [2H, H]
    hid_ref[...] = jnp.tanh(
        jnp.dot(hf, fcw[0:HID, :], preferred_element_type=jnp.float32)
        + jnp.dot(hb, fcw[HID:2 * HID, :], preferred_element_type=jnp.float32)
        + fc_b_ref[...])


@jax.jit
def encoder_forward(src, src_len, params):
    """src: [S, B] int32 (seq-major, like the PyTorch module); src_len: [B] int32.
    Returns (outputs [S, B, 2*HID], hidden [B, HID])."""
    (emb, wih_f, whh_f, bih_f, bhh_f,
     wih_b, whh_b, bih_b, bhh_b, fc_w, fc_b) = params
    src_flat = src.reshape(S * B, 1).astype(jnp.int32)    # row s*B + b == (s, b)
    len2d = src_len.reshape(B, 1).astype(jnp.int32)

    out_f, out_b, hidden = pl.pallas_call(
        encoder_kernel,
        out_shape=(
            jax.ShapeDtypeStruct((S, B, HID), jnp.float32),
            jax.ShapeDtypeStruct((S, B, HID), jnp.float32),
            jax.ShapeDtypeStruct((B, HID), jnp.float32),
        ),
    )(src_flat, len2d, emb, wih_f, whh_f, bih_f, bhh_f,
      wih_b, whh_b, bih_b, bhh_b, fc_w, fc_b)

    # pad_packed_sequence output layout: [..., fwd_hidden ; bwd_hidden]
    outputs = jnp.concatenate([out_f, out_b], axis=-1)    # [S, B, 2H]
    return outputs, hidden


def init_params(key):
    ks = iter(jax.random.split(key, 16))

    def n(shape, scale=0.1):
        return scale * jax.random.normal(next(ks), shape, dtype=jnp.float32)

    return (
        n((SRC_V, EMB)),                                                      # embedding
        n((EMB, 3 * HID)), n((HID, 3 * HID)), n((1, 3 * HID)), n((1, 3 * HID)),  # fwd GRU
        n((EMB, 3 * HID)), n((HID, 3 * HID)), n((1, 3 * HID)), n((1, 3 * HID)),  # bwd GRU
        n((2 * HID, HID)), n((1, HID)),                                          # fc
    )


def encoder_reference(src, src_len, params):
    """Pure-JAX reference with identical packed-GRU semantics."""
    (emb, wih_f, whh_f, bih_f, bhh_f,
     wih_b, whh_b, bih_b, bhh_b, fc_w, fc_b) = params
    embedded = emb[src]                                               # [S, B, EMB]
    valid = (jnp.arange(S)[:, None] < src_len[None, :]).astype(jnp.float32)   # [S, B]

    def gru(x, h, wih, whh, bih, bhh):
        gi = x @ wih + bih
        gh = h @ whh + bhh
        r = jax.nn.sigmoid(gi[:, :HID] + gh[:, :HID])
        z = jax.nn.sigmoid(gi[:, HID:2 * HID] + gh[:, HID:2 * HID])
        nn_ = jnp.tanh(gi[:, 2 * HID:] + r * gh[:, 2 * HID:])
        return (1.0 - z) * nn_ + z * h

    hf = jnp.zeros((B, HID), jnp.float32)
    hb = jnp.zeros((B, HID), jnp.float32)
    of = [None] * S
    ob = [None] * S
    for s in range(S):
        v = valid[s][:, None]
        hn = gru(embedded[s], hf, wih_f, whh_f, bih_f, bhh_f)
        hf = v * hn + (1.0 - v) * hf
        of[s] = hf * v
    for s in range(S - 1, -1, -1):
        v = valid[s][:, None]
        hn = gru(embedded[s], hb, wih_b, whh_b, bih_b, bhh_b)
        hb = v * hn + (1.0 - v) * hb
        ob[s] = hb * v
    outputs = jnp.concatenate([jnp.stack(of), jnp.stack(ob)], axis=-1)
    hidden = jnp.tanh(jnp.concatenate([hf, hb], axis=-1) @ fc_w + fc_b)
    return outputs, hidden


if __name__ == "__main__":
    key = jax.random.PRNGKey(0)
    kp, kt = jax.random.split(key)
    params = init_params(kp)

    # seq-major int tokens; second batch element padded after length 5
    src_len = jnp.array([S, 5], dtype=jnp.int32)
    toks = jax.random.randint(kt, (S, B), 3, SRC_V, dtype=jnp.int32)
    pos = jnp.arange(S)[:, None]
    src = jnp.where(pos < src_len[None, :], toks, PAD_IDX)

    outputs, hidden = encoder_forward(src, src_len, params)
    jax.block_until_ready((outputs, hidden))

    assert outputs.shape == (S, B, 2 * HID) and outputs.dtype == jnp.float32
    assert hidden.shape == (B, HID) and hidden.dtype == jnp.float32
    # pad_packed_sequence: padded positions of the short sequence must be zero
    assert float(jnp.abs(outputs[int(src_len[1]):, 1, :]).max()) == 0.0

    with jax.default_matmul_precision("highest"):
        ref_out, ref_hid = encoder_reference(src, src_len, params)
    assert bool(jnp.allclose(outputs, ref_out, atol=1e-3, rtol=1e-3))
    assert bool(jnp.allclose(hidden, ref_hid, atol=1e-3, rtol=1e-3))
    print("KERNEL_OK")
</pallas_src>

<mosaic_0001>
module attributes {stable_mosaic.version = 11 : i64} {
  func.func @encoder_kernel(%arg0: memref<16x1xi32, #tpu.memory_space<vmem>>, %arg1: memref<2x1xi32, #tpu.memory_space<vmem>>, %arg2: memref<32x16xf32, #tpu.memory_space<vmem>>, %arg3: memref<16x96xf32, #tpu.memory_space<vmem>>, %arg4: memref<32x96xf32, #tpu.memory_space<vmem>>, %arg5: memref<1x96xf32, #tpu.memory_space<vmem>>, %arg6: memref<1x96xf32, #tpu.memory_space<vmem>>, %arg7: memref<16x96xf32, #tpu.memory_space<vmem>>, %arg8: memref<32x96xf32, #tpu.memory_space<vmem>>, %arg9: memref<1x96xf32, #tpu.memory_space<vmem>>, %arg10: memref<1x96xf32, #tpu.memory_space<vmem>>, %arg11: memref<64x32xf32, #tpu.memory_space<vmem>>, %arg12: memref<1x32xf32, #tpu.memory_space<vmem>>, %arg13: memref<8x2x32xf32, #tpu.memory_space<vmem>>, %arg14: memref<8x2x32xf32, #tpu.memory_space<vmem>>, %arg15: memref<2x32xf32, #tpu.memory_space<vmem>>) attributes {dimension_semantics = [], scalar_prefetch = 0 : i64, scratch_operands = 0 : i64, tpu.core_type = #tpu.core_type<tc>} {
    %c0 = arith.constant 0 : index
    %c0_0 = arith.constant 0 : index
    %0 = vector.load %arg0[%c0, %c0_0] : memref<16x1xi32, #tpu.memory_space<vmem>>, vector<16x1xi32>
    %1 = tpu.iota {dimensions = array<i32: 1>} : vector<16x32xi32>
    %2 = vector.broadcast %0 : vector<16x1xi32> to vector<16x32xi32>
    %3 = arith.cmpi eq, %2, %1 : vector<16x32xi32>
    %4 = arith.extui %3 : vector<16x32xi1> to vector<16x32xi32>
    %5 = arith.sitofp %4 : vector<16x32xi32> to vector<16x32xf32>
    %c0_1 = arith.constant 0 : index
    %c0_2 = arith.constant 0 : index
    %6 = vector.load %arg2[%c0_1, %c0_2] : memref<32x16xf32, #tpu.memory_space<vmem>>, vector<32x16xf32>
    %cst = arith.constant dense<0.000000e+00> : vector<16x16xf32>
    %7 = tpu.matmul %5, %6, %cst {dimension_numbers = #tpu.dot_dimension_numbers<[1], [0], [0], [1], [0, 0, 1, 1], [], []>} : vector<16x32xf32>, vector<32x16xf32>, vector<16x16xf32> -> vector<16x16xf32>
    %c0_3 = arith.constant 0 : index
    %c0_4 = arith.constant 0 : index
    %8 = vector.load %arg1[%c0_3, %c0_4] : memref<2x1xi32, #tpu.memory_space<vmem>>, vector<2x1xi32>
    %9 = tpu.iota {dimensions = array<i32: 1>} : vector<2x8xi32>
    %10 = vector.broadcast %8 : vector<2x1xi32> to vector<2x8xi32>
    %11 = arith.cmpi slt, %9, %10 : vector<2x8xi32>
    %12 = arith.extui %11 : vector<2x8xi1> to vector<2x8xi32>
    %13 = arith.sitofp %12 : vector<2x8xi32> to vector<2x8xf32>
    %c0_5 = arith.constant 0 : index
    %c0_6 = arith.constant 0 : index
    %14 = vector.load %arg3[%c0_5, %c0_6] : memref<16x96xf32, #tpu.memory_space<vmem>>, vector<16x96xf32>
    %cst_7 = arith.constant dense<0.000000e+00> : vector<16x96xf32>
    %15 = tpu.matmul %7, %14, %cst_7 {dimension_numbers = #tpu.dot_dimension_numbers<[1], [0], [0], [1], [0, 0, 1, 1], [], []>} : vector<16x16xf32>, vector<16x96xf32>, vector<16x96xf32> -> vector<16x96xf32>
    %c0_8 = arith.constant 0 : index
    %c0_9 = arith.constant 0 : index
    %16 = vector.load %arg5[%c0_8, %c0_9] : memref<1x96xf32, #tpu.memory_space<vmem>>, vector<1x96xf32>
    %17 = vector.broadcast %16 : vector<1x96xf32> to vector<16x96xf32>
    %18 = arith.addf %15, %17 : vector<16x96xf32>
    %c0_10 = arith.constant 0 : index
    %c0_11 = arith.constant 0 : index
    %19 = vector.load %arg7[%c0_10, %c0_11] : memref<16x96xf32, #tpu.memory_space<vmem>>, vector<16x96xf32>
    %cst_12 = arith.constant dense<0.000000e+00> : vector<16x96xf32>
    %20 = tpu.matmul %7, %19, %cst_12 {dimension_numbers = #tpu.dot_dimension_numbers<[1], [0], [0], [1], [0, 0, 1, 1], [], []>} : vector<16x16xf32>, vector<16x96xf32>, vector<16x96xf32> -> vector<16x96xf32>
    %c0_13 = arith.constant 0 : index
    %c0_14 = arith.constant 0 : index
    %21 = vector.load %arg9[%c0_13, %c0_14] : memref<1x96xf32, #tpu.memory_space<vmem>>, vector<1x96xf32>
    %22 = vector.broadcast %21 : vector<1x96xf32> to vector<16x96xf32>
    %23 = arith.addf %20, %22 : vector<16x96xf32>
    %c0_15 = arith.constant 0 : index
    %c0_16 = arith.constant 0 : index
    %24 = vector.load %arg4[%c0_15, %c0_16] : memref<32x96xf32, #tpu.memory_space<vmem>>, vector<32x96xf32>
    %c0_17 = arith.constant 0 : index
    %c0_18 = arith.constant 0 : index
    %25 = vector.load %arg6[%c0_17, %c0_18] : memref<1x96xf32, #tpu.memory_space<vmem>>, vector<1x96xf32>
    %c0_19 = arith.constant 0 : index
    %c0_20 = arith.constant 0 : index
    %26 = vector.load %arg8[%c0_19, %c0_20] : memref<32x96xf32, #tpu.memory_space<vmem>>, vector<32x96xf32>
    %c0_21 = arith.constant 0 : index
    %c0_22 = arith.constant 0 : index
    %27 = vector.load %arg10[%c0_21, %c0_22] : memref<1x96xf32, #tpu.memory_space<vmem>>, vector<1x96xf32>
    %cst_23 = arith.constant 0.000000e+00 : f32
    %28 = vector.broadcast %cst_23 : f32 to vector<2x32xf32>
    %29 = vector.extract_strided_slice %18 {offsets = [0, 0], sizes = [2, 96], strides = [1, 1]} : vector<16x96xf32> to vector<2x96xf32>
    %30 = vector.extract_strided_slice %13 {offsets = [0, 0], sizes = [2, 1], strides = [1, 1]} : vector<2x8xf32> to vector<2x1xf32>
    %cst_24 = arith.constant dense<0.000000e+00> : vector<2x96xf32>
    %31 = tpu.matmul %28, %24, %cst_24 {dimension_numbers = #tpu.dot_dimension_numbers<[1], [0], [0], [1], [0, 0, 1, 1], [], []>} : vector<2x32xf32>, vector<32x96xf32>, vector<2x96xf32> -> vector<2x96xf32>
    %32 = vector.broadcast %25 : vector<1x96xf32> to vector<2x96xf32>
    %33 = arith.addf %31, %32 : vector<2x96xf32>
    %34 = vector.extract_strided_slice %29 {offsets = [0, 0], sizes = [2, 32], strides = [1, 1]} : vector<2x96xf32> to vector<2x32xf32>
    %35 = vector.extract_strided_slice %33 {offsets = [0, 0], sizes = [2, 32], strides = [1, 1]} : vector<2x96xf32> to vector<2x32xf32>
    %36 = arith.addf %34, %35 : vector<2x32xf32>
    %37 = arith.negf %36 : vector<2x32xf32>
    %38 = math.exp %37 : vector<2x32xf32>
    %cst_25 = arith.constant 1.000000e+00 : f32
    %39 = vector.broadcast %cst_25 : f32 to vector<2x32xf32>
    %40 = arith.addf %39, %38 : vector<2x32xf32>
    %41 = arith.divf %39, %40 : vector<2x32xf32>
    %42 = vector.extract_strided_slice %29 {offsets = [0, 32], sizes = [2, 32], strides = [1, 1]} : vector<2x96xf32> to vector<2x32xf32>
    %43 = vector.extract_strided_slice %33 {offsets = [0, 32], sizes = [2, 32], strides = [1, 1]} : vector<2x96xf32> to vector<2x32xf32>
    %44 = arith.addf %42, %43 : vector<2x32xf32>
    %45 = arith.negf %44 : vector<2x32xf32>
    %46 = math.exp %45 : vector<2x32xf32>
    %cst_26 = arith.constant 1.000000e+00 : f32
    %47 = vector.broadcast %cst_26 : f32 to vector<2x32xf32>
    %48 = arith.addf %47, %46 : vector<2x32xf32>
    %49 = arith.divf %47, %48 : vector<2x32xf32>
    %50 = vector.extract_strided_slice %29 {offsets = [0, 64], sizes = [2, 32], strides = [1, 1]} : vector<2x96xf32> to vector<2x32xf32>
    %51 = vector.extract_strided_slice %33 {offsets = [0, 64], sizes = [2, 32], strides = [1, 1]} : vector<2x96xf32> to vector<2x32xf32>
    %52 = arith.mulf %41, %51 : vector<2x32xf32>
    %53 = arith.addf %50, %52 : vector<2x32xf32>
    %54 = math.tanh %53 : vector<2x32xf32>
    %cst_27 = arith.constant 1.000000e+00 : f32
    %55 = vector.broadcast %cst_27 : f32 to vector<2x32xf32>
    %56 = arith.subf %55, %49 : vector<2x32xf32>
    %57 = arith.mulf %56, %54 : vector<2x32xf32>
    %58 = arith.mulf %49, %28 : vector<2x32xf32>
    %59 = arith.addf %57, %58 : vector<2x32xf32>
    %60 = vector.broadcast %30 : vector<2x1xf32> to vector<2x32xf32>
    %61 = arith.mulf %60, %59 : vector<2x32xf32>
    %cst_28 = arith.constant 1.000000e+00 : f32
    %62 = vector.broadcast %cst_28 : f32 to vector<2x1xf32>
    %63 = arith.subf %62, %30 : vector<2x1xf32>
    %64 = vector.broadcast %63 : vector<2x1xf32> to vector<2x32xf32>
    %65 = arith.mulf %64, %28 : vector<2x32xf32>
    %66 = arith.addf %61, %65 : vector<2x32xf32>
    %67 = vector.broadcast %30 : vector<2x1xf32> to vector<2x32xf32>
    %68 = arith.mulf %66, %67 : vector<2x32xf32>
    %c0_29 = arith.constant 0 : index
    %c0_30 = arith.constant 0 : index
    %c0_31 = arith.constant 0 : index
    %69 = vector.load %arg13[%c0_29, %c0_30, %c0_31] : memref<8x2x32xf32, #tpu.memory_space<vmem>>, vector<1x2x32xf32>
    %70 = vector.shape_cast %69 : vector<1x2x32xf32> to vector<2x32xf32>
    %71 = vector.shape_cast %68 : vector<2x32xf32> to vector<1x2x32xf32>
    tpu.vector_store %arg13[%c0_29, %c0_30, %c0_31], %71 {strides = array<i32>} : memref<8x2x32xf32, #tpu.memory_space<vmem>>, vector<1x2x32xf32>,
    %72 = vector.extract_strided_slice %18 {offsets = [2, 0], sizes = [2, 96], strides = [1, 1]} : vector<16x96xf32> to vector<2x96xf32>
    %73 = vector.extract_strided_slice %13 {offsets = [0, 1], sizes = [2, 1], strides = [1, 1]} : vector<2x8xf32> to vector<2x1xf32>
    %cst_32 = arith.constant dense<0.000000e+00> : vector<2x96xf32>
    %74 = tpu.matmul %66, %24, %cst_32 {dimension_numbers = #tpu.dot_dimension_numbers<[1], [0], [0], [1], [0, 0, 1, 1], [], []>} : vector<2x32xf32>, vector<32x96xf32>, vector<2x96xf32> -> vector<2x96xf32>
    %75 = vector.broadcast %25 : vector<1x96xf32> to vector<2x96xf32>
    %76 = arith.addf %74, %75 : vector<2x96xf32>
    %77 = vector.extract_strided_slice %72 {offsets = [0, 0], sizes = [2, 32], strides = [1, 1]} : vector<2x96xf32> to vector<2x32xf32>
    %78 = vector.extract_strided_slice %76 {offsets = [0, 0], sizes = [2, 32], strides = [1, 1]} : vector<2x96xf32> to vector<2x32xf32>
    %79 = arith.addf %77, %78 : vector<2x32xf32>
    %80 = arith.negf %79 : vector<2x32xf32>
    %81 = math.exp %80 : vector<2x32xf32>
    %cst_33 = arith.constant 1.000000e+00 : f32
    %82 = vector.broadcast %cst_33 : f32 to vector<2x32xf32>
    %83 = arith.addf %82, %81 : vector<2x32xf32>
    %84 = arith.divf %82, %83 : vector<2x32xf32>
    %85 = vector.extract_strided_slice %72 {offsets = [0, 32], sizes = [2, 32], strides = [1, 1]} : vector<2x96xf32> to vector<2x32xf32>
    %86 = vector.extract_strided_slice %76 {offsets = [0, 32], sizes = [2, 32], strides = [1, 1]} : vector<2x96xf32> to vector<2x32xf32>
    %87 = arith.addf %85, %86 : vector<2x32xf32>
    %88 = arith.negf %87 : vector<2x32xf32>
    %89 = math.exp %88 : vector<2x32xf32>
    %cst_34 = arith.constant 1.000000e+00 : f32
    %90 = vector.broadcast %cst_34 : f32 to vector<2x32xf32>
    %91 = arith.addf %90, %89 : vector<2x32xf32>
    %92 = arith.divf %90, %91 : vector<2x32xf32>
    %93 = vector.extract_strided_slice %72 {offsets = [0, 64], sizes = [2, 32], strides = [1, 1]} : vector<2x96xf32> to vector<2x32xf32>
    %94 = vector.extract_strided_slice %76 {offsets = [0, 64], sizes = [2, 32], strides = [1, 1]} : vector<2x96xf32> to vector<2x32xf32>
    %95 = arith.mulf %84, %94 : vector<2x32xf32>
    %96 = arith.addf %93, %95 : vector<2x32xf32>
    %97 = math.tanh %96 : vector<2x32xf32>
    %cst_35 = arith.constant 1.000000e+00 : f32
    %98 = vector.broadcast %cst_35 : f32 to vector<2x32xf32>
    %99 = arith.subf %98, %92 : vector<2x32xf32>
    %100 = arith.mulf %99, %97 : vector<2x32xf32>
    %101 = arith.mulf %92, %66 : vector<2x32xf32>
    %102 = arith.addf %100, %101 : vector<2x32xf32>
    %103 = vector.broadcast %73 : vector<2x1xf32> to vector<2x32xf32>
    %104 = arith.mulf %103, %102 : vector<2x32xf32>
    %cst_36 = arith.constant 1.000000e+00 : f32
    %105 = vector.broadcast %cst_36 : f32 to vector<2x1xf32>
    %106 = arith.subf %105, %73 : vector<2x1xf32>
    %107 = vector.broadcast %106 : vector<2x1xf32> to vector<2x32xf32>
    %108 = arith.mulf %107, %66 : vector<2x32xf32>
    %109 = arith.addf %104, %108 : vector<2x32xf32>
    %110 = vector.broadcast %73 : vector<2x1xf32> to vector<2x32xf32>
    %111 = arith.mulf %109, %110 : vector<2x32xf32>
    %c1 = arith.constant 1 : index
    %c0_37 = arith.constant 0 : index
    %c0_38 = arith.constant 0 : index
    %112 = vector.load %arg13[%c1, %c0_37, %c0_38] : memref<8x2x32xf32, #tpu.memory_space<vmem>>, vector<1x2x32xf32>
    %113 = vector.shape_cast %112 : vector<1x2x32xf32> to vector<2x32xf32>
    %114 = vector.shape_cast %111 : vector<2x32xf32> to vector<1x2x32xf32>
    tpu.vector_store %arg13[%c1, %c0_37, %c0_38], %114 {strides = array<i32>} : memref<8x2x32xf32, #tpu.memory_space<vmem>>, vector<1x2x32xf32>,
    %115 = vector.extract_strided_slice %18 {offsets = [4, 0], sizes = [2, 96], strides = [1, 1]} : vector<16x96xf32> to vector<2x96xf32>
    %116 = vector.extract_strided_slice %13 {offsets = [0, 2], sizes = [2, 1], strides = [1, 1]} : vector<2x8xf32> to vector<2x1xf32>
    %cst_39 = arith.constant dense<0.000000e+00> : vector<2x96xf32>
    %117 = tpu.matmul %109, %24, %cst_39 {dimension_numbers = #tpu.dot_dimension_numbers<[1], [0], [0], [1], [0, 0, 1, 1], [], []>} : vector<2x32xf32>, vector<32x96xf32>, vector<2x96xf32> -> vector<2x96xf32>
    %118 = vector.broadcast %25 : vector<1x96xf32> to vector<2x96xf32>
    %119 = arith.addf %117, %118 : vector<2x96xf32>
    %120 = vector.extract_strided_slice %115 {offsets = [0, 0], sizes = [2, 32], strides = [1, 1]} : vector<2x96xf32> to vector<2x32xf32>
    %121 = vector.extract_strided_slice %119 {offsets = [0, 0], sizes = [2, 32], strides = [1, 1]} : vector<2x96xf32> to vector<2x32xf32>
    %122 = arith.addf %120, %121 : vector<2x32xf32>
    %123 = arith.negf %122 : vector<2x32xf32>
    %124 = math.exp %123 : vector<2x32xf32>
    %cst_40 = arith.constant 1.000000e+00 : f32
    %125 = vector.broadcast %cst_40 : f32 to vector<2x32xf32>
    %126 = arith.addf %125, %124 : vector<2x32xf32>
    %127 = arith.divf %125, %126 : vector<2x32xf32>
    %128 = vector.extract_strided_slice %115 {offsets = [0, 32], sizes = [2, 32], strides = [1, 1]} : vector<2x96xf32> to vector<2x32xf32>
    %129 = vector.extract_strided_slice %119 {offsets = [0, 32], sizes = [2, 32], strides = [1, 1]} : vector<2x96xf32> to vector<2x32xf32>
    %130 = arith.addf %128, %129 : vector<2x32xf32>
    %131 = arith.negf %130 : vector<2x32xf32>
    %132 = math.exp %131 : vector<2x32xf32>
    %cst_41 = arith.constant 1.000000e+00 : f32
    %133 = vector.broadcast %cst_41 : f32 to vector<2x32xf32>
    %134 = arith.addf %133, %132 : vector<2x32xf32>
    %135 = arith.divf %133, %134 : vector<2x32xf32>
    %136 = vector.extract_strided_slice %115 {offsets = [0, 64], sizes = [2, 32], strides = [1, 1]} : vector<2x96xf32> to vector<2x32xf32>
    %137 = vector.extract_strided_slice %119 {offsets = [0, 64], sizes = [2, 32], strides = [1, 1]} : vector<2x96xf32> to vector<2x32xf32>
    %138 = arith.mulf %127, %137 : vector<2x32xf32>
    %139 = arith.addf %136, %138 : vector<2x32xf32>
    %140 = math.tanh %139 : vector<2x32xf32>
    %cst_42 = arith.constant 1.000000e+00 : f32
    %141 = vector.broadcast %cst_42 : f32 to vector<2x32xf32>
    %142 = arith.subf %141, %135 : vector<2x32xf32>
    %143 = arith.mulf %142, %140 : vector<2x32xf32>
    %144 = arith.mulf %135, %109 : vector<2x32xf32>
    %145 = arith.addf %143, %144 : vector<2x32xf32>
    %146 = vector.broadcast %116 : vector<2x1xf32> to vector<2x32xf32>
    %147 = arith.mulf %146, %145 : vector<2x32xf32>
    %cst_43 = arith.constant 1.000000e+00 : f32
    %148 = vector.broadcast %cst_43 : f32 to vector<2x1xf32>
    %149 = arith.subf %148, %116 : vector<2x1xf32>
    %150 = vector.broadcast %149 : vector<2x1xf32> to vector<2x32xf32>
    %151 = arith.mulf %150, %109 : vector<2x32xf32>
    %152 = arith.addf %147, %151 : vector<2x32xf32>
    %153 = vector.broadcast %116 : vector<2x1xf32> to vector<2x32xf32>
    %154 = arith.mulf %152, %153 : vector<2x32xf32>
    %c2 = arith.constant 2 : index
    %c0_44 = arith.constant 0 : index
    %c0_45 = arith.constant 0 : index
    %155 = vector.load %arg13[%c2, %c0_44, %c0_45] : memref<8x2x32xf32, #tpu.memory_space<vmem>>, vector<1x2x32xf32>
    %156 = vector.shape_cast %155 : vector<1x2x32xf32> to vector<2x32xf32>
    %157 = vector.shape_cast %154 : vector<2x32xf32> to vector<1x2x32xf32>
    tpu.vector_store %arg13[%c2, %c0_44, %c0_45], %157 {strides = array<i32>} : memref<8x2x32xf32, #tpu.memory_space<vmem>>, vector<1x2x32xf32>,
    %158 = vector.extract_strided_slice %18 {offsets = [6, 0], sizes = [2, 96], strides = [1, 1]} : vector<16x96xf32> to vector<2x96xf32>
    %159 = vector.extract_strided_slice %13 {offsets = [0, 3], sizes = [2, 1], strides = [1, 1]} : vector<2x8xf32> to vector<2x1xf32>
    %cst_46 = arith.constant dense<0.000000e+00> : vector<2x96xf32>
    %160 = tpu.matmul %152, %24, %cst_46 {dimension_numbers = #tpu.dot_dimension_numbers<[1], [0], [0], [1], [0, 0, 1, 1], [], []>} : vector<2x32xf32>, vector<32x96xf32>, vector<2x96xf32> -> vector<2x96xf32>
    %161 = vector.broadcast %25 : vector<1x96xf32> to vector<2x96xf32>
    %162 = arith.addf %160, %161 : vector<2x96xf32>
    %163 = vector.extract_strided_slice %158 {offsets = [0, 0], sizes = [2, 32], strides = [1, 1]} : vector<2x96xf32> to vector<2x32xf32>
    %164 = vector.extract_strided_slice %162 {offsets = [0, 0], sizes = [2, 32], strides = [1, 1]} : vector<2x96xf32> to vector<2x32xf32>
    %165 = arith.addf %163, %164 : vector<2x32xf32>
    %166 = arith.negf %165 : vector<2x32xf32>
    %167 = math.exp %166 : vector<2x32xf32>
    %cst_47 = arith.constant 1.000000e+00 : f32
    %168 = vector.broadcast %cst_47 : f32 to vector<2x32xf32>
    %169 = arith.addf %168, %167 : vector<2x32xf32>
    %170 = arith.divf %168, %169 : vector<2x32xf32>
    %171 = vector.extract_strided_slice %158 {offsets = [0, 32], sizes = [2, 32], strides = [1, 1]} : vector<2x96xf32> to vector<2x32xf32>
    %172 = vector.extract_strided_slice %162 {offsets = [0, 32], sizes = [2, 32], strides = [1, 1]} : vector<2x96xf32> to vector<2x32xf32>
    %173 = arith.addf %171, %172 : vector<2x32xf32>
    %174 = arith.negf %173 : vector<2x32xf32>
    %175 = math.exp %174 : vector<2x32xf32>
    %cst_48 = arith.constant 1.000000e+00 : f32
    %176 = vector.broadcast %cst_48 : f32 to vector<2x32xf32>
    %177 = arith.addf %176, %175 : vector<2x32xf32>
    %178 = arith.divf %176, %177 : vector<2x32xf32>
    %179 = vector.extract_strided_slice %158 {offsets = [0, 64], sizes = [2, 32], strides = [1, 1]} : vector<2x96xf32> to vector<2x32xf32>
    %180 = vector.extract_strided_slice %162 {offsets = [0, 64], sizes = [2, 32], strides = [1, 1]} : vector<2x96xf32> to vector<2x32xf32>
    %181 = arith.mulf %170, %180 : vector<2x32xf32>
    %182 = arith.addf %179, %181 : vector<2x32xf32>
    %183 = math.tanh %182 : vector<2x32xf32>
    %cst_49 = arith.constant 1.000000e+00 : f32
    %184 = vector.broadcast %cst_49 : f32 to vector<2x32xf32>
    %185 = arith.subf %184, %178 : vector<2x32xf32>
    %186 = arith.mulf %185, %183 : vector<2x32xf32>
    %187 = arith.mulf %178, %152 : vector<2x32xf32>
    %188 = arith.addf %186, %187 : vector<2x32xf32>
    %189 = vector.broadcast %159 : vector<2x1xf32> to vector<2x32xf32>
    %190 = arith.mulf %189, %188 : vector<2x32xf32>
    %cst_50 = arith.constant 1.000000e+00 : f32
    %191 = vector.broadcast %cst_50 : f32 to vector<2x1xf32>
    %192 = arith.subf %191, %159 : vector<2x1xf32>
    %193 = vector.broadcast %192 : vector<2x1xf32> to vector<2x32xf32>
    %194 = arith.mulf %193, %152 : vector<2x32xf32>
    %195 = arith.addf %190, %194 : vector<2x32xf32>
    %196 = vector.broadcast %159 : vector<2x1xf32> to vector<2x32xf32>
    %197 = arith.mulf %195, %196 : vector<2x32xf32>
    %c3 = arith.constant 3 : index
    %c0_51 = arith.constant 0 : index
    %c0_52 = arith.constant 0 : index
    %198 = vector.load %arg13[%c3, %c0_51, %c0_52] : memref<8x2x32xf32, #tpu.memory_space<vmem>>, vector<1x2x32xf32>
    %199 = vector.shape_cast %198 : vector<1x2x32xf32> to vector<2x32xf32>
    %200 = vector.shape_cast %197 : vector<2x32xf32> to vector<1x2x32xf32>
    tpu.vector_store %arg13[%c3, %c0_51, %c0_52], %200 {strides = array<i32>} : memref<8x2x32xf32, #tpu.memory_space<vmem>>, vector<1x2x32xf32>,
    %201 = vector.extract_strided_slice %18 {offsets = [8, 0], sizes = [2, 96], strides = [1, 1]} : vector<16x96xf32> to vector<2x96xf32>
    %202 = vector.extract_strided_slice %13 {offsets = [0, 4], sizes = [2, 1], strides = [1, 1]} : vector<2x8xf32> to vector<2x1xf32>
    %cst_53 = arith.constant dense<0.000000e+00> : vector<2x96xf32>
    %203 = tpu.matmul %195, %24, %cst_53 {dimension_numbers = #tpu.dot_dimension_numbers<[1], [0], [0], [1], [0, 0, 1, 1], [], []>} : vector<2x32xf32>, vector<32x96xf32>, vector<2x96xf32> -> vector<2x96xf32>
    %204 = vector.broadcast %25 : vector<1x96xf32> to vector<2x96xf32>
    %205 = arith.addf %203, %204 : vector<2x96xf32>
    %206 = vector.extract_strided_slice %201 {offsets = [0, 0], sizes = [2, 32], strides = [1, 1]} : vector<2x96xf32> to vector<2x32xf32>
    %207 = vector.extract_strided_slice %205 {offsets = [0, 0], sizes = [2, 32], strides = [1, 1]} : vector<2x96xf32> to vector<2x32xf32>
    %208 = arith.addf %206, %207 : vector<2x32xf32>
    %209 = arith.negf %208 : vector<2x32xf32>
    %210 = math.exp %209 : vector<2x32xf32>
    %cst_54 = arith.constant 1.000000e+00 : f32
    %211 = vector.broadcast %cst_54 : f32 to vector<2x32xf32>
    %212 = arith.addf %211, %210 : vector<2x32xf32>
    %213 = arith.divf %211, %212 : vector<2x32xf32>
    %214 = vector.extract_strided_slice %201 {offsets = [0, 32], sizes = [2, 32], strides = [1, 1]} : vector<2x96xf32> to vector<2x32xf32>
    %215 = vector.extract_strided_slice %205 {offsets = [0, 32], sizes = [2, 32], strides = [1, 1]} : vector<2x96xf32> to vector<2x32xf32>
    %216 = arith.addf %214, %215 : vector<2x32xf32>
    %217 = arith.negf %216 : vector<2x32xf32>
    %218 = math.exp %217 : vector<2x32xf32>
    %cst_55 = arith.constant 1.000000e+00 : f32
    %219 = vector.broadcast %cst_55 : f32 to vector<2x32xf32>
    %220 = arith.addf %219, %218 : vector<2x32xf32>
    %221 = arith.divf %219, %220 : vector<2x32xf32>
    %222 = vector.extract_strided_slice %201 {offsets = [0, 64], sizes = [2, 32], strides = [1, 1]} : vector<2x96xf32> to vector<2x32xf32>
    %223 = vector.extract_strided_slice %205 {offsets = [0, 64], sizes = [2, 32], strides = [1, 1]} : vector<2x96xf32> to vector<2x32xf32>
    %224 = arith.mulf %213, %223 : vector<2x32xf32>
    %225 = arith.addf %222, %224 : vector<2x32xf32>
    %226 = math.tanh %225 : vector<2x32xf32>
    %cst_56 = arith.constant 1.000000e+00 : f32
    %227 = vector.broadcast %cst_56 : f32 to vector<2x32xf32>
    %228 = arith.subf %227, %221 : vector<2x32xf32>
    %229 = arith.mulf %228, %226 : vector<2x32xf32>
    %230 = arith.mulf %221, %195 : vector<2x32xf32>
    %231 = arith.addf %229, %230 : vector<2x32xf32>
    %232 = vector.broadcast %202 : vector<2x1xf32> to vector<2x32xf32>
    %233 = arith.mulf %232, %231 : vector<2x32xf32>
    %cst_57 = arith.constant 1.000000e+00 : f32
    %234 = vector.broadcast %cst_57 : f32 to vector<2x1xf32>
    %235 = arith.subf %234, %202 : vector<2x1xf32>
    %236 = vector.broadcast %235 : vector<2x1xf32> to vector<2x32xf32>
    %237 = arith.mulf %236, %195 : vector<2x32xf32>
    %238 = arith.addf %233, %237 : vector<2x32xf32>
    %239 = vector.broadcast %202 : vector<2x1xf32> to vector<2x32xf32>
    %240 = arith.mulf %238, %239 : vector<2x32xf32>
    %c4 = arith.constant 4 : index
    %c0_58 = arith.constant 0 : index
    %c0_59 = arith.constant 0 : index
    %241 = vector.load %arg13[%c4, %c0_58, %c0_59] : memref<8x2x32xf32, #tpu.memory_space<vmem>>, vector<1x2x32xf32>
    %242 = vector.shape_cast %241 : vector<1x2x32xf32> to vector<2x32xf32>
    %243 = vector.shape_cast %240 : vector<2x32xf32> to vector<1x2x32xf32>
    tpu.vector_store %arg13[%c4, %c0_58, %c0_59], %243 {strides = array<i32>} : memref<8x2x32xf32, #tpu.memory_space<vmem>>, vector<1x2x32xf32>,
    %244 = vector.extract_strided_slice %18 {offsets = [10, 0], sizes = [2, 96], strides = [1, 1]} : vector<16x96xf32> to vector<2x96xf32>
    %245 = vector.extract_strided_slice %13 {offsets = [0, 5], sizes = [2, 1], strides = [1, 1]} : vector<2x8xf32> to vector<2x1xf32>
    %cst_60 = arith.constant dense<0.000000e+00> : vector<2x96xf32>
    %246 = tpu.matmul %238, %24, %cst_60 {dimension_numbers = #tpu.dot_dimension_numbers<[1], [0], [0], [1], [0, 0, 1, 1], [], []>} : vector<2x32xf32>, vector<32x96xf32>, vector<2x96xf32> -> vector<2x96xf32>
    %247 = vector.broadcast %25 : vector<1x96xf32> to vector<2x96xf32>
    %248 = arith.addf %246, %247 : vector<2x96xf32>
    %249 = vector.extract_strided_slice %244 {offsets = [0, 0], sizes = [2, 32], strides = [1, 1]} : vector<2x96xf32> to vector<2x32xf32>
    %250 = vector.extract_strided_slice %248 {offsets = [0, 0], sizes = [2, 32], strides = [1, 1]} : vector<2x96xf32> to vector<2x32xf32>
    %251 = arith.addf %249, %250 : vector<2x32xf32>
    %252 = arith.negf %251 : vector<2x32xf32>
    %253 = math.exp %252 : vector<2x32xf32>
    %cst_61 = arith.constant 1.000000e+00 : f32
    %254 = vector.broadcast %cst_61 : f32 to vector<2x32xf32>
    %255 = arith.addf %254, %253 : vector<2x32xf32>
    %256 = arith.divf %254, %255 : vector<2x32xf32>
    %257 = vector.extract_strided_slice %244 {offsets = [0, 32], sizes = [2, 32], strides = [1, 1]} : vector<2x96xf32> to vector<2x32xf32>
    %258 = vector.extract_strided_slice %248 {offsets = [0, 32], sizes = [2, 32], strides = [1, 1]} : vector<2x96xf32> to vector<2x32xf32>
    %259 = arith.addf %257, %258 : vector<2x32xf32>
    %260 = arith.negf %259 : vector<2x32xf32>
    %261 = math.exp %260 : vector<2x32xf32>
    %cst_62 = arith.constant 1.000000e+00 : f32
    %262 = vector.broadcast %cst_62 : f32 to vector<2x32xf32>
    %263 = arith.addf %262, %261 : vector<2x32xf32>
    %264 = arith.divf %262, %263 : vector<2x32xf32>
    %265 = vector.extract_strided_slice %244 {offsets = [0, 64], sizes = [2, 32], strides = [1, 1]} : vector<2x96xf32> to vector<2x32xf32>
    %266 = vector.extract_strided_slice %248 {offsets = [0, 64], sizes = [2, 32], strides = [1, 1]} : vector<2x96xf32> to vector<2x32xf32>
    %267 = arith.mulf %256, %266 : vector<2x32xf32>
    %268 = arith.addf %265, %267 : vector<2x32xf32>
    %269 = math.tanh %268 : vector<2x32xf32>
    %cst_63 = arith.constant 1.000000e+00 : f32
    %270 = vector.broadcast %cst_63 : f32 to vector<2x32xf32>
    %271 = arith.subf %270, %264 : vector<2x32xf32>
    %272 = arith.mulf %271, %269 : vector<2x32xf32>
    %273 = arith.mulf %264, %238 : vector<2x32xf32>
    %274 = arith.addf %272, %273 : vector<2x32xf32>
    %275 = vector.broadcast %245 : vector<2x1xf32> to vector<2x32xf32>
    %276 = arith.mulf %275, %274 : vector<2x32xf32>
    %cst_64 = arith.constant 1.000000e+00 : f32
    %277 = vector.broadcast %cst_64 : f32 to vector<2x1xf32>
    %278 = arith.subf %277, %245 : vector<2x1xf32>
    %279 = vector.broadcast %278 : vector<2x1xf32> to vector<2x32xf32>
    %280 = arith.mulf %279, %238 : vector<2x32xf32>
    %281 = arith.addf %276, %280 : vector<2x32xf32>
    %282 = vector.broadcast %245 : vector<2x1xf32> to vector<2x32xf32>
    %283 = arith.mulf %281, %282 : vector<2x32xf32>
    %c5 = arith.constant 5 : index
    %c0_65 = arith.constant 0 : index
    %c0_66 = arith.constant 0 : index
    %284 = vector.load %arg13[%c5, %c0_65, %c0_66] : memref<8x2x32xf32, #tpu.memory_space<vmem>>, vector<1x2x32xf32>
    %285 = vector.shape_cast %284 : vector<1x2x32xf32> to vector<2x32xf32>
    %286 = vector.shape_cast %283 : vector<2x32xf32> to vector<1x2x32xf32>
    tpu.vector_store %arg13[%c5, %c0_65, %c0_66], %286 {strides = array<i32>} : memref<8x2x32xf32, #tpu.memory_space<vmem>>, vector<1x2x32xf32>,
    %287 = vector.extract_strided_slice %18 {offsets = [12, 0], sizes = [2, 96], strides = [1, 1]} : vector<16x96xf32> to vector<2x96xf32>
    %288 = vector.extract_strided_slice %13 {offsets = [0, 6], sizes = [2, 1], strides = [1, 1]} : vector<2x8xf32> to vector<2x1xf32>
    %cst_67 = arith.constant dense<0.000000e+00> : vector<2x96xf32>
    %289 = tpu.matmul %281, %24, %cst_67 {dimension_numbers = #tpu.dot_dimension_numbers<[1], [0], [0], [1], [0, 0, 1, 1], [], []>} : vector<2x32xf32>, vector<32x96xf32>, vector<2x96xf32> -> vector<2x96xf32>
    %290 = vector.broadcast %25 : vector<1x96xf32> to vector<2x96xf32>
    %291 = arith.addf %289, %290 : vector<2x96xf32>
    %292 = vector.extract_strided_slice %287 {offsets = [0, 0], sizes = [2, 32], strides = [1, 1]} : vector<2x96xf32> to vector<2x32xf32>
    %293 = vector.extract_strided_slice %291 {offsets = [0, 0], sizes = [2, 32], strides = [1, 1]} : vector<2x96xf32> to vector<2x32xf32>
    %294 = arith.addf %292, %293 : vector<2x32xf32>
    %295 = arith.negf %294 : vector<2x32xf32>
    %296 = math.exp %295 : vector<2x32xf32>
    %cst_68 = arith.constant 1.000000e+00 : f32
    %297 = vector.broadcast %cst_68 : f32 to vector<2x32xf32>
    %298 = arith.addf %297, %296 : vector<2x32xf32>
    %299 = arith.divf %297, %298 : vector<2x32xf32>
    %300 = vector.extract_strided_slice %287 {offsets = [0, 32], sizes = [2, 32], strides = [1, 1]} : vector<2x96xf32> to vector<2x32xf32>
    %301 = vector.extract_strided_slice %291 {offsets = [0, 32], sizes = [2, 32], strides = [1, 1]} : vector<2x96xf32> to vector<2x32xf32>
    %302 = arith.addf %300, %301 : vector<2x32xf32>
    %303 = arith.negf %302 : vector<2x32xf32>
    %304 = math.exp %303 : vector<2x32xf32>
    %cst_69 = arith.constant 1.000000e+00 : f32
    %305 = vector.broadcast %cst_69 : f32 to vector<2x32xf32>
    %306 = arith.addf %305, %304 : vector<2x32xf32>
    %307 = arith.divf %305, %306 : vector<2x32xf32>
    %308 = vector.extract_strided_slice %287 {offsets = [0, 64], sizes = [2, 32], strides = [1, 1]} : vector<2x96xf32> to vector<2x32xf32>
    %309 = vector.extract_strided_slice %291 {offsets = [0, 64], sizes = [2, 32], strides = [1, 1]} : vector<2x96xf32> to vector<2x32xf32>
    %310 = arith.mulf %299, %309 : vector<2x32xf32>
    %311 = arith.addf %308, %310 : vector<2x32xf32>
    %312 = math.tanh %311 : vector<2x32xf32>
    %cst_70 = arith.constant 1.000000e+00 : f32
    %313 = vector.broadcast %cst_70 : f32 to vector<2x32xf32>
    %314 = arith.subf %313, %307 : vector<2x32xf32>
    %315 = arith.mulf %314, %312 : vector<2x32xf32>
    %316 = arith.mulf %307, %281 : vector<2x32xf32>
    %317 = arith.addf %315, %316 : vector<2x32xf32>
    %318 = vector.broadcast %288 : vector<2x1xf32> to vector<2x32xf32>
    %319 = arith.mulf %318, %317 : vector<2x32xf32>
    %cst_71 = arith.constant 1.000000e+00 : f32
    %320 = vector.broadcast %cst_71 : f32 to vector<2x1xf32>
    %321 = arith.subf %320, %288 : vector<2x1xf32>
    %322 = vector.broadcast %321 : vector<2x1xf32> to vector<2x32xf32>
    %323 = arith.mulf %322, %281 : vector<2x32xf32>
    %324 = arith.addf %319, %323 : vector<2x32xf32>
    %325 = vector.broadcast %288 : vector<2x1xf32> to vector<2x32xf32>
    %326 = arith.mulf %324, %325 : vector<2x32xf32>
    %c6 = arith.constant 6 : index
    %c0_72 = arith.constant 0 : index
    %c0_73 = arith.constant 0 : index
    %327 = vector.load %arg13[%c6, %c0_72, %c0_73] : memref<8x2x32xf32, #tpu.memory_space<vmem>>, vector<1x2x32xf32>
    %328 = vector.shape_cast %327 : vector<1x2x32xf32> to vector<2x32xf32>
    %329 = vector.shape_cast %326 : vector<2x32xf32> to vector<1x2x32xf32>
    tpu.vector_store %arg13[%c6, %c0_72, %c0_73], %329 {strides = array<i32>} : memref<8x2x32xf32, #tpu.memory_space<vmem>>, vector<1x2x32xf32>,
    %330 = vector.extract_strided_slice %18 {offsets = [14, 0], sizes = [2, 96], strides = [1, 1]} : vector<16x96xf32> to vector<2x96xf32>
    %331 = vector.extract_strided_slice %13 {offsets = [0, 7], sizes = [2, 1], strides = [1, 1]} : vector<2x8xf32> to vector<2x1xf32>
    %cst_74 = arith.constant dense<0.000000e+00> : vector<2x96xf32>
    %332 = tpu.matmul %324, %24, %cst_74 {dimension_numbers = #tpu.dot_dimension_numbers<[1], [0], [0], [1], [0, 0, 1, 1], [], []>} : vector<2x32xf32>, vector<32x96xf32>, vector<2x96xf32> -> vector<2x96xf32>
    %333 = vector.broadcast %25 : vector<1x96xf32> to vector<2x96xf32>
    %334 = arith.addf %332, %333 : vector<2x96xf32>
    %335 = vector.extract_strided_slice %330 {offsets = [0, 0], sizes = [2, 32], strides = [1, 1]} : vector<2x96xf32> to vector<2x32xf32>
    %336 = vector.extract_strided_slice %334 {offsets = [0, 0], sizes = [2, 32], strides = [1, 1]} : vector<2x96xf32> to vector<2x32xf32>
    %337 = arith.addf %335, %336 : vector<2x32xf32>
    %338 = arith.negf %337 : vector<2x32xf32>
    %339 = math.exp %338 : vector<2x32xf32>
    %cst_75 = arith.constant 1.000000e+00 : f32
    %340 = vector.broadcast %cst_75 : f32 to vector<2x32xf32>
    %341 = arith.addf %340, %339 : vector<2x32xf32>
    %342 = arith.divf %340, %341 : vector<2x32xf32>
    %343 = vector.extract_strided_slice %330 {offsets = [0, 32], sizes = [2, 32], strides = [1, 1]} : vector<2x96xf32> to vector<2x32xf32>
    %344 = vector.extract_strided_slice %334 {offsets = [0, 32], sizes = [2, 32], strides = [1, 1]} : vector<2x96xf32> to vector<2x32xf32>
    %345 = arith.addf %343, %344 : vector<2x32xf32>
    %346 = arith.negf %345 : vector<2x32xf32>
    %347 = math.exp %346 : vector<2x32xf32>
    %cst_76 = arith.constant 1.000000e+00 : f32
    %348 = vector.broadcast %cst_76 : f32 to vector<2x32xf32>
    %349 = arith.addf %348, %347 : vector<2x32xf32>
    %350 = arith.divf %348, %349 : vector<2x32xf32>
    %351 = vector.extract_strided_slice %330 {offsets = [0, 64], sizes = [2, 32], strides = [1, 1]} : vector<2x96xf32> to vector<2x32xf32>
    %352 = vector.extract_strided_slice %334 {offsets = [0, 64], sizes = [2, 32], strides = [1, 1]} : vector<2x96xf32> to vector<2x32xf32>
    %353 = arith.mulf %342, %352 : vector<2x32xf32>
    %354 = arith.addf %351, %353 : vector<2x32xf32>
    %355 = math.tanh %354 : vector<2x32xf32>
    %cst_77 = arith.constant 1.000000e+00 : f32
    %356 = vector.broadcast %cst_77 : f32 to vector<2x32xf32>
    %357 = arith.subf %356, %350 : vector<2x32xf32>
    %358 = arith.mulf %357, %355 : vector<2x32xf32>
    %359 = arith.mulf %350, %324 : vector<2x32xf32>
    %360 = arith.addf %358, %359 : vector<2x32xf32>
    %361 = vector.broadcast %331 : vector<2x1xf32> to vector<2x32xf32>
    %362 = arith.mulf %361, %360 : vector<2x32xf32>
    %cst_78 = arith.constant 1.000000e+00 : f32
    %363 = vector.broadcast %cst_78 : f32 to vector<2x1xf32>
    %364 = arith.subf %363, %331 : vector<2x1xf32>
    %365 = vector.broadcast %364 : vector<2x1xf32> to vector<2x32xf32>
    %366 = arith.mulf %365, %324 : vector<2x32xf32>
    %367 = arith.addf %362, %366 : vector<2x32xf32>
    %368 = vector.broadcast %331 : vector<2x1xf32> to vector<2x32xf32>
    %369 = arith.mulf %367, %368 : vector<2x32xf32>
    %c7 = arith.constant 7 : index
    %c0_79 = arith.constant 0 : index
    %c0_80 = arith.constant 0 : index
    %370 = vector.load %arg13[%c7, %c0_79, %c0_80] : memref<8x2x32xf32, #tpu.memory_space<vmem>>, vector<1x2x32xf32>
    %371 = vector.shape_cast %370 : vector<1x2x32xf32> to vector<2x32xf32>
    %372 = vector.shape_cast %369 : vector<2x32xf32> to vector<1x2x32xf32>
    tpu.vector_store %arg13[%c7, %c0_79, %c0_80], %372 {strides = array<i32>} : memref<8x2x32xf32, #tpu.memory_space<vmem>>, vector<1x2x32xf32>,
    %cst_81 = arith.constant 0.000000e+00 : f32
    %373 = vector.broadcast %cst_81 : f32 to vector<2x32xf32>
    %374 = vector.extract_strided_slice %23 {offsets = [14, 0], sizes = [2, 96], strides = [1, 1]} : vector<16x96xf32> to vector<2x96xf32>
    %375 = vector.extract_strided_slice %13 {offsets = [0, 7], sizes = [2, 1], strides = [1, 1]} : vector<2x8xf32> to vector<2x1xf32>
    %cst_82 = arith.constant dense<0.000000e+00> : vector<2x96xf32>
    %376 = tpu.matmul %373, %26, %cst_82 {dimension_numbers = #tpu.dot_dimension_numbers<[1], [0], [0], [1], [0, 0, 1, 1], [], []>} : vector<2x32xf32>, vector<32x96xf32>, vector<2x96xf32> -> vector<2x96xf32>
    %377 = vector.broadcast %27 : vector<1x96xf32> to vector<2x96xf32>
    %378 = arith.addf %376, %377 : vector<2x96xf32>
    %379 = vector.extract_strided_slice %374 {offsets = [0, 0], sizes = [2, 32], strides = [1, 1]} : vector<2x96xf32> to vector<2x32xf32>
    %380 = vector.extract_strided_slice %378 {offsets = [0, 0], sizes = [2, 32], strides = [1, 1]} : vector<2x96xf32> to vector<2x32xf32>
    %381 = arith.addf %379, %380 : vector<2x32xf32>
    %382 = arith.negf %381 : vector<2x32xf32>
    %383 = math.exp %382 : vector<2x32xf32>
    %cst_83 = arith.constant 1.000000e+00 : f32
    %384 = vector.broadcast %cst_83 : f32 to vector<2x32xf32>
    %385 = arith.addf %384, %383 : vector<2x32xf32>
    %386 = arith.divf %384, %385 : vector<2x32xf32>
    %387 = vector.extract_strided_slice %374 {offsets = [0, 32], sizes = [2, 32], strides = [1, 1]} : vector<2x96xf32> to vector<2x32xf32>
    %388 = vector.extract_strided_slice %378 {offsets = [0, 32], sizes = [2, 32], strides = [1, 1]} : vector<2x96xf32> to vector<2x32xf32>
    %389 = arith.addf %387, %388 : vector<2x32xf32>
    %390 = arith.negf %389 : vector<2x32xf32>
    %391 = math.exp %390 : vector<2x32xf32>
    %cst_84 = arith.constant 1.000000e+00 : f32
    %392 = vector.broadcast %cst_84 : f32 to vector<2x32xf32>
    %393 = arith.addf %392, %391 : vector<2x32xf32>
    %394 = arith.divf %392, %393 : vector<2x32xf32>
    %395 = vector.extract_strided_slice %374 {offsets = [0, 64], sizes = [2, 32], strides = [1, 1]} : vector<2x96xf32> to vector<2x32xf32>
    %396 = vector.extract_strided_slice %378 {offsets = [0, 64], sizes = [2, 32], strides = [1, 1]} : vector<2x96xf32> to vector<2x32xf32>
    %397 = arith.mulf %386, %396 : vector<2x32xf32>
    %398 = arith.addf %395, %397 : vector<2x32xf32>
    %399 = math.tanh %398 : vector<2x32xf32>
    %cst_85 = arith.constant 1.000000e+00 : f32
    %400 = vector.broadcast %cst_85 : f32 to vector<2x32xf32>
    %401 = arith.subf %400, %394 : vector<2x32xf32>
    %402 = arith.mulf %401, %399 : vector<2x32xf32>
    %403 = arith.mulf %394, %373 : vector<2x32xf32>
    %404 = arith.addf %402, %403 : vector<2x32xf32>
    %405 = vector.broadcast %375 : vector<2x1xf32> to vector<2x32xf32>
    %406 = arith.mulf %405, %404 : vector<2x32xf32>
    %cst_86 = arith.constant 1.000000e+00 : f32
    %407 = vector.broadcast %cst_86 : f32 to vector<2x1xf32>
    %408 = arith.subf %407, %375 : vector<2x1xf32>
    %409 = vector.broadcast %408 : vector<2x1xf32> to vector<2x32xf32>
    %410 = arith.mulf %409, %373 : vector<2x32xf32>
    %411 = arith.addf %406, %410 : vector<2x32xf32>
    %412 = vector.broadcast %375 : vector<2x1xf32> to vector<2x32xf32>
    %413 = arith.mulf %411, %412 : vector<2x32xf32>
    %c7_87 = arith.constant 7 : index
    %c0_88 = arith.constant 0 : index
    %c0_89 = arith.constant 0 : index
    %414 = vector.load %arg14[%c7_87, %c0_88, %c0_89] : memref<8x2x32xf32, #tpu.memory_space<vmem>>, vector<1x2x32xf32>
    %415 = vector.shape_cast %414 : vector<1x2x32xf32> to vector<2x32xf32>
    %416 = vector.shape_cast %413 : vector<2x32xf32> to vector<1x2x32xf32>
    tpu.vector_store %arg14[%c7_87, %c0_88, %c0_89], %416 {strides = array<i32>} : memref<8x2x32xf32, #tpu.memory_space<vmem>>, vector<1x2x32xf32>,
    %417 = vector.extract_strided_slice %23 {offsets = [12, 0], sizes = [2, 96], strides = [1, 1]} : vector<16x96xf32> to vector<2x96xf32>
    %418 = vector.extract_strided_slice %13 {offsets = [0, 6], sizes = [2, 1], strides = [1, 1]} : vector<2x8xf32> to vector<2x1xf32>
    %cst_90 = arith.constant dense<0.000000e+00> : vector<2x96xf32>
    %419 = tpu.matmul %411, %26, %cst_90 {dimension_numbers = #tpu.dot_dimension_numbers<[1], [0], [0], [1], [0, 0, 1, 1], [], []>} : vector<2x32xf32>, vector<32x96xf32>, vector<2x96xf32> -> vector<2x96xf32>
    %420 = vector.broadcast %27 : vector<1x96xf32> to vector<2x96xf32>
    %421 = arith.addf %419, %420 : vector<2x96xf32>
    %422 = vector.extract_strided_slice %417 {offsets = [0, 0], sizes = [2, 32], strides = [1, 1]} : vector<2x96xf32> to vector<2x32xf32>
    %423 = vector.extract_strided_slice %421 {offsets = [0, 0], sizes = [2, 32], strides = [1, 1]} : vector<2x96xf32> to vector<2x32xf32>
    %424 = arith.addf %422, %423 : vector<2x32xf32>
    %425 = arith.negf %424 : vector<2x32xf32>
    %426 = math.exp %425 : vector<2x32xf32>
    %cst_91 = arith.constant 1.000000e+00 : f32
    %427 = vector.broadcast %cst_91 : f32 to vector<2x32xf32>
    %428 = arith.addf %427, %426 : vector<2x32xf32>
    %429 = arith.divf %427, %428 : vector<2x32xf32>
    %430 = vector.extract_strided_slice %417 {offsets = [0, 32], sizes = [2, 32], strides = [1, 1]} : vector<2x96xf32> to vector<2x32xf32>
    %431 = vector.extract_strided_slice %421 {offsets = [0, 32], sizes = [2, 32], strides = [1, 1]} : vector<2x96xf32> to vector<2x32xf32>
    %432 = arith.addf %430, %431 : vector<2x32xf32>
    %433 = arith.negf %432 : vector<2x32xf32>
    %434 = math.exp %433 : vector<2x32xf32>
    %cst_92 = arith.constant 1.000000e+00 : f32
    %435 = vector.broadcast %cst_92 : f32 to vector<2x32xf32>
    %436 = arith.addf %435, %434 : vector<2x32xf32>
    %437 = arith.divf %435, %436 : vector<2x32xf32>
    %438 = vector.extract_strided_slice %417 {offsets = [0, 64], sizes = [2, 32], strides = [1, 1]} : vector<2x96xf32> to vector<2x32xf32>
    %439 = vector.extract_strided_slice %421 {offsets = [0, 64], sizes = [2, 32], strides = [1, 1]} : vector<2x96xf32> to vector<2x32xf32>
    %440 = arith.mulf %429, %439 : vector<2x32xf32>
    %441 = arith.addf %438, %440 : vector<2x32xf32>
    %442 = math.tanh %441 : vector<2x32xf32>
    %cst_93 = arith.constant 1.000000e+00 : f32
    %443 = vector.broadcast %cst_93 : f32 to vector<2x32xf32>
    %444 = arith.subf %443, %437 : vector<2x32xf32>
    %445 = arith.mulf %444, %442 : vector<2x32xf32>
    %446 = arith.mulf %437, %411 : vector<2x32xf32>
    %447 = arith.addf %445, %446 : vector<2x32xf32>
    %448 = vector.broadcast %418 : vector<2x1xf32> to vector<2x32xf32>
    %449 = arith.mulf %448, %447 : vector<2x32xf32>
    %cst_94 = arith.constant 1.000000e+00 : f32
    %450 = vector.broadcast %cst_94 : f32 to vector<2x1xf32>
    %451 = arith.subf %450, %418 : vector<2x1xf32>
    %452 = vector.broadcast %451 : vector<2x1xf32> to vector<2x32xf32>
    %453 = arith.mulf %452, %411 : vector<2x32xf32>
    %454 = arith.addf %449, %453 : vector<2x32xf32>
    %455 = vector.broadcast %418 : vector<2x1xf32> to vector<2x32xf32>
    %456 = arith.mulf %454, %455 : vector<2x32xf32>
    %c6_95 = arith.constant 6 : index
    %c0_96 = arith.constant 0 : index
    %c0_97 = arith.constant 0 : index
    %457 = vector.load %arg14[%c6_95, %c0_96, %c0_97] : memref<8x2x32xf32, #tpu.memory_space<vmem>>, vector<1x2x32xf32>
    %458 = vector.shape_cast %457 : vector<1x2x32xf32> to vector<2x32xf32>
    %459 = vector.shape_cast %456 : vector<2x32xf32> to vector<1x2x32xf32>
    tpu.vector_store %arg14[%c6_95, %c0_96, %c0_97], %459 {strides = array<i32>} : memref<8x2x32xf32, #tpu.memory_space<vmem>>, vector<1x2x32xf32>,
    %460 = vector.extract_strided_slice %23 {offsets = [10, 0], sizes = [2, 96], strides = [1, 1]} : vector<16x96xf32> to vector<2x96xf32>
    %461 = vector.extract_strided_slice %13 {offsets = [0, 5], sizes = [2, 1], strides = [1, 1]} : vector<2x8xf32> to vector<2x1xf32>
    %cst_98 = arith.constant dense<0.000000e+00> : vector<2x96xf32>
    %462 = tpu.matmul %454, %26, %cst_98 {dimension_numbers = #tpu.dot_dimension_numbers<[1], [0], [0], [1], [0, 0, 1, 1], [], []>} : vector<2x32xf32>, vector<32x96xf32>, vector<2x96xf32> -> vector<2x96xf32>
    %463 = vector.broadcast %27 : vector<1x96xf32> to vector<2x96xf32>
    %464 = arith.addf %462, %463 : vector<2x96xf32>
    %465 = vector.extract_strided_slice %460 {offsets = [0, 0], sizes = [2, 32], strides = [1, 1]} : vector<2x96xf32> to vector<2x32xf32>
    %466 = vector.extract_strided_slice %464 {offsets = [0, 0], sizes = [2, 32], strides = [1, 1]} : vector<2x96xf32> to vector<2x32xf32>
    %467 = arith.addf %465, %466 : vector<2x32xf32>
    %468 = arith.negf %467 : vector<2x32xf32>
    %469 = math.exp %468 : vector<2x32xf32>
    %cst_99 = arith.constant 1.000000e+00 : f32
    %470 = vector.broadcast %cst_99 : f32 to vector<2x32xf32>
    %471 = arith.addf %470, %469 : vector<2x32xf32>
    %472 = arith.divf %470, %471 : vector<2x32xf32>
    %473 = vector.extract_strided_slice %460 {offsets = [0, 32], sizes = [2, 32], strides = [1, 1]} : vector<2x96xf32> to vector<2x32xf32>
    %474 = vector.extract_strided_slice %464 {offsets = [0, 32], sizes = [2, 32], strides = [1, 1]} : vector<2x96xf32> to vector<2x32xf32>
    %475 = arith.addf %473, %474 : vector<2x32xf32>
    %476 = arith.negf %475 : vector<2x32xf32>
    %477 = math.exp %476 : vector<2x32xf32>
    %cst_100 = arith.constant 1.000000e+00 : f32
    %478 = vector.broadcast %cst_100 : f32 to vector<2x32xf32>
    %479 = arith.addf %478, %477 : vector<2x32xf32>
    %480 = arith.divf %478, %479 : vector<2x32xf32>
    %481 = vector.extract_strided_slice %460 {offsets = [0, 64], sizes = [2, 32], strides = [1, 1]} : vector<2x96xf32> to vector<2x32xf32>
    %482 = vector.extract_strided_slice %464 {offsets = [0, 64], sizes = [2, 32], strides = [1, 1]} : vector<2x96xf32> to vector<2x32xf32>
    %483 = arith.mulf %472, %482 : vector<2x32xf32>
    %484 = arith.addf %481, %483 : vector<2x32xf32>
    %485 = math.tanh %484 : vector<2x32xf32>
    %cst_101 = arith.constant 1.000000e+00 : f32
    %486 = vector.broadcast %cst_101 : f32 to vector<2x32xf32>
    %487 = arith.subf %486, %480 : vector<2x32xf32>
    %488 = arith.mulf %487, %485 : vector<2x32xf32>
    %489 = arith.mulf %480, %454 : vector<2x32xf32>
    %490 = arith.addf %488, %489 : vector<2x32xf32>
    %491 = vector.broadcast %461 : vector<2x1xf32> to vector<2x32xf32>
    %492 = arith.mulf %491, %490 : vector<2x32xf32>
    %cst_102 = arith.constant 1.000000e+00 : f32
    %493 = vector.broadcast %cst_102 : f32 to vector<2x1xf32>
    %494 = arith.subf %493, %461 : vector<2x1xf32>
    %495 = vector.broadcast %494 : vector<2x1xf32> to vector<2x32xf32>
    %496 = arith.mulf %495, %454 : vector<2x32xf32>
    %497 = arith.addf %492, %496 : vector<2x32xf32>
    %498 = vector.broadcast %461 : vector<2x1xf32> to vector<2x32xf32>
    %499 = arith.mulf %497, %498 : vector<2x32xf32>
    %c5_103 = arith.constant 5 : index
    %c0_104 = arith.constant 0 : index
    %c0_105 = arith.constant 0 : index
    %500 = vector.load %arg14[%c5_103, %c0_104, %c0_105] : memref<8x2x32xf32, #tpu.memory_space<vmem>>, vector<1x2x32xf32>
    %501 = vector.shape_cast %500 : vector<1x2x32xf32> to vector<2x32xf32>
    %502 = vector.shape_cast %499 : vector<2x32xf32> to vector<1x2x32xf32>
    tpu.vector_store %arg14[%c5_103, %c0_104, %c0_105], %502 {strides = array<i32>} : memref<8x2x32xf32, #tpu.memory_space<vmem>>, vector<1x2x32xf32>,
    %503 = vector.extract_strided_slice %23 {offsets = [8, 0], sizes = [2, 96], strides = [1, 1]} : vector<16x96xf32> to vector<2x96xf32>
    %504 = vector.extract_strided_slice %13 {offsets = [0, 4], sizes = [2, 1], strides = [1, 1]} : vector<2x8xf32> to vector<2x1xf32>
    %cst_106 = arith.constant dense<0.000000e+00> : vector<2x96xf32>
    %505 = tpu.matmul %497, %26, %cst_106 {dimension_numbers = #tpu.dot_dimension_numbers<[1], [0], [0], [1], [0, 0, 1, 1], [], []>} : vector<2x32xf32>, vector<32x96xf32>, vector<2x96xf32> -> vector<2x96xf32>
    %506 = vector.broadcast %27 : vector<1x96xf32> to vector<2x96xf32>
    %507 = arith.addf %505, %506 : vector<2x96xf32>
    %508 = vector.extract_strided_slice %503 {offsets = [0, 0], sizes = [2, 32], strides = [1, 1]} : vector<2x96xf32> to vector<2x32xf32>
    %509 = vector.extract_strided_slice %507 {offsets = [0, 0], sizes = [2, 32], strides = [1, 1]} : vector<2x96xf32> to vector<2x32xf32>
    %510 = arith.addf %508, %509 : vector<2x32xf32>
    %511 = arith.negf %510 : vector<2x32xf32>
    %512 = math.exp %511 : vector<2x32xf32>
    %cst_107 = arith.constant 1.000000e+00 : f32
    %513 = vector.broadcast %cst_107 : f32 to vector<2x32xf32>
    %514 = arith.addf %513, %512 : vector<2x32xf32>
    %515 = arith.divf %513, %514 : vector<2x32xf32>
    %516 = vector.extract_strided_slice %503 {offsets = [0, 32], sizes = [2, 32], strides = [1, 1]} : vector<2x96xf32> to vector<2x32xf32>
    %517 = vector.extract_strided_slice %507 {offsets = [0, 32], sizes = [2, 32], strides = [1, 1]} : vector<2x96xf32> to vector<2x32xf32>
    %518 = arith.addf %516, %517 : vector<2x32xf32>
    %519 = arith.negf %518 : vector<2x32xf32>
    %520 = math.exp %519 : vector<2x32xf32>
    %cst_108 = arith.constant 1.000000e+00 : f32
    %521 = vector.broadcast %cst_108 : f32 to vector<2x32xf32>
    %522 = arith.addf %521, %520 : vector<2x32xf32>
    %523 = arith.divf %521, %522 : vector<2x32xf32>
    %524 = vector.extract_strided_slice %503 {offsets = [0, 64], sizes = [2, 32], strides = [1, 1]} : vector<2x96xf32> to vector<2x32xf32>
    %525 = vector.extract_strided_slice %507 {offsets = [0, 64], sizes = [2, 32], strides = [1, 1]} : vector<2x96xf32> to vector<2x32xf32>
    %526 = arith.mulf %515, %525 : vector<2x32xf32>
    %527 = arith.addf %524, %526 : vector<2x32xf32>
    %528 = math.tanh %527 : vector<2x32xf32>
    %cst_109 = arith.constant 1.000000e+00 : f32
    %529 = vector.broadcast %cst_109 : f32 to vector<2x32xf32>
    %530 = arith.subf %529, %523 : vector<2x32xf32>
    %531 = arith.mulf %530, %528 : vector<2x32xf32>
    %532 = arith.mulf %523, %497 : vector<2x32xf32>
    %533 = arith.addf %531, %532 : vector<2x32xf32>
    %534 = vector.broadcast %504 : vector<2x1xf32> to vector<2x32xf32>
    %535 = arith.mulf %534, %533 : vector<2x32xf32>
    %cst_110 = arith.constant 1.000000e+00 : f32
    %536 = vector.broadcast %cst_110 : f32 to vector<2x1xf32>
    %537 = arith.subf %536, %504 : vector<2x1xf32>
    %538 = vector.broadcast %537 : vector<2x1xf32> to vector<2x32xf32>
    %539 = arith.mulf %538, %497 : vector<2x32xf32>
    %540 = arith.addf %535, %539 : vector<2x32xf32>
    %541 = vector.broadcast %504 : vector<2x1xf32> to vector<2x32xf32>
    %542 = arith.mulf %540, %541 : vector<2x32xf32>
    %c4_111 = arith.constant 4 : index
    %c0_112 = arith.constant 0 : index
    %c0_113 = arith.constant 0 : index
    %543 = vector.load %arg14[%c4_111, %c0_112, %c0_113] : memref<8x2x32xf32, #tpu.memory_space<vmem>>, vector<1x2x32xf32>
    %544 = vector.shape_cast %543 : vector<1x2x32xf32> to vector<2x32xf32>
    %545 = vector.shape_cast %542 : vector<2x32xf32> to vector<1x2x32xf32>
    tpu.vector_store %arg14[%c4_111, %c0_112, %c0_113], %545 {strides = array<i32>} : memref<8x2x32xf32, #tpu.memory_space<vmem>>, vector<1x2x32xf32>,
    %546 = vector.extract_strided_slice %23 {offsets = [6, 0], sizes = [2, 96], strides = [1, 1]} : vector<16x96xf32> to vector<2x96xf32>
    %547 = vector.extract_strided_slice %13 {offsets = [0, 3], sizes = [2, 1], strides = [1, 1]} : vector<2x8xf32> to vector<2x1xf32>
    %cst_114 = arith.constant dense<0.000000e+00> : vector<2x96xf32>
    %548 = tpu.matmul %540, %26, %cst_114 {dimension_numbers = #tpu.dot_dimension_numbers<[1], [0], [0], [1], [0, 0, 1, 1], [], []>} : vector<2x32xf32>, vector<32x96xf32>, vector<2x96xf32> -> vector<2x96xf32>
    %549 = vector.broadcast %27 : vector<1x96xf32> to vector<2x96xf32>
    %550 = arith.addf %548, %549 : vector<2x96xf32>
    %551 = vector.extract_strided_slice %546 {offsets = [0, 0], sizes = [2, 32], strides = [1, 1]} : vector<2x96xf32> to vector<2x32xf32>
    %552 = vector.extract_strided_slice %550 {offsets = [0, 0], sizes = [2, 32], strides = [1, 1]} : vector<2x96xf32> to vector<2x32xf32>
    %553 = arith.addf %551, %552 : vector<2x32xf32>
    %554 = arith.negf %553 : vector<2x32xf32>
    %555 = math.exp %554 : vector<2x32xf32>
    %cst_115 = arith.constant 1.000000e+00 : f32
    %556 = vector.broadcast %cst_115 : f32 to vector<2x32xf32>
    %557 = arith.addf %556, %555 : vector<2x32xf32>
    %558 = arith.divf %556, %557 : vector<2x32xf32>
    %559 = vector.extract_strided_slice %546 {offsets = [0, 32], sizes = [2, 32], strides = [1, 1]} : vector<2x96xf32> to vector<2x32xf32>
    %560 = vector.extract_strided_slice %550 {offsets = [0, 32], sizes = [2, 32], strides = [1, 1]} : vector<2x96xf32> to vector<2x32xf32>
    %561 = arith.addf %559, %560 : vector<2x32xf32>
    %562 = arith.negf %561 : vector<2x32xf32>
    %563 = math.exp %562 : vector<2x32xf32>
    %cst_116 = arith.constant 1.000000e+00 : f32
    %564 = vector.broadcast %cst_116 : f32 to vector<2x32xf32>
    %565 = arith.addf %564, %563 : vector<2x32xf32>
    %566 = arith.divf %564, %565 : vector<2x32xf32>
    %567 = vector.extract_strided_slice %546 {offsets = [0, 64], sizes = [2, 32], strides = [1, 1]} : vector<2x96xf32> to vector<2x32xf32>
    %568 = vector.extract_strided_slice %550 {offsets = [0, 64], sizes = [2, 32], strides = [1, 1]} : vector<2x96xf32> to vector<2x32xf32>
    %569 = arith.mulf %558, %568 : vector<2x32xf32>
    %570 = arith.addf %567, %569 : vector<2x32xf32>
    %571 = math.tanh %570 : vector<2x32xf32>
    %cst_117 = arith.constant 1.000000e+00 : f32
    %572 = vector.broadcast %cst_117 : f32 to vector<2x32xf32>
    %573 = arith.subf %572, %566 : vector<2x32xf32>
    %574 = arith.mulf %573, %571 : vector<2x32xf32>
    %575 = arith.mulf %566, %540 : vector<2x32xf32>
    %576 = arith.addf %574, %575 : vector<2x32xf32>
    %577 = vector.broadcast %547 : vector<2x1xf32> to vector<2x32xf32>
    %578 = arith.mulf %577, %576 : vector<2x32xf32>
    %cst_118 = arith.constant 1.000000e+00 : f32
    %579 = vector.broadcast %cst_118 : f32 to vector<2x1xf32>
    %580 = arith.subf %579, %547 : vector<2x1xf32>
    %581 = vector.broadcast %580 : vector<2x1xf32> to vector<2x32xf32>
    %582 = arith.mulf %581, %540 : vector<2x32xf32>
    %583 = arith.addf %578, %582 : vector<2x32xf32>
    %584 = vector.broadcast %547 : vector<2x1xf32> to vector<2x32xf32>
    %585 = arith.mulf %583, %584 : vector<2x32xf32>
    %c3_119 = arith.constant 3 : index
    %c0_120 = arith.constant 0 : index
    %c0_121 = arith.constant 0 : index
    %586 = vector.load %arg14[%c3_119, %c0_120, %c0_121] : memref<8x2x32xf32, #tpu.memory_space<vmem>>, vector<1x2x32xf32>
    %587 = vector.shape_cast %586 : vector<1x2x32xf32> to vector<2x32xf32>
    %588 = vector.shape_cast %585 : vector<2x32xf32> to vector<1x2x32xf32>
    tpu.vector_store %arg14[%c3_119, %c0_120, %c0_121], %588 {strides = array<i32>} : memref<8x2x32xf32, #tpu.memory_space<vmem>>, vector<1x2x32xf32>,
    %589 = vector.extract_strided_slice %23 {offsets = [4, 0], sizes = [2, 96], strides = [1, 1]} : vector<16x96xf32> to vector<2x96xf32>
    %590 = vector.extract_strided_slice %13 {offsets = [0, 2], sizes = [2, 1], strides = [1, 1]} : vector<2x8xf32> to vector<2x1xf32>
    %cst_122 = arith.constant dense<0.000000e+00> : vector<2x96xf32>
    %591 = tpu.matmul %583, %26, %cst_122 {dimension_numbers = #tpu.dot_dimension_numbers<[1], [0], [0], [1], [0, 0, 1, 1], [], []>} : vector<2x32xf32>, vector<32x96xf32>, vector<2x96xf32> -> vector<2x96xf32>
    %592 = vector.broadcast %27 : vector<1x96xf32> to vector<2x96xf32>
    %593 = arith.addf %591, %592 : vector<2x96xf32>
    %594 = vector.extract_strided_slice %589 {offsets = [0, 0], sizes = [2, 32], strides = [1, 1]} : vector<2x96xf32> to vector<2x32xf32>
    %595 = vector.extract_strided_slice %593 {offsets = [0, 0], sizes = [2, 32], strides = [1, 1]} : vector<2x96xf32> to vector<2x32xf32>
    %596 = arith.addf %594, %595 : vector<2x32xf32>
    %597 = arith.negf %596 : vector<2x32xf32>
    %598 = math.exp %597 : vector<2x32xf32>
    %cst_123 = arith.constant 1.000000e+00 : f32
    %599 = vector.broadcast %cst_123 : f32 to vector<2x32xf32>
    %600 = arith.addf %599, %598 : vector<2x32xf32>
    %601 = arith.divf %599, %600 : vector<2x32xf32>
    %602 = vector.extract_strided_slice %589 {offsets = [0, 32], sizes = [2, 32], strides = [1, 1]} : vector<2x96xf32> to vector<2x32xf32>
    %603 = vector.extract_strided_slice %593 {offsets = [0, 32], sizes = [2, 32], strides = [1, 1]} : vector<2x96xf32> to vector<2x32xf32>
    %604 = arith.addf %602, %603 : vector<2x32xf32>
    %605 = arith.negf %604 : vector<2x32xf32>
    %606 = math.exp %605 : vector<2x32xf32>
    %cst_124 = arith.constant 1.000000e+00 : f32
    %607 = vector.broadcast %cst_124 : f32 to vector<2x32xf32>
    %608 = arith.addf %607, %606 : vector<2x32xf32>
    %609 = arith.divf %607, %608 : vector<2x32xf32>
    %610 = vector.extract_strided_slice %589 {offsets = [0, 64], sizes = [2, 32], strides = [1, 1]} : vector<2x96xf32> to vector<2x32xf32>
    %611 = vector.extract_strided_slice %593 {offsets = [0, 64], sizes = [2, 32], strides = [1, 1]} : vector<2x96xf32> to vector<2x32xf32>
    %612 = arith.mulf %601, %611 : vector<2x32xf32>
    %613 = arith.addf %610, %612 : vector<2x32xf32>
    %614 = math.tanh %613 : vector<2x32xf32>
    %cst_125 = arith.constant 1.000000e+00 : f32
    %615 = vector.broadcast %cst_125 : f32 to vector<2x32xf32>
    %616 = arith.subf %615, %609 : vector<2x32xf32>
    %617 = arith.mulf %616, %614 : vector<2x32xf32>
    %618 = arith.mulf %609, %583 : vector<2x32xf32>
    %619 = arith.addf %617, %618 : vector<2x32xf32>
    %620 = vector.broadcast %590 : vector<2x1xf32> to vector<2x32xf32>
    %621 = arith.mulf %620, %619 : vector<2x32xf32>
    %cst_126 = arith.constant 1.000000e+00 : f32
    %622 = vector.broadcast %cst_126 : f32 to vector<2x1xf32>
    %623 = arith.subf %622, %590 : vector<2x1xf32>
    %624 = vector.broadcast %623 : vector<2x1xf32> to vector<2x32xf32>
    %625 = arith.mulf %624, %583 : vector<2x32xf32>
    %626 = arith.addf %621, %625 : vector<2x32xf32>
    %627 = vector.broadcast %590 : vector<2x1xf32> to vector<2x32xf32>
    %628 = arith.mulf %626, %627 : vector<2x32xf32>
    %c2_127 = arith.constant 2 : index
    %c0_128 = arith.constant 0 : index
    %c0_129 = arith.constant 0 : index
    %629 = vector.load %arg14[%c2_127, %c0_128, %c0_129] : memref<8x2x32xf32, #tpu.memory_space<vmem>>, vector<1x2x32xf32>
    %630 = vector.shape_cast %629 : vector<1x2x32xf32> to vector<2x32xf32>
    %631 = vector.shape_cast %628 : vector<2x32xf32> to vector<1x2x32xf32>
    tpu.vector_store %arg14[%c2_127, %c0_128, %c0_129], %631 {strides = array<i32>} : memref<8x2x32xf32, #tpu.memory_space<vmem>>, vector<1x2x32xf32>,
    %632 = vector.extract_strided_slice %23 {offsets = [2, 0], sizes = [2, 96], strides = [1, 1]} : vector<16x96xf32> to vector<2x96xf32>
    %633 = vector.extract_strided_slice %13 {offsets = [0, 1], sizes = [2, 1], strides = [1, 1]} : vector<2x8xf32> to vector<2x1xf32>
    %cst_130 = arith.constant dense<0.000000e+00> : vector<2x96xf32>
    %634 = tpu.matmul %626, %26, %cst_130 {dimension_numbers = #tpu.dot_dimension_numbers<[1], [0], [0], [1], [0, 0, 1, 1], [], []>} : vector<2x32xf32>, vector<32x96xf32>, vector<2x96xf32> -> vector<2x96xf32>
    %635 = vector.broadcast %27 : vector<1x96xf32> to vector<2x96xf32>
    %636 = arith.addf %634, %635 : vector<2x96xf32>
    %637 = vector.extract_strided_slice %632 {offsets = [0, 0], sizes = [2, 32], strides = [1, 1]} : vector<2x96xf32> to vector<2x32xf32>
    %638 = vector.extract_strided_slice %636 {offsets = [0, 0], sizes = [2, 32], strides = [1, 1]} : vector<2x96xf32> to vector<2x32xf32>
    %639 = arith.addf %637, %638 : vector<2x32xf32>
    %640 = arith.negf %639 : vector<2x32xf32>
    %641 = math.exp %640 : vector<2x32xf32>
    %cst_131 = arith.constant 1.000000e+00 : f32
    %642 = vector.broadcast %cst_131 : f32 to vector<2x32xf32>
    %643 = arith.addf %642, %641 : vector<2x32xf32>
    %644 = arith.divf %642, %643 : vector<2x32xf32>
    %645 = vector.extract_strided_slice %632 {offsets = [0, 32], sizes = [2, 32], strides = [1, 1]} : vector<2x96xf32> to vector<2x32xf32>
    %646 = vector.extract_strided_slice %636 {offsets = [0, 32], sizes = [2, 32], strides = [1, 1]} : vector<2x96xf32> to vector<2x32xf32>
    %647 = arith.addf %645, %646 : vector<2x32xf32>
    %648 = arith.negf %647 : vector<2x32xf32>
    %649 = math.exp %648 : vector<2x32xf32>
    %cst_132 = arith.constant 1.000000e+00 : f32
    %650 = vector.broadcast %cst_132 : f32 to vector<2x32xf32>
    %651 = arith.addf %650, %649 : vector<2x32xf32>
    %652 = arith.divf %650, %651 : vector<2x32xf32>
    %653 = vector.extract_strided_slice %632 {offsets = [0, 64], sizes = [2, 32], strides = [1, 1]} : vector<2x96xf32> to vector<2x32xf32>
    %654 = vector.extract_strided_slice %636 {offsets = [0, 64], sizes = [2, 32], strides = [1, 1]} : vector<2x96xf32> to vector<2x32xf32>
    %655 = arith.mulf %644, %654 : vector<2x32xf32>
    %656 = arith.addf %653, %655 : vector<2x32xf32>
    %657 = math.tanh %656 : vector<2x32xf32>
    %cst_133 = arith.constant 1.000000e+00 : f32
    %658 = vector.broadcast %cst_133 : f32 to vector<2x32xf32>
    %659 = arith.subf %658, %652 : vector<2x32xf32>
    %660 = arith.mulf %659, %657 : vector<2x32xf32>
    %661 = arith.mulf %652, %626 : vector<2x32xf32>
    %662 = arith.addf %660, %661 : vector<2x32xf32>
    %663 = vector.broadcast %633 : vector<2x1xf32> to vector<2x32xf32>
    %664 = arith.mulf %663, %662 : vector<2x32xf32>
    %cst_134 = arith.constant 1.000000e+00 : f32
    %665 = vector.broadcast %cst_134 : f32 to vector<2x1xf32>
    %666 = arith.subf %665, %633 : vector<2x1xf32>
    %667 = vector.broadcast %666 : vector<2x1xf32> to vector<2x32xf32>
    %668 = arith.mulf %667, %626 : vector<2x32xf32>
    %669 = arith.addf %664, %668 : vector<2x32xf32>
    %670 = vector.broadcast %633 : vector<2x1xf32> to vector<2x32xf32>
    %671 = arith.mulf %669, %670 : vector<2x32xf32>
    %c1_135 = arith.constant 1 : index
    %c0_136 = arith.constant 0 : index
    %c0_137 = arith.constant 0 : index
    %672 = vector.load %arg14[%c1_135, %c0_136, %c0_137] : memref<8x2x32xf32, #tpu.memory_space<vmem>>, vector<1x2x32xf32>
    %673 = vector.shape_cast %672 : vector<1x2x32xf32> to vector<2x32xf32>
    %674 = vector.shape_cast %671 : vector<2x32xf32> to vector<1x2x32xf32>
    tpu.vector_store %arg14[%c1_135, %c0_136, %c0_137], %674 {strides = array<i32>} : memref<8x2x32xf32, #tpu.memory_space<vmem>>, vector<1x2x32xf32>,
    %675 = vector.extract_strided_slice %23 {offsets = [0, 0], sizes = [2, 96], strides = [1, 1]} : vector<16x96xf32> to vector<2x96xf32>
    %676 = vector.extract_strided_slice %13 {offsets = [0, 0], sizes = [2, 1], strides = [1, 1]} : vector<2x8xf32> to vector<2x1xf32>
    %cst_138 = arith.constant dense<0.000000e+00> : vector<2x96xf32>
    %677 = tpu.matmul %669, %26, %cst_138 {dimension_numbers = #tpu.dot_dimension_numbers<[1], [0], [0], [1], [0, 0, 1, 1], [], []>} : vector<2x32xf32>, vector<32x96xf32>, vector<2x96xf32> -> vector<2x96xf32>
    %678 = vector.broadcast %27 : vector<1x96xf32> to vector<2x96xf32>
    %679 = arith.addf %677, %678 : vector<2x96xf32>
    %680 = vector.extract_strided_slice %675 {offsets = [0, 0], sizes = [2, 32], strides = [1, 1]} : vector<2x96xf32> to vector<2x32xf32>
    %681 = vector.extract_strided_slice %679 {offsets = [0, 0], sizes = [2, 32], strides = [1, 1]} : vector<2x96xf32> to vector<2x32xf32>
    %682 = arith.addf %680, %681 : vector<2x32xf32>
    %683 = arith.negf %682 : vector<2x32xf32>
    %684 = math.exp %683 : vector<2x32xf32>
    %cst_139 = arith.constant 1.000000e+00 : f32
    %685 = vector.broadcast %cst_139 : f32 to vector<2x32xf32>
    %686 = arith.addf %685, %684 : vector<2x32xf32>
    %687 = arith.divf %685, %686 : vector<2x32xf32>
    %688 = vector.extract_strided_slice %675 {offsets = [0, 32], sizes = [2, 32], strides = [1, 1]} : vector<2x96xf32> to vector<2x32xf32>
    %689 = vector.extract_strided_slice %679 {offsets = [0, 32], sizes = [2, 32], strides = [1, 1]} : vector<2x96xf32> to vector<2x32xf32>
    %690 = arith.addf %688, %689 : vector<2x32xf32>
    %691 = arith.negf %690 : vector<2x32xf32>
    %692 = math.exp %691 : vector<2x32xf32>
    %cst_140 = arith.constant 1.000000e+00 : f32
    %693 = vector.broadcast %cst_140 : f32 to vector<2x32xf32>
    %694 = arith.addf %693, %692 : vector<2x32xf32>
    %695 = arith.divf %693, %694 : vector<2x32xf32>
    %696 = vector.extract_strided_slice %675 {offsets = [0, 64], sizes = [2, 32], strides = [1, 1]} : vector<2x96xf32> to vector<2x32xf32>
    %697 = vector.extract_strided_slice %679 {offsets = [0, 64], sizes = [2, 32], strides = [1, 1]} : vector<2x96xf32> to vector<2x32xf32>
    %698 = arith.mulf %687, %697 : vector<2x32xf32>
    %699 = arith.addf %696, %698 : vector<2x32xf32>
    %700 = math.tanh %699 : vector<2x32xf32>
    %cst_141 = arith.constant 1.000000e+00 : f32
    %701 = vector.broadcast %cst_141 : f32 to vector<2x32xf32>
    %702 = arith.subf %701, %695 : vector<2x32xf32>
    %703 = arith.mulf %702, %700 : vector<2x32xf32>
    %704 = arith.mulf %695, %669 : vector<2x32xf32>
    %705 = arith.addf %703, %704 : vector<2x32xf32>
    %706 = vector.broadcast %676 : vector<2x1xf32> to vector<2x32xf32>
    %707 = arith.mulf %706, %705 : vector<2x32xf32>
    %cst_142 = arith.constant 1.000000e+00 : f32
    %708 = vector.broadcast %cst_142 : f32 to vector<2x1xf32>
    %709 = arith.subf %708, %676 : vector<2x1xf32>
    %710 = vector.broadcast %709 : vector<2x1xf32> to vector<2x32xf32>
    %711 = arith.mulf %710, %669 : vector<2x32xf32>
    %712 = arith.addf %707, %711 : vector<2x32xf32>
    %713 = vector.broadcast %676 : vector<2x1xf32> to vector<2x32xf32>
    %714 = arith.mulf %712, %713 : vector<2x32xf32>
    %c0_143 = arith.constant 0 : index
    %c0_144 = arith.constant 0 : index
    %c0_145 = arith.constant 0 : index
    %715 = vector.load %arg14[%c0_143, %c0_144, %c0_145] : memref<8x2x32xf32, #tpu.memory_space<vmem>>, vector<1x2x32xf32>
    %716 = vector.shape_cast %715 : vector<1x2x32xf32> to vector<2x32xf32>
    %717 = vector.shape_cast %714 : vector<2x32xf32> to vector<1x2x32xf32>
    tpu.vector_store %arg14[%c0_143, %c0_144, %c0_145], %717 {strides = array<i32>} : memref<8x2x32xf32, #tpu.memory_space<vmem>>, vector<1x2x32xf32>,
    %c0_146 = arith.constant 0 : index
    %c0_147 = arith.constant 0 : index
    %718 = vector.load %arg11[%c0_146, %c0_147] : memref<64x32xf32, #tpu.memory_space<vmem>>, vector<64x32xf32>
    %719 = vector.extract_strided_slice %718 {offsets = [0, 0], sizes = [32, 32], strides = [1, 1]} : vector<64x32xf32> to vector<32x32xf32>
    %cst_148 = arith.constant dense<0.000000e+00> : vector<2x32xf32>
    %720 = tpu.matmul %367, %719, %cst_148 {dimension_numbers = #tpu.dot_dimension_numbers<[1], [0], [0], [1], [0, 0, 1, 1], [], []>} : vector<2x32xf32>, vector<32x32xf32>, vector<2x32xf32> -> vector<2x32xf32>
    %721 = vector.extract_strided_slice %718 {offsets = [32, 0], sizes = [32, 32], strides = [1, 1]} : vector<64x32xf32> to vector<32x32xf32>
    %cst_149 = arith.constant dense<0.000000e+00> : vector<2x32xf32>
    %722 = tpu.matmul %712, %721, %cst_149 {dimension_numbers = #tpu.dot_dimension_numbers<[1], [0], [0], [1], [0, 0, 1, 1], [], []>} : vector<2x32xf32>, vector<32x32xf32>, vector<2x32xf32> -> vector<2x32xf32>
    %723 = arith.addf %720, %722 : vector<2x32xf32>
    %c0_150 = arith.constant 0 : index
    %c0_151 = arith.constant 0 : index
    %724 = vector.load %arg12[%c0_150, %c0_151] : memref<1x32xf32, #tpu.memory_space<vmem>>, vector<1x32xf32>
    %725 = vector.broadcast %724 : vector<1x32xf32> to vector<2x32xf32>
    %726 = arith.addf %723, %725 : vector<2x32xf32>
    %727 = math.tanh %726 : vector<2x32xf32>
    %c0_152 = arith.constant 0 : index
    %c0_153 = arith.constant 0 : index
    %728 = vector.load %arg15[%c0_152, %c0_153] : memref<2x32xf32, #tpu.memory_space<vmem>>, vector<2x32xf32>
    tpu.vector_store %arg15[%c0_152, %c0_153], %727 {strides = array<i32>} : memref<2x32xf32, #tpu.memory_space<vmem>>, vector<2x32xf32>,
    return
  }
}

</mosaic_0001>

<llo_original>
// kernel: encoder_forward.1
$region0: #{encoder_forward.1}
  #allocation0 [shape = 'u32[]', space=smem, size = 0x4, offset = 0x4, fixed_abs, tag = 'smem constant byte address 0x4 - core index']
  #allocation1 [shape = 'u32[144,128]{1,0:T(1,128)}', space=vmem, size = 0x12000, scoped, tag = 'internal scratch']
  %s0 = inlined_call_operand.vmem [shape: s32[16,1], index: 0, kind: input, shape index: {}]
  %s1 = inlined_call_operand.vmem [shape: s32[2,1], index: 1, kind: input, shape index: {}]
  %s2 = inlined_call_operand.vmem [shape: f32[32,16], index: 2, kind: input, shape index: {}]
  %s3 = inlined_call_operand.vmem [shape: f32[16,96], index: 3, kind: input, shape index: {}]
  %s4 = inlined_call_operand.vmem [shape: f32[32,96], index: 4, kind: input, shape index: {}]
  %s5 = inlined_call_operand.vmem [shape: f32[1,96], index: 5, kind: input, shape index: {}]
  %s6 = inlined_call_operand.vmem [shape: f32[1,96], index: 6, kind: input, shape index: {}]
  %s7 = inlined_call_operand.vmem [shape: f32[16,96], index: 7, kind: input, shape index: {}]
  %s8 = inlined_call_operand.vmem [shape: f32[32,96], index: 8, kind: input, shape index: {}]
  %s9 = inlined_call_operand.vmem [shape: f32[1,96], index: 9, kind: input, shape index: {}]
  %s10 = inlined_call_operand.vmem [shape: f32[1,96], index: 10, kind: input, shape index: {}]
  %s11 = inlined_call_operand.vmem [shape: f32[64,32], index: 11, kind: input, shape index: {}]
  %s12 = inlined_call_operand.vmem [shape: f32[1,32], index: 12, kind: input, shape index: {}]
  %s13 = inlined_call_operand.vmem [shape: f32[8,2,32], index: 13, kind: output, shape index: {0}]
  %s14 = inlined_call_operand.vmem [shape: f32[8,2,32], index: 14, kind: output, shape index: {1}]
  %s15 = inlined_call_operand.hbm [shape: f32[2,32], index: 15, kind: output, shape index: {2}]
  %16 = xla_tuple %s13, %s14, %s15
  %s17 = sld [smem:[#allocation0]]
  $region78: #{encoder_forward.1} parent=0
    _
  %s19 = ssub.s32 1, %s17
  %s20 = scalar_select 0, %s19, %s17
  $region1: #{encoder_forward.1} parent=0
    #allocation2 [shape = 'u8[1024]{0}', space=vmem, size = 0x400, scoped, tag = 'output window, operand 2, single buffered']
    #allocation3 [shape = 's32[1]{0}', space=sflag, size = 0x4, scoped, tag = 'scoped memory for encoder_forward.1']
    %21 = vsyncpa [#allocation3], 0
    // Predicated region
    $region2: #{encoder_forward.1} parent=1 // pred_check
      _
    $region3: #{encoder_forward.1} parent=1 // pred_check_branch
      %23 = sbr.rel (0) target = $region5
    $region4: #{encoder_forward.1} parent=1 // pred_region
      _
    $region5: #{encoder_forward.1} parent=1 // pred_fallthru
      _
    // Predicated region
    $region6: #{encoder_forward.1} parent=1 // pred_check
      _
    $region7: #{encoder_forward.1} parent=1 // pred_check_branch
      %25 = sbr.rel (0) target = $region9
    $region8: #{encoder_forward.1} parent=1 // pred_region
      _
    $region9: #{encoder_forward.1} parent=1 // pred_fallthru
      _
    // Predicated region
    $region10: #{encoder_forward.1} parent=1 // pred_check
      _
    $region11: #{encoder_forward.1} parent=1 // pred_check_branch
      %27 = sbr.rel (0) target = $region13
    $region12: #{encoder_forward.1} parent=1 // pred_region
      _
    $region13: #{encoder_forward.1} parent=1 // pred_fallthru
      _
    // Predicated region
    $region14: #{encoder_forward.1} parent=1 // pred_check
      _
    $region15: #{encoder_forward.1} parent=1 // pred_check_branch
      %29 = sbr.rel (0) target = $region17
    $region16: #{encoder_forward.1} parent=1 // pred_region
      _
    $region17: #{encoder_forward.1} parent=1 // pred_fallthru
      _
    // Predicated region
    $region18: #{encoder_forward.1} parent=1 // pred_check
      _
    $region19: #{encoder_forward.1} parent=1 // pred_check_branch
      %31 = sbr.rel (0) target = $region21
    $region20: #{encoder_forward.1} parent=1 // pred_region
      _
    $region21: #{encoder_forward.1} parent=1 // pred_fallthru
      _
    // Predicated region
    $region22: #{encoder_forward.1} parent=1 // pred_check
      _
    $region23: #{encoder_forward.1} parent=1 // pred_check_branch
      %33 = sbr.rel (0) target = $region25
    $region24: #{encoder_forward.1} parent=1 // pred_region
      _
    $region25: #{encoder_forward.1} parent=1 // pred_fallthru
      _
    // Predicated region
    $region26: #{encoder_forward.1} parent=1 // pred_check
      _
    $region27: #{encoder_forward.1} parent=1 // pred_check_branch
      %35 = sbr.rel (0) target = $region29
    $region28: #{encoder_forward.1} parent=1 // pred_region
      _
    $region29: #{encoder_forward.1} parent=1 // pred_fallthru
      _
    // Predicated region
    $region30: #{encoder_forward.1} parent=1 // pred_check
      _
    $region31: #{encoder_forward.1} parent=1 // pred_check_branch
      %37 = sbr.rel (0) target = $region33
    $region32: #{encoder_forward.1} parent=1 // pred_region
      _
    $region33: #{encoder_forward.1} parent=1 // pred_fallthru
      _
    // Predicated region
    $region34: #{encoder_forward.1} parent=1 // pred_check
      _
    $region35: #{encoder_forward.1} parent=1 // pred_check_branch
      %39 = sbr.rel (0) target = $region37
    $region36: #{encoder_forward.1} parent=1 // pred_region
      _
    $region37: #{encoder_forward.1} parent=1 // pred_fallthru
      _
    // Predicated region
    $region38: #{encoder_forward.1} parent=1 // pred_check
      _
    $region39: #{encoder_forward.1} parent=1 // pred_check_branch
      %41 = sbr.rel (0) target = $region41
    $region40: #{encoder_forward.1} parent=1 // pred_region
      _
    $region41: #{encoder_forward.1} parent=1 // pred_fallthru
      _
    // Predicated region
    $region42: #{encoder_forward.1} parent=1 // pred_check
      _
    $region43: #{encoder_forward.1} parent=1 // pred_check_branch
      %43 = sbr.rel (0) target = $region45
    $region44: #{encoder_forward.1} parent=1 // pred_region
      _
    $region45: #{encoder_forward.1} parent=1 // pred_fallthru
      _
    // Predicated region
    $region46: #{encoder_forward.1} parent=1 // pred_check
      _
    $region47: #{encoder_forward.1} parent=1 // pred_check_branch
      %45 = sbr.rel (0) target = $region49
    $region48: #{encoder_forward.1} parent=1 // pred_region
      _
    $region49: #{encoder_forward.1} parent=1 // pred_fallthru
      _
    // Predicated region
    $region50: #{encoder_forward.1} parent=1 // pred_check
      _
    $region51: #{encoder_forward.1} parent=1 // pred_check_branch
      %47 = sbr.rel (0) target = $region53
    $region52: #{encoder_forward.1} parent=1 // pred_region
      _
    $region53: #{encoder_forward.1} parent=1 // pred_fallthru
      _
    %v48 = vld [vmem:[%s0] sm:$0xff]
    %v49 = vld [vmem:[%s0 + $0x8] sm:$0xff]
    %v50 = vlaneseq
    %v51 = vand.u32 %v50, 127
    %52 = vset.pattern.permute.xlu0 0
    %53 = vperm.xlu0 %52, %v48
    %v54 = vpop.permute.xlu0 %53
    %55 = vset.pattern.permute.xlu0 0
    %56 = vperm.xlu0 %55, %v49
    %v57 = vpop.permute.xlu0 %56
    %vm58 = vcmp.eq.s32.totalorder %v54, %v51
    %vm59 = vcmp.eq.s32.totalorder %v57, %v51
    %v60 = vsel %vm58, 1, 0
    %v61 = vsel %vm59, 1, 0
    %v62 = vcvt.s32.f32 %v60
    %v63 = vcvt.s32.f32 %v61
    %v64 = vld [vmem:[%s2] sm:$0xff]
    %v65 = vld [vmem:[%s2 + $0x8] sm:$0xff]
    %v66 = vld [vmem:[%s2 + $0x10] sm:$0xff]
    %v67 = vld [vmem:[%s2 + $0x18] sm:$0xff]
    %vm68 = vcmask 261120
    %v70 = vsel %vm68, %v62, 0
    %v73 = vsel %vm68, %v63, 0
    %75 = vmatprep.subr.mxu0 0.0
    %76 = vmatpush1.msra.mxu0 %v64
    %77 = vmatprep.subr.mxu0 0.0
    %78 = vmatpush1.msra.mxu0 %v65
    %79 = vmatprep.subr.mxu0 0.0
    %80 = vmatpush1.msra.mxu0 %v66
    %81 = vmatprep.subr.mxu0 0.0
    %82 = vmatpush1.msra.mxu0 %v67
    %83 = vmatprep.subr.mxu0 0.0
    %84 = vmatpush1.msra.mxu0 0.0
    %85 = vmatprep.subr.mxu0 0.0
    %86 = vmatpush1.msra.mxu0 0.0
    %87 = vmatprep.subr.mxu0 0.0
    %88 = vmatpush1.msra.mxu0 0.0
    %89 = vmatprep.subr.mxu0 0.0
    %90 = vmatpush1.msra.mxu0 0.0
    %91 = vmatprep.subr.mxu0 0.0
    %92 = vmatpush1.msra.mxu0 0.0
    %93 = vmatprep.subr.mxu0 0.0
    %94 = vmatpush1.msra.mxu0 0.0
    %95 = vmatprep.subr.mxu0 0.0
    %96 = vmatpush1.msra.mxu0 0.0
    %97 = vmatprep.subr.mxu0 0.0
    %98 = vmatpush1.msra.mxu0 0.0
    %99 = vmatprep.subr.mxu0 0.0
    %100 = vmatpush1.msra.mxu0 0.0
    %101 = vmatprep.subr.mxu0 0.0
    %102 = vmatpush1.msra.mxu0 0.0
    %103 = vmatprep.subr.mxu0 0.0
    %104 = vmatpush1.msra.mxu0 0.0
    %105 = vmatprep.subr.mxu0 0.0
    %106 = vmatpush1.msra.mxu0 0.0
    %107 = vmatprep.subr.mxu0 0.0
    %108 = vmatpush1.msra.mxu0 0.0
    %109 = vmatprep.subr.mxu0 0.0
    %110 = vmatpush1.msra.mxu0 0.0
    %111 = vmatprep.subr.mxu0 0.0
    %112 = vmatpush1.msra.mxu0 0.0
    %113 = vmatprep.subr.mxu0 0.0
    %114 = vmatpush1.msra.mxu0 0.0
    %115 = vmatprep.subr.mxu0 0.0
    %116 = vmatpush1.msra.mxu0 0.0
    %117 = vmatprep.subr.mxu0 0.0
    %118 = vmatpush1.msra.mxu0 0.0
    %119 = vmatprep.subr.mxu0 0.0
    %120 = vmatpush1.msra.mxu0 0.0
    %121 = vmatprep.subr.mxu0 0.0
    %122 = vmatpush1.msra.mxu0 0.0
    %123 = vmatprep.subr.mxu0 0.0
    %124 = vmatpush1.msra.mxu0 0.0
    %125 = vmatprep.subr.mxu0 0.0
    %126 = vmatpush1.msra.mxu0 0.0
    %127 = vmatprep.subr.mxu0 0.0
    %128 = vmatpush1.msra.mxu0 0.0
    %129 = vmatprep.subr.mxu0 0.0
    %130 = vmatpush1.msra.mxu0 0.0
    %131 = vmatprep.subr.mxu0 0.0
    %132 = vmatpush1.msra.mxu0 0.0
    %133 = vmatprep.subr.mxu0 0.0
    %134 = vmatpush1.msra.mxu0 0.0
    %135 = vmatprep.subr.mxu0 0.0
    %136 = vmatpush1.msra.mxu0 0.0
    %137 = vmatprep.subr.mxu0 0.0
    %138 = vmatpush1.msra.mxu0 0.0
    %139 = vmatprep.mubr.f32.mxu0 0.0
    %140 = vmatmul.mubr.f32.gmra.mrb[0].mxu0 %v70
    %v141 = vpop.f32.mrb[0].mxu0
    %v142 = vadd.f32 0.0, %v141
    %v143 = vpop.f32.mrb[0].mxu0
    %144 = vmatprep.mubr.f32.mxu0 0.0
    %145 = vmatmul.mubr.f32.gmra.mrb[0].mxu0 %v73
    %v146 = vpop.f32.mrb[0].mxu0
    %v147 = vadd.f32 0.0, %v146
    %v148 = vpop.f32.mrb[0].mxu0
    %149 = vdwg.mxu0
    %v150 = vld [vmem:[%s1] sm:$0x3]
    %151 = vset.pattern.permute.xlu0 0
    %152 = vperm.xlu0 %151, %v150
    %v153 = vpop.permute.xlu0 %152
    %vm154 = vcmp.lt.s32.totalorder %v51, %v153
    %v155 = vsel %vm154, 1, 0
    %v156 = vcvt.s32.f32 %v155
    %v157 = vld [vmem:[%s3] sm:$0xff]
    %v158 = vld [vmem:[%s3 + $0x8] sm:$0xff]
    %v159 = vld [vmem:[%s5] sm:$0x1]
    %v161 = vlaneseq
    %v162 = vshrl.u32 %v161, 7
    %v163 = vsub.s32 0, %v162
    %v164 = vrot.slane %v159, %v163
    %vm166 = vcmask 130048
    %v168 = vsel %vm166, %v142, 0
    %v171 = vsel %vm166, %v147, 0
    %173 = vmatprep.subr.mxu0 0.0
    %174 = vmatpush1.msra.mxu0 %v157
    %175 = vmatprep.subr.mxu0 0.0
    %176 = vmatpush1.msra.mxu0 %v158
    %177 = vmatprep.subr.mxu0 0.0
    %178 = vmatpush1.msra.mxu0 0.0
    %179 = vmatprep.subr.mxu0 0.0
    %180 = vmatpush1.msra.mxu0 0.0
    %181 = vmatprep.subr.mxu0 0.0
    %182 = vmatpush1.msra.mxu0 0.0
    %183 = vmatprep.subr.mxu0 0.0
    %184 = vmatpush1.msra.mxu0 0.0
    %185 = vmatprep.subr.mxu0 0.0
    %186 = vmatpush1.msra.mxu0 0.0
    %187 = vmatprep.subr.mxu0 0.0
    %188 = vmatpush1.msra.mxu0 0.0
    %189 = vmatprep.subr.mxu0 0.0
    %190 = vmatpush1.msra.mxu0 0.0
    %191 = vmatprep.subr.mxu0 0.0
    %192 = vmatpush1.msra.mxu0 0.0
    %193 = vmatprep.subr.mxu0 0.0
    %194 = vmatpush1.msra.mxu0 0.0
    %195 = vmatprep.subr.mxu0 0.0
    %196 = vmatpush1.msra.mxu0 0.0
    %197 = vmatprep.subr.mxu0 0.0
    %198 = vmatpush1.msra.mxu0 0.0
    %199 = vmatprep.subr.mxu0 0.0
    %200 = vmatpush1.msra.mxu0 0.0
    %201 = vmatprep.subr.mxu0 0.0
    %202 = vmatpush1.msra.mxu0 0.0
    %203 = vmatprep.subr.mxu0 0.0
    %204 = vmatpush1.msra.mxu0 0.0
    %205 = vmatprep.subr.mxu0 0.0
    %206 = vmatpush1.msra.mxu0 0.0
    %207 = vmatprep.subr.mxu0 0.0
    %208 = vmatpush1.msra.mxu0 0.0
    %209 = vmatprep.subr.mxu0 0.0
    %210 = vmatpush1.msra.mxu0 0.0
    %211 = vmatprep.subr.mxu0 0.0
    %212 = vmatpush1.msra.mxu0 0.0
    %213 = vmatprep.subr.mxu0 0.0
    %214 = vmatpush1.msra.mxu0 0.0
    %215 = vmatprep.subr.mxu0 0.0
    %216 = vmatpush1.msra.mxu0 0.0
    %217 = vmatprep.subr.mxu0 0.0
    %218 = vmatpush1.msra.mxu0 0.0
    %219 = vmatprep.subr.mxu0 0.0
    %220 = vmatpush1.msra.mxu0 0.0
    %221 = vmatprep.subr.mxu0 0.0
    %222 = vmatpush1.msra.mxu0 0.0
    %223 = vmatprep.subr.mxu0 0.0
    %224 = vmatpush1.msra.mxu0 0.0
    %225 = vmatprep.subr.mxu0 0.0
    %226 = vmatpush1.msra.mxu0 0.0
    %227 = vmatprep.subr.mxu0 0.0
    %228 = vmatpush1.msra.mxu0 0.0
    %229 = vmatprep.subr.mxu0 0.0
    %230 = vmatpush1.msra.mxu0 0.0
    %231 = vmatprep.subr.mxu0 0.0
    %232 = vmatpush1.msra.mxu0 0.0
    %233 = vmatprep.subr.mxu0 0.0
    %234 = vmatpush1.msra.mxu0 0.0
    %235 = vmatprep.subr.mxu0 0.0
    %236 = vmatpush1.msra.mxu0 0.0
    %237 = vmatprep.mubr.f32.mxu0 0.0
    %238 = vmatmul.mubr.f32.gmra.mrb[0].mxu0 %v168
    %v239 = vpop.f32.mrb[0].mxu0
    %v240 = vadd.f32 %v164, %v239
    %v241 = vpop.f32.mrb[0].mxu0
    %242 = vmatprep.mubr.f32.mxu0 0.0
    %243 = vmatmul.mubr.f32.gmra.mrb[0].mxu0 %v171
    %v244 = vpop.f32.mrb[0].mxu0
    %v245 = vadd.f32 %v164, %v244
    %v246 = vpop.f32.mrb[0].mxu0
    %247 = vdwg.mxu0
    %v248 = vld [vmem:[%s7] sm:$0xff]
    %v249 = vld [vmem:[%s7 + $0x8] sm:$0xff]
    %v250 = vld [vmem:[%s9] sm:$0x1]
    %v252 = vlaneseq
    %v253 = vshrl.u32 %v252, 7
    %v254 = vsub.s32 0, %v253
    %v255 = vrot.slane %v250, %v254
    %257 = vmatprep.subr.mxu0 0.0
    %258 = vmatpush1.msra.mxu0 %v248
    %259 = vmatprep.subr.mxu0 0.0
    %260 = vmatpush1.msra.mxu0 %v249
    %261 = vmatprep.subr.mxu0 0.0
    %262 = vmatpush1.msra.mxu0 0.0
    %263 = vmatprep.subr.mxu0 0.0
    %264 = vmatpush1.msra.mxu0 0.0
    %265 = vmatprep.subr.mxu0 0.0
    %266 = vmatpush1.msra.mxu0 0.0
    %267 = vmatprep.subr.mxu0 0.0
    %268 = vmatpush1.msra.mxu0 0.0
    %269 = vmatprep.subr.mxu0 0.0
    %270 = vmatpush1.msra.mxu0 0.0
    %271 = vmatprep.subr.mxu0 0.0
    %272 = vmatpush1.msra.mxu0 0.0
    %273 = vmatprep.subr.mxu0 0.0
    %274 = vmatpush1.msra.mxu0 0.0
    %275 = vmatprep.subr.mxu0 0.0
    %276 = vmatpush1.msra.mxu0 0.0
    %277 = vmatprep.subr.mxu0 0.0
    %278 = vmatpush1.msra.mxu0 0.0
    %279 = vmatprep.subr.mxu0 0.0
    %280 = vmatpush1.msra.mxu0 0.0
    %281 = vmatprep.subr.mxu0 0.0
    %282 = vmatpush1.msra.mxu0 0.0
    %283 = vmatprep.subr.mxu0 0.0
    %284 = vmatpush1.msra.mxu0 0.0
    %285 = vmatprep.subr.mxu0 0.0
    %286 = vmatpush1.msra.mxu0 0.0
    %287 = vmatprep.subr.mxu0 0.0
    %288 = vmatpush1.msra.mxu0 0.0
    %289 = vmatprep.subr.mxu0 0.0
    %290 = vmatpush1.msra.mxu0 0.0
    %291 = vmatprep.subr.mxu0 0.0
    %292 = vmatpush1.msra.mxu0 0.0
    %293 = vmatprep.subr.mxu0 0.0
    %294 = vmatpush1.msra.mxu0 0.0
    %295 = vmatprep.subr.mxu0 0.0
    %296 = vmatpush1.msra.mxu0 0.0
    %297 = vmatprep.subr.mxu0 0.0
    %298 = vmatpush1.msra.mxu0 0.0
    %299 = vmatprep.subr.mxu0 0.0
    %300 = vmatpush1.msra.mxu0 0.0
    %301 = vmatprep.subr.mxu0 0.0
    %302 = vmatpush1.msra.mxu0 0.0
    %303 = vmatprep.subr.mxu0 0.0
    %304 = vmatpush1.msra.mxu0 0.0
    %305 = vmatprep.subr.mxu0 0.0
    %306 = vmatpush1.msra.mxu0 0.0
    %307 = vmatprep.subr.mxu0 0.0
    %308 = vmatpush1.msra.mxu0 0.0
    %309 = vmatprep.subr.mxu0 0.0
    %310 = vmatpush1.msra.mxu0 0.0
    %311 = vmatprep.subr.mxu0 0.0
    %312 = vmatpush1.msra.mxu0 0.0
    %313 = vmatprep.subr.mxu0 0.0
    %314 = vmatpush1.msra.mxu0 0.0
    %315 = vmatprep.subr.mxu0 0.0
    %316 = vmatpush1.msra.mxu0 0.0
    %317 = vmatprep.subr.mxu0 0.0
    %318 = vmatpush1.msra.mxu0 0.0
    %319 = vmatprep.subr.mxu0 0.0
    %320 = vmatpush1.msra.mxu0 0.0
    %321 = vmatprep.mubr.f32.mxu0 0.0
    %322 = vmatmul.mubr.f32.gmra.mrb[0].mxu0 %v168
    %v323 = vpop.f32.mrb[0].mxu0
    %v324 = vadd.f32 %v255, %v323
    %v325 = vpop.f32.mrb[0].mxu0
    %326 = vmatprep.mubr.f32.mxu0 0.0
    %327 = vmatmul.mubr.f32.gmra.mrb[0].mxu0 %v171
    %v328 = vpop.f32.mrb[0].mxu0
    %v329 = vadd.f32 %v255, %v328
    %v330 = vpop.f32.mrb[0].mxu0
    %331 = vdwg.mxu0
    %v332 = vld [vmem:[%s4] sm:$0xff]
    %v333 = vld [vmem:[%s4 + $0x8] sm:$0xff]
    %v334 = vld [vmem:[%s4 + $0x10] sm:$0xff]
    %v335 = vld [vmem:[%s4 + $0x18] sm:$0xff]
    %v336 = vld [vmem:[%s6] sm:$0x1]
    %v337 = vld [vmem:[%s8] sm:$0xff]
    %v338 = vld [vmem:[%s8 + $0x8] sm:$0xff]
    %v339 = vld [vmem:[%s8 + $0x10] sm:$0xff]
    %v340 = vld [vmem:[%s8 + $0x18] sm:$0xff]
    %v341 = vld [vmem:[%s10] sm:$0x1]
    %v343 = vlaneseq
    %v344 = vshrl.u32 %v343, 7
    %v345 = vsub.s32 0, %v344
    %v346 = vrot.slane %v336, %v345
    %v349 = vsel %vm68, 0.0, 0
    %351 = vmatprep.subr.mxu0 0.0
    %352 = vmatpush1.msra.mxu0 %v332
    %353 = vmatprep.subr.mxu0 0.0
    %354 = vmatpush1.msra.mxu0 %v333
    %355 = vmatprep.subr.mxu0 0.0
    %356 = vmatpush1.msra.mxu0 %v334
    %357 = vmatprep.subr.mxu0 0.0
    %358 = vmatpush1.msra.mxu0 %v335
    %359 = vmatprep.subr.mxu0 0.0
    %360 = vmatpush1.msra.mxu0 0.0
    %361 = vmatprep.subr.mxu0 0.0
    %362 = vmatpush1.msra.mxu0 0.0
    %363 = vmatprep.subr.mxu0 0.0
    %364 = vmatpush1.msra.mxu0 0.0
    %365 = vmatprep.subr.mxu0 0.0
    %366 = vmatpush1.msra.mxu0 0.0
    %367 = vmatprep.subr.mxu0 0.0
    %368 = vmatpush1.msra.mxu0 0.0
    %369 = vmatprep.subr.mxu0 0.0
    %370 = vmatpush1.msra.mxu0 0.0
    %371 = vmatprep.subr.mxu0 0.0
    %372 = vmatpush1.msra.mxu0 0.0
    %373 = vmatprep.subr.mxu0 0.0
    %374 = vmatpush1.msra.mxu0 0.0
    %375 = vmatprep.subr.mxu0 0.0
    %376 = vmatpush1.msra.mxu0 0.0
    %377 = vmatprep.subr.mxu0 0.0
    %378 = vmatpush1.msra.mxu0 0.0
    %379 = vmatprep.subr.mxu0 0.0
    %380 = vmatpush1.msra.mxu0 0.0
    %381 = vmatprep.subr.mxu0 0.0
    %382 = vmatpush1.msra.mxu0 0.0
    %383 = vmatprep.subr.mxu0 0.0
    %384 = vmatpush1.msra.mxu0 0.0
    %385 = vmatprep.subr.mxu0 0.0
    %386 = vmatpush1.msra.mxu0 0.0
    %387 = vmatprep.subr.mxu0 0.0
    %388 = vmatpush1.msra.mxu0 0.0
    %389 = vmatprep.subr.mxu0 0.0
    %390 = vmatpush1.msra.mxu0 0.0
    %391 = vmatprep.subr.mxu0 0.0
    %392 = vmatpush1.msra.mxu0 0.0
    %393 = vmatprep.subr.mxu0 0.0
    %394 = vmatpush1.msra.mxu0 0.0
    %395 = vmatprep.subr.mxu0 0.0
    %396 = vmatpush1.msra.mxu0 0.0
    %397 = vmatprep.subr.mxu0 0.0
    %398 = vmatpush1.msra.mxu0 0.0
    %399 = vmatprep.subr.mxu0 0.0
    %400 = vmatpush1.msra.mxu0 0.0
    %401 = vmatprep.subr.mxu0 0.0
    %402 = vmatpush1.msra.mxu0 0.0
    %403 = vmatprep.subr.mxu0 0.0
    %404 = vmatpush1.msra.mxu0 0.0
    %405 = vmatprep.subr.mxu0 0.0
    %406 = vmatpush1.msra.mxu0 0.0
    %407 = vmatprep.subr.mxu0 0.0
    %408 = vmatpush1.msra.mxu0 0.0
    %409 = vmatprep.subr.mxu0 0.0
    %410 = vmatpush1.msra.mxu0 0.0
    %411 = vmatprep.subr.mxu0 0.0
    %412 = vmatpush1.msra.mxu0 0.0
    %413 = vmatprep.subr.mxu0 0.0
    %414 = vmatpush1.msra.mxu0 0.0
    %415 = vmatprep.mubr.f32.mxu0 0.0
    %416 = vmatmul.mubr.f32.gmra.mrb[0].mxu0 %v349
    %v417 = vpop.f32.mrb[0].mxu0
    %v418 = vadd.f32 %v346, %v417
    %v419 = vpop.f32.mrb[0].mxu0
    %420 = vdwg.mxu0
    %v421 = vadd.f32 %v240, %v418
    %v422 = vxor.u32 %v421, 2147483648
    %v423 = vmul.f32 %v422, 1.442695
    %v424 = vpow.pop %v423
    %v425 = vadd.f32 %v424, 1.0
    %v426 = vrcp.pop %v425
    %v427 = vmul.f32 1.0, %v426
    %429 = vrot.lane.b32.xlu0 %v418, 64
    %v430 = vpop.permute.xlu0 %429
    %v432 = vmul.f32 %v427, %v430
    %434 = vrot.lane.b32.xlu0 %v432, 64
    %v435 = vpop.permute.xlu0 %434
    %v437 = vadd.f32 %v240, %v435
    %v438 = vtanh.pop %v437
    %v439 = vsub.f32 1.0, %v427
    %441 = vrot.lane.b32.xlu0 %v438, 96
    %v442 = vpop.permute.xlu0 %441
    %v444 = vmul.f32 %v439, %v442
    %v445 = vmul.f32 %v427, 0.0
    %v446 = vadd.f32 %v444, %v445
    %448 = vset.pattern.permute.xlu0 0
    %449 = vperm.xlu0 %448, %v156
    %v450 = vpop.permute.xlu0 %449
    %v452 = vmul.f32 %v450, %v446
    %v453 = vsub.f32 1.0, %v156
    %455 = vset.pattern.permute.xlu0 0
    %456 = vperm.xlu0 %455, %v453
    %v457 = vpop.permute.xlu0 %456
    %v459 = vmul.f32 %v457, 0.0
    %v460 = vadd.f32 %v452, %v459
    %v461 = vmul.f32 %v460, %v450
    %463 = vrot.lane.b32.xlu0 %v461, 96
    %v464 = vpop.permute.xlu0 %463
    %vm466 = vcmask 254976
    %467 = vst.msk [vmem:[%s13] sm:$0x3] %vm466, %v464
    %469 = vrot.lane.b32.xlu0 %v460, 96
    %v470 = vpop.permute.xlu0 %469
    %v471 = vsel %vm68, %v470, 0
    %473 = vmatprep.subr.mxu0 0.0
    %474 = vmatpush1.msra.mxu0 %v332
    %475 = vmatprep.subr.mxu0 0.0
    %476 = vmatpush1.msra.mxu0 %v333
    %477 = vmatprep.subr.mxu0 0.0
    %478 = vmatpush1.msra.mxu0 %v334
    %479 = vmatprep.subr.mxu0 0.0
    %480 = vmatpush1.msra.mxu0 %v335
    %481 = vmatprep.subr.mxu0 0.0
    %482 = vmatpush1.msra.mxu0 0.0
    %483 = vmatprep.subr.mxu0 0.0
    %484 = vmatpush1.msra.mxu0 0.0
    %485 = vmatprep.subr.mxu0 0.0
    %486 = vmatpush1.msra.mxu0 0.0
    %487 = vmatprep.subr.mxu0 0.0
    %488 = vmatpush1.msra.mxu0 0.0
    %489 = vmatprep.subr.mxu0 0.0
    %490 = vmatpush1.msra.mxu0 0.0
    %491 = vmatprep.subr.mxu0 0.0
    %492 = vmatpush1.msra.mxu0 0.0
    %493 = vmatprep.subr.mxu0 0.0
    %494 = vmatpush1.msra.mxu0 0.0
    %495 = vmatprep.subr.mxu0 0.0
    %496 = vmatpush1.msra.mxu0 0.0
    %497 = vmatprep.subr.mxu0 0.0
    %498 = vmatpush1.msra.mxu0 0.0
    %499 = vmatprep.subr.mxu0 0.0
    %500 = vmatpush1.msra.mxu0 0.0
    %501 = vmatprep.subr.mxu0 0.0
    %502 = vmatpush1.msra.mxu0 0.0
    %503 = vmatprep.subr.mxu0 0.0
    %504 = vmatpush1.msra.mxu0 0.0
    %505 = vmatprep.subr.mxu0 0.0
    %506 = vmatpush1.msra.mxu0 0.0
    %507 = vmatprep.subr.mxu0 0.0
    %508 = vmatpush1.msra.mxu0 0.0
    %509 = vmatprep.subr.mxu0 0.0
    %510 = vmatpush1.msra.mxu0 0.0
    %511 = vmatprep.subr.mxu0 0.0
    %512 = vmatpush1.msra.mxu0 0.0
    %513 = vmatprep.subr.mxu0 0.0
    %514 = vmatpush1.msra.mxu0 0.0
    %515 = vmatprep.subr.mxu0 0.0
    %516 = vmatpush1.msra.mxu0 0.0
    %517 = vmatprep.subr.mxu0 0.0
    %518 = vmatpush1.msra.mxu0 0.0
    %519 = vmatprep.subr.mxu0 0.0
    %520 = vmatpush1.msra.mxu0 0.0
    %521 = vmatprep.subr.mxu0 0.0
    %522 = vmatpush1.msra.mxu0 0.0
    %523 = vmatprep.subr.mxu0 0.0
    %524 = vmatpush1.msra.mxu0 0.0
    %525 = vmatprep.subr.mxu0 0.0
    %526 = vmatpush1.msra.mxu0 0.0
    %527 = vmatprep.subr.mxu0 0.0
    %528 = vmatpush1.msra.mxu0 0.0
    %529 = vmatprep.subr.mxu0 0.0
    %530 = vmatpush1.msra.mxu0 0.0
    %531 = vmatprep.subr.mxu0 0.0
    %532 = vmatpush1.msra.mxu0 0.0
    %533 = vmatprep.subr.mxu0 0.0
    %534 = vmatpush1.msra.mxu0 0.0
    %535 = vmatprep.subr.mxu0 0.0
    %536 = vmatpush1.msra.mxu0 0.0
    %537 = vmatprep.mubr.f32.mxu0 0.0
    %538 = vmatmul.mubr.f32.gmra.mrb[0].mxu0 %v471
    %v539 = vpop.f32.mrb[0].mxu0
    %v540 = vadd.f32 %v346, %v539
    %v541 = vpop.f32.mrb[0].mxu0
    %542 = vdwg.mxu0
    %v544 = vrot.slane %v540, 6
    %v546 = vadd.f32 %v240, %v544
    %v547 = vxor.u32 %v546, 2147483648
    %v548 = vmul.f32 %v547, 1.442695
    %v549 = vpow.pop %v548
    %v550 = vadd.f32 %v549, 1.0
    %v551 = vrcp.pop %v550
    %v552 = vmul.f32 1.0, %v551
    %553 = vrot.lane.b32.xlu0 %v544, 64
    %v554 = vpop.permute.xlu0 %553
    %v556 = vmul.f32 %v552, %v554
    %558 = vrot.lane.b32.xlu0 %v556, 64
    %v559 = vpop.permute.xlu0 %558
    %v561 = vadd.f32 %v240, %v559
    %v562 = vtanh.pop %v561
    %v563 = vsub.f32 1.0, %v552
    %565 = vrot.lane.b32.xlu0 %v562, 96
    %v566 = vpop.permute.xlu0 %565
    %v568 = vmul.f32 %v563, %v566
    %v569 = vrot.slane %v460, 6
    %v571 = vmul.f32 %v552, %v569
    %v572 = vadd.f32 %v568, %v571
    %573 = vset.pattern.permute.xlu0 1
    %574 = vperm.xlu0 %573, %v156
    %v575 = vpop.permute.xlu0 %574
    %v578 = vrot.slane %v572, 2
    %579 = vrot.lane.b32.xlu0 %v578, 96
    %v580 = vpop.permute.xlu0 %579
    %v582 = vmul.f32 %v575, %v580
    %583 = vset.pattern.permute.xlu0 1
    %584 = vperm.xlu0 %583, %v453
    %v585 = vpop.permute.xlu0 %584
    %v587 = vmul.f32 %v585, %v460
    %589 = vrot.lane.b32.xlu0 %v587, 96
    %v590 = vpop.permute.xlu0 %589
    %v592 = vadd.f32 %v582, %v590
    %v593 = vmul.f32 %v592, %v575
    %s594 = scalar_lea.vmem %s13, 2
    %595 = vst.msk [vmem:[%s594] sm:$0x3] %vm466, %v593
    %v597 = vsel %vm68, %v592, 0
    %599 = vmatprep.subr.mxu0 0.0
    %600 = vmatpush1.msra.mxu0 %v332
    %601 = vmatprep.subr.mxu0 0.0
    %602 = vmatpush1.msra.mxu0 %v333
    %603 = vmatprep.subr.mxu0 0.0
    %604 = vmatpush1.msra.mxu0 %v334
    %605 = vmatprep.subr.mxu0 0.0
    %606 = vmatpush1.msra.mxu0 %v335
    %607 = vmatprep.subr.mxu0 0.0
    %608 = vmatpush1.msra.mxu0 0.0
    %609 = vmatprep.subr.mxu0 0.0
    %610 = vmatpush1.msra.mxu0 0.0
    %611 = vmatprep.subr.mxu0 0.0
    %612 = vmatpush1.msra.mxu0 0.0
    %613 = vmatprep.subr.mxu0 0.0
    %614 = vmatpush1.msra.mxu0 0.0
    %615 = vmatprep.subr.mxu0 0.0
    %616 = vmatpush1.msra.mxu0 0.0
    %617 = vmatprep.subr.mxu0 0.0
    %618 = vmatpush1.msra.mxu0 0.0
    %619 = vmatprep.subr.mxu0 0.0
    %620 = vmatpush1.msra.mxu0 0.0
    %621 = vmatprep.subr.mxu0 0.0
    %622 = vmatpush1.msra.mxu0 0.0
    %623 = vmatprep.subr.mxu0 0.0
    %624 = vmatpush1.msra.mxu0 0.0
    %625 = vmatprep.subr.mxu0 0.0
    %626 = vmatpush1.msra.mxu0 0.0
    %627 = vmatprep.subr.mxu0 0.0
    %628 = vmatpush1.msra.mxu0 0.0
    %629 = vmatprep.subr.mxu0 0.0
    %630 = vmatpush1.msra.mxu0 0.0
    %631 = vmatprep.subr.mxu0 0.0
    %632 = vmatpush1.msra.mxu0 0.0
    %633 = vmatprep.subr.mxu0 0.0
    %634 = vmatpush1.msra.mxu0 0.0
    %635 = vmatprep.subr.mxu0 0.0
    %636 = vmatpush1.msra.mxu0 0.0
    %637 = vmatprep.subr.mxu0 0.0
    %638 = vmatpush1.msra.mxu0 0.0
    %639 = vmatprep.subr.mxu0 0.0
    %640 = vmatpush1.msra.mxu0 0.0
    %641 = vmatprep.subr.mxu0 0.0
    %642 = vmatpush1.msra.mxu0 0.0
    %643 = vmatprep.subr.mxu0 0.0
    %644 = vmatpush1.msra.mxu0 0.0
    %645 = vmatprep.subr.mxu0 0.0
    %646 = vmatpush1.msra.mxu0 0.0
    %647 = vmatprep.subr.mxu0 0.0
    %648 = vmatpush1.msra.mxu0 0.0
    %649 = vmatprep.subr.mxu0 0.0
    %650 = vmatpush1.msra.mxu0 0.0
    %651 = vmatprep.subr.mxu0 0.0
    %652 = vmatpush1.msra.mxu0 0.0
    %653 = vmatprep.subr.mxu0 0.0
    %654 = vmatpush1.msra.mxu0 0.0
    %655 = vmatprep.subr.mxu0 0.0
    %656 = vmatpush1.msra.mxu0 0.0
    %657 = vmatprep.subr.mxu0 0.0
    %658 = vmatpush1.msra.mxu0 0.0
    %659 = vmatprep.subr.mxu0 0.0
    %660 = vmatpush1.msra.mxu0 0.0
    %661 = vmatprep.subr.mxu0 0.0
    %662 = vmatpush1.msra.mxu0 0.0
    %663 = vmatprep.mubr.f32.mxu0 0.0
    %664 = vmatmul.mubr.f32.gmra.mrb[0].mxu0 %v597
    %v665 = vpop.f32.mrb[0].mxu0
    %v666 = vadd.f32 %v346, %v665
    %v667 = vpop.f32.mrb[0].mxu0
    %668 = vdwg.mxu0
    %v670 = vrot.slane %v666, 4
    %v672 = vadd.f32 %v240, %v670
    %v673 = vxor.u32 %v672, 2147483648
    %v674 = vmul.f32 %v673, 1.442695
    %v675 = vpow.pop %v674
    %v676 = vadd.f32 %v675, 1.0
    %v677 = vrcp.pop %v676
    %v678 = vmul.f32 1.0, %v677
    %679 = vrot.lane.b32.xlu0 %v670, 64
    %v680 = vpop.permute.xlu0 %679
    %v682 = vmul.f32 %v678, %v680
    %684 = vrot.lane.b32.xlu0 %v682, 64
    %v685 = vpop.permute.xlu0 %684
    %v687 = vadd.f32 %v240, %v685
    %v688 = vtanh.pop %v687
    %v689 = vsub.f32 1.0, %v678
    %691 = vrot.lane.b32.xlu0 %v688, 96
    %v692 = vpop.permute.xlu0 %691
    %v694 = vmul.f32 %v689, %v692
    %v695 = vrot.slane %v592, 4
    %696 = vrot.lane.b32.xlu0 %v695, 32
    %v697 = vpop.permute.xlu0 %696
    %v699 = vmul.f32 %v678, %v697
    %v700 = vadd.f32 %v694, %v699
    %701 = vset.pattern.permute.xlu0 2
    %702 = vperm.xlu0 %701, %v156
    %v703 = vpop.permute.xlu0 %702
    %v706 = vrot.slane %v700, 4
    %707 = vrot.lane.b32.xlu0 %v706, 96
    %v708 = vpop.permute.xlu0 %707
    %v710 = vmul.f32 %v703, %v708
    %711 = vset.pattern.permute.xlu0 2
    %712 = vperm.xlu0 %711, %v453
    %v713 = vpop.permute.xlu0 %712
    %v715 = vmul.f32 %v713, %v592
    %v716 = vadd.f32 %v710, %v715
    %v717 = vmul.f32 %v716, %v703
    %s718 = scalar_lea.vmem %s13, 4
    %719 = vst.msk [vmem:[%s718] sm:$0x3] %vm466, %v717
    %v721 = vsel %vm68, %v716, 0
    %723 = vmatprep.subr.mxu0 0.0
    %724 = vmatpush1.msra.mxu0 %v332
    %725 = vmatprep.subr.mxu0 0.0
    %726 = vmatpush1.msra.mxu0 %v333
    %727 = vmatprep.subr.mxu0 0.0
    %728 = vmatpush1.msra.mxu0 %v334
    %729 = vmatprep.subr.mxu0 0.0
    %730 = vmatpush1.msra.mxu0 %v335
    %731 = vmatprep.subr.mxu0 0.0
    %732 = vmatpush1.msra.mxu0 0.0
    %733 = vmatprep.subr.mxu0 0.0
    %734 = vmatpush1.msra.mxu0 0.0
    %735 = vmatprep.subr.mxu0 0.0
    %736 = vmatpush1.msra.mxu0 0.0
    %737 = vmatprep.subr.mxu0 0.0
    %738 = vmatpush1.msra.mxu0 0.0
    %739 = vmatprep.subr.mxu0 0.0
    %740 = vmatpush1.msra.mxu0 0.0
    %741 = vmatprep.subr.mxu0 0.0
    %742 = vmatpush1.msra.mxu0 0.0
    %743 = vmatprep.subr.mxu0 0.0
    %744 = vmatpush1.msra.mxu0 0.0
    %745 = vmatprep.subr.mxu0 0.0
    %746 = vmatpush1.msra.mxu0 0.0
    %747 = vmatprep.subr.mxu0 0.0
    %748 = vmatpush1.msra.mxu0 0.0
    %749 = vmatprep.subr.mxu0 0.0
    %750 = vmatpush1.msra.mxu0 0.0
    %751 = vmatprep.subr.mxu0 0.0
    %752 = vmatpush1.msra.mxu0 0.0
    %753 = vmatprep.subr.mxu0 0.0
    %754 = vmatpush1.msra.mxu0 0.0
    %755 = vmatprep.subr.mxu0 0.0
    %756 = vmatpush1.msra.mxu0 0.0
    %757 = vmatprep.subr.mxu0 0.0
    %758 = vmatpush1.msra.mxu0 0.0
    %759 = vmatprep.subr.mxu0 0.0
    %760 = vmatpush1.msra.mxu0 0.0
    %761 = vmatprep.subr.mxu0 0.0
    %762 = vmatpush1.msra.mxu0 0.0
    %763 = vmatprep.subr.mxu0 0.0
    %764 = vmatpush1.msra.mxu0 0.0
    %765 = vmatprep.subr.mxu0 0.0
    %766 = vmatpush1.msra.mxu0 0.0
    %767 = vmatprep.subr.mxu0 0.0
    %768 = vmatpush1.msra.mxu0 0.0
    %769 = vmatprep.subr.mxu0 0.0
    %770 = vmatpush1.msra.mxu0 0.0
    %771 = vmatprep.subr.mxu0 0.0
    %772 = vmatpush1.msra.mxu0 0.0
    %773 = vmatprep.subr.mxu0 0.0
    %774 = vmatpush1.msra.mxu0 0.0
    %775 = vmatprep.subr.mxu0 0.0
    %776 = vmatpush1.msra.mxu0 0.0
    %777 = vmatprep.subr.mxu0 0.0
    %778 = vmatpush1.msra.mxu0 0.0
    %779 = vmatprep.subr.mxu0 0.0
    %780 = vmatpush1.msra.mxu0 0.0
    %781 = vmatprep.subr.mxu0 0.0
    %782 = vmatpush1.msra.mxu0 0.0
    %783 = vmatprep.subr.mxu0 0.0
    %784 = vmatpush1.msra.mxu0 0.0
    %785 = vmatprep.subr.mxu0 0.0
    %786 = vmatpush1.msra.mxu0 0.0
    %787 = vmatprep.mubr.f32.mxu0 0.0
    %788 = vmatmul.mubr.f32.gmra.mrb[0].mxu0 %v721
    %v789 = vpop.f32.mrb[0].mxu0
    %v790 = vadd.f32 %v346, %v789
    %v791 = vpop.f32.mrb[0].mxu0
    %792 = vdwg.mxu0
    %v794 = vrot.slane %v790, 2
    %v796 = vadd.f32 %v240, %v794
    %v797 = vxor.u32 %v796, 2147483648
    %v798 = vmul.f32 %v797, 1.442695
    %v799 = vpow.pop %v798
    %v800 = vadd.f32 %v799, 1.0
    %v801 = vrcp.pop %v800
    %v802 = vmul.f32 1.0, %v801
    %803 = vrot.lane.b32.xlu0 %v794, 64
    %v804 = vpop.permute.xlu0 %803
    %v806 = vmul.f32 %v802, %v804
    %808 = vrot.lane.b32.xlu0 %v806, 64
    %v809 = vpop.permute.xlu0 %808
    %v811 = vadd.f32 %v240, %v809
    %v812 = vtanh.pop %v811
    %v813 = vsub.f32 1.0, %v802
    %815 = vrot.lane.b32.xlu0 %v812, 96
    %v816 = vpop.permute.xlu0 %815
    %v818 = vmul.f32 %v813, %v816
    %v819 = vrot.slane %v716, 2
    %820 = vrot.lane.b32.xlu0 %v819, 32
    %v821 = vpop.permute.xlu0 %820
    %v823 = vmul.f32 %v802, %v821
    %v824 = vadd.f32 %v818, %v823
    %825 = vset.pattern.permute.xlu0 3
    %826 = vperm.xlu0 %825, %v156
    %v827 = vpop.permute.xlu0 %826
    %v830 = vrot.slane %v824, 6
    %831 = vrot.lane.b32.xlu0 %v830, 96
    %v832 = vpop.permute.xlu0 %831
    %v834 = vmul.f32 %v827, %v832
    %835 = vset.pattern.permute.xlu0 3
    %836 = vperm.xlu0 %835, %v453
    %v837 = vpop.permute.xlu0 %836
    %v839 = vmul.f32 %v837, %v716
    %v840 = vadd.f32 %v834, %v839
    %v841 = vmul.f32 %v840, %v827
    %s842 = scalar_lea.vmem %s13, 6
    %843 = vst.msk [vmem:[%s842] sm:$0x3] %vm466, %v841
    %v845 = vsel %vm68, %v840, 0
    %847 = vmatprep.subr.mxu0 0.0
    %848 = vmatpush1.msra.mxu0 %v332
    %849 = vmatprep.subr.mxu0 0.0
    %850 = vmatpush1.msra.mxu0 %v333
    %851 = vmatprep.subr.mxu0 0.0
    %852 = vmatpush1.msra.mxu0 %v334
    %853 = vmatprep.subr.mxu0 0.0
    %854 = vmatpush1.msra.mxu0 %v335
    %855 = vmatprep.subr.mxu0 0.0
    %856 = vmatpush1.msra.mxu0 0.0
    %857 = vmatprep.subr.mxu0 0.0
    %858 = vmatpush1.msra.mxu0 0.0
    %859 = vmatprep.subr.mxu0 0.0
    %860 = vmatpush1.msra.mxu0 0.0
    %861 = vmatprep.subr.mxu0 0.0
    %862 = vmatpush1.msra.mxu0 0.0
    %863 = vmatprep.subr.mxu0 0.0
    %864 = vmatpush1.msra.mxu0 0.0
    %865 = vmatprep.subr.mxu0 0.0
    %866 = vmatpush1.msra.mxu0 0.0
    %867 = vmatprep.subr.mxu0 0.0
    %868 = vmatpush1.msra.mxu0 0.0
    %869 = vmatprep.subr.mxu0 0.0
    %870 = vmatpush1.msra.mxu0 0.0
    %871 = vmatprep.subr.mxu0 0.0
    %872 = vmatpush1.msra.mxu0 0.0
    %873 = vmatprep.subr.mxu0 0.0
    %874 = vmatpush1.msra.mxu0 0.0
    %875 = vmatprep.subr.mxu0 0.0
    %876 = vmatpush1.msra.mxu0 0.0
    %877 = vmatprep.subr.mxu0 0.0
    %878 = vmatpush1.msra.mxu0 0.0
    %879 = vmatprep.subr.mxu0 0.0
    %880 = vmatpush1.msra.mxu0 0.0
    %881 = vmatprep.subr.mxu0 0.0
    %882 = vmatpush1.msra.mxu0 0.0
    %883 = vmatprep.subr.mxu0 0.0
    %884 = vmatpush1.msra.mxu0 0.0
    %885 = vmatprep.subr.mxu0 0.0
    %886 = vmatpush1.msra.mxu0 0.0
    %887 = vmatprep.subr.mxu0 0.0
    %888 = vmatpush1.msra.mxu0 0.0
    %889 = vmatprep.subr.mxu0 0.0
    %890 = vmatpush1.msra.mxu0 0.0
    %891 = vmatprep.subr.mxu0 0.0
    %892 = vmatpush1.msra.mxu0 0.0
    %893 = vmatprep.subr.mxu0 0.0
    %894 = vmatpush1.msra.mxu0 0.0
    %895 = vmatprep.subr.mxu0 0.0
    %896 = vmatpush1.msra.mxu0 0.0
    %897 = vmatprep.subr.mxu0 0.0
    %898 = vmatpush1.msra.mxu0 0.0
    %899 = vmatprep.subr.mxu0 0.0
    %900 = vmatpush1.msra.mxu0 0.0
    %901 = vmatprep.subr.mxu0 0.0
    %902 = vmatpush1.msra.mxu0 0.0
    %903 = vmatprep.subr.mxu0 0.0
    %904 = vmatpush1.msra.mxu0 0.0
    %905 = vmatprep.subr.mxu0 0.0
    %906 = vmatpush1.msra.mxu0 0.0
    %907 = vmatprep.subr.mxu0 0.0
    %908 = vmatpush1.msra.mxu0 0.0
    %909 = vmatprep.subr.mxu0 0.0
    %910 = vmatpush1.msra.mxu0 0.0
    %911 = vmatprep.mubr.f32.mxu0 0.0
    %912 = vmatmul.mubr.f32.gmra.mrb[0].mxu0 %v845
    %v913 = vpop.f32.mrb[0].mxu0
    %v914 = vadd.f32 %v346, %v913
    %v915 = vpop.f32.mrb[0].mxu0
    %916 = vdwg.mxu0
    %v917 = vadd.f32 %v245, %v914
    %v918 = vxor.u32 %v917, 2147483648
    %v919 = vmul.f32 %v918, 1.442695
    %v920 = vpow.pop %v919
    %v921 = vadd.f32 %v920, 1.0
    %v922 = vrcp.pop %v921
    %v923 = vmul.f32 1.0, %v922
    %925 = vrot.lane.b32.xlu0 %v914, 64
    %v926 = vpop.permute.xlu0 %925
    %v928 = vmul.f32 %v923, %v926
    %930 = vrot.lane.b32.xlu0 %v928, 64
    %v931 = vpop.permute.xlu0 %930
    %v933 = vadd.f32 %v245, %v931
    %v934 = vtanh.pop %v933
    %v935 = vsub.f32 1.0, %v923
    %937 = vrot.lane.b32.xlu0 %v934, 96
    %v938 = vpop.permute.xlu0 %937
    %v940 = vmul.f32 %v935, %v938
    %941 = vrot.lane.b32.xlu0 %v840, 32
    %v942 = vpop.permute.xlu0 %941
    %v944 = vmul.f32 %v923, %v942
    %v945 = vadd.f32 %v940, %v944
    %946 = vset.pattern.permute.xlu0 4
    %947 = vperm.xlu0 %946, %v156
    %v948 = vpop.permute.xlu0 %947
    %v950 = vmul.f32 %v948, %v945
    %951 = vset.pattern.permute.xlu0 4
    %952 = vperm.xlu0 %951, %v453
    %v953 = vpop.permute.xlu0 %952
    %v955 = vmul.f32 %v953, %v840
    %957 = vrot.lane.b32.xlu0 %v955, 32
    %v958 = vpop.permute.xlu0 %957
    %v960 = vadd.f32 %v950, %v958
    %v961 = vmul.f32 %v960, %v948
    %963 = vrot.lane.b32.xlu0 %v961, 96
    %v964 = vpop.permute.xlu0 %963
    %s966 = scalar_lea.vmem %s13, 8
    %967 = vst.msk [vmem:[%s966] sm:$0x3] %vm466, %v964
    %969 = vrot.lane.b32.xlu0 %v960, 96
    %v970 = vpop.permute.xlu0 %969
    %v971 = vsel %vm68, %v970, 0
    %973 = vmatprep.subr.mxu0 0.0
    %974 = vmatpush1.msra.mxu0 %v332
    %975 = vmatprep.subr.mxu0 0.0
    %976 = vmatpush1.msra.mxu0 %v333
    %977 = vmatprep.subr.mxu0 0.0
    %978 = vmatpush1.msra.mxu0 %v334
    %979 = vmatprep.subr.mxu0 0.0
    %980 = vmatpush1.msra.mxu0 %v335
    %981 = vmatprep.subr.mxu0 0.0
    %982 = vmatpush1.msra.mxu0 0.0
    %983 = vmatprep.subr.mxu0 0.0
    %984 = vmatpush1.msra.mxu0 0.0
    %985 = vmatprep.subr.mxu0 0.0
    %986 = vmatpush1.msra.mxu0 0.0
    %987 = vmatprep.subr.mxu0 0.0
    %988 = vmatpush1.msra.mxu0 0.0
    %989 = vmatprep.subr.mxu0 0.0
    %990 = vmatpush1.msra.mxu0 0.0
    %991 = vmatprep.subr.mxu0 0.0
    %992 = vmatpush1.msra.mxu0 0.0
    %993 = vmatprep.subr.mxu0 0.0
    %994 = vmatpush1.msra.mxu0 0.0
    %995 = vmatprep.subr.mxu0 0.0
    %996 = vmatpush1.msra.mxu0 0.0
    %997 = vmatprep.subr.mxu0 0.0
    %998 = vmatpush1.msra.mxu0 0.0
    %999 = vmatprep.subr.mxu0 0.0
    %1000 = vmatpush1.msra.mxu0 0.0
    %1001 = vmatprep.subr.mxu0 0.0
    %1002 = vmatpush1.msra.mxu0 0.0
    %1003 = vmatprep.subr.mxu0 0.0
    %1004 = vmatpush1.msra.mxu0 0.0
    %1005 = vmatprep.subr.mxu0 0.0
    %1006 = vmatpush1.msra.mxu0 0.0
    %1007 = vmatprep.subr.mxu0 0.0
    %1008 = vmatpush1.msra.mxu0 0.0
    %1009 = vmatprep.subr.mxu0 0.0
    %1010 = vmatpush1.msra.mxu0 0.0
    %1011 = vmatprep.subr.mxu0 0.0
    %1012 = vmatpush1.msra.mxu0 0.0
    %1013 = vmatprep.subr.mxu0 0.0
    %1014 = vmatpush1.msra.mxu0 0.0
    %1015 = vmatprep.subr.mxu0 0.0
    %1016 = vmatpush1.msra.mxu0 0.0
    %1017 = vmatprep.subr.mxu0 0.0
    %1018 = vmatpush1.msra.mxu0 0.0
    %1019 = vmatprep.subr.mxu0 0.0
    %1020 = vmatpush1.msra.mxu0 0.0
    %1021 = vmatprep.subr.mxu0 0.0
    %1022 = vmatpush1.msra.mxu0 0.0
    %1023 = vmatprep.subr.mxu0 0.0
    %1024 = vmatpush1.msra.mxu0 0.0
    %1025 = vmatprep.subr.mxu0 0.0
    %1026 = vmatpush1.msra.mxu0 0.0
    %1027 = vmatprep.subr.mxu0 0.0
    %1028 = vmatpush1.msra.mxu0 0.0
    %1029 = vmatprep.subr.mxu0 0.0
    %1030 = vmatpush1.msra.mxu0 0.0
    %1031 = vmatprep.subr.mxu0 0.0
    %1032 = vmatpush1.msra.mxu0 0.0
    %1033 = vmatprep.subr.mxu0 0.0
    %1034 = vmatpush1.msra.mxu0 0.0
    %1035 = vmatprep.subr.mxu0 0.0
    %1036 = vmatpush1.msra.mxu0 0.0
    %1037 = vmatprep.mubr.f32.mxu0 0.0
    %1038 = vmatmul.mubr.f32.gmra.mrb[0].mxu0 %v971
    %v1039 = vpop.f32.mrb[0].mxu0
    %v1040 = vadd.f32 %v346, %v1039
    %v1041 = vpop.f32.mrb[0].mxu0
    %1042 = vdwg.mxu0
    %v1044 = vrot.slane %v1040, 6
    %v1046 = vadd.f32 %v245, %v1044
    %v1047 = vxor.u32 %v1046, 2147483648
    %v1048 = vmul.f32 %v1047, 1.442695
    %v1049 = vpow.pop %v1048
    %v1050 = vadd.f32 %v1049, 1.0
    %v1051 = vrcp.pop %v1050
    %v1052 = vmul.f32 1.0, %v1051
    %1053 = vrot.lane.b32.xlu0 %v1044, 64
    %v1054 = vpop.permute.xlu0 %1053
    %v1056 = vmul.f32 %v1052, %v1054
    %1058 = vrot.lane.b32.xlu0 %v1056, 64
    %v1059 = vpop.permute.xlu0 %1058
    %v1061 = vadd.f32 %v245, %v1059
    %v1062 = vtanh.pop %v1061
    %v1063 = vsub.f32 1.0, %v1052
    %1065 = vrot.lane.b32.xlu0 %v1062, 96
    %v1066 = vpop.permute.xlu0 %1065
    %v1068 = vmul.f32 %v1063, %v1066
    %v1069 = vrot.slane %v960, 6
    %v1071 = vmul.f32 %v1052, %v1069
    %v1072 = vadd.f32 %v1068, %v1071
    %1073 = vset.pattern.permute.xlu0 5
    %1074 = vperm.xlu0 %1073, %v156
    %v1075 = vpop.permute.xlu0 %1074
    %v1078 = vrot.slane %v1072, 2
    %1079 = vrot.lane.b32.xlu0 %v1078, 96
    %v1080 = vpop.permute.xlu0 %1079
    %v1082 = vmul.f32 %v1075, %v1080
    %1083 = vset.pattern.permute.xlu0 5
    %1084 = vperm.xlu0 %1083, %v453
    %v1085 = vpop.permute.xlu0 %1084
    %v1087 = vmul.f32 %v1085, %v960
    %1089 = vrot.lane.b32.xlu0 %v1087, 96
    %v1090 = vpop.permute.xlu0 %1089
    %v1092 = vadd.f32 %v1082, %v1090
    %v1093 = vmul.f32 %v1092, %v1075
    %s1094 = scalar_lea.vmem %s13, 10
    %1095 = vst.msk [vmem:[%s1094] sm:$0x3] %vm466, %v1093
    %v1097 = vsel %vm68, %v1092, 0
    %1099 = vmatprep.subr.mxu0 0.0
    %1100 = vmatpush1.msra.mxu0 %v332
    %1101 = vmatprep.subr.mxu0 0.0
    %1102 = vmatpush1.msra.mxu0 %v333
    %1103 = vmatprep.subr.mxu0 0.0
    %1104 = vmatpush1.msra.mxu0 %v334
    %1105 = vmatprep.subr.mxu0 0.0
    %1106 = vmatpush1.msra.mxu0 %v335
    %1107 = vmatprep.subr.mxu0 0.0
    %1108 = vmatpush1.msra.mxu0 0.0
    %1109 = vmatprep.subr.mxu0 0.0
    %1110 = vmatpush1.msra.mxu0 0.0
    %1111 = vmatprep.subr.mxu0 0.0
    %1112 = vmatpush1.msra.mxu0 0.0
    %1113 = vmatprep.subr.mxu0 0.0
    %1114 = vmatpush1.msra.mxu0 0.0
    %1115 = vmatprep.subr.mxu0 0.0
    %1116 = vmatpush1.msra.mxu0 0.0
    %1117 = vmatprep.subr.mxu0 0.0
    %1118 = vmatpush1.msra.mxu0 0.0
    %1119 = vmatprep.subr.mxu0 0.0
    %1120 = vmatpush1.msra.mxu0 0.0
    %1121 = vmatprep.subr.mxu0 0.0
    %1122 = vmatpush1.msra.mxu0 0.0
    %1123 = vmatprep.subr.mxu0 0.0
    %1124 = vmatpush1.msra.mxu0 0.0
    %1125 = vmatprep.subr.mxu0 0.0
    %1126 = vmatpush1.msra.mxu0 0.0
    %1127 = vmatprep.subr.mxu0 0.0
    %1128 = vmatpush1.msra.mxu0 0.0
    %1129 = vmatprep.subr.mxu0 0.0
    %1130 = vmatpush1.msra.mxu0 0.0
    %1131 = vmatprep.subr.mxu0 0.0
    %1132 = vmatpush1.msra.mxu0 0.0
    %1133 = vmatprep.subr.mxu0 0.0
    %1134 = vmatpush1.msra.mxu0 0.0
    %1135 = vmatprep.subr.mxu0 0.0
    %1136 = vmatpush1.msra.mxu0 0.0
    %1137 = vmatprep.subr.mxu0 0.0
    %1138 = vmatpush1.msra.mxu0 0.0
    %1139 = vmatprep.subr.mxu0 0.0
    %1140 = vmatpush1.msra.mxu0 0.0
    %1141 = vmatprep.subr.mxu0 0.0
    %1142 = vmatpush1.msra.mxu0 0.0
    %1143 = vmatprep.subr.mxu0 0.0
    %1144 = vmatpush1.msra.mxu0 0.0
    %1145 = vmatprep.subr.mxu0 0.0
    %1146 = vmatpush1.msra.mxu0 0.0
    %1147 = vmatprep.subr.mxu0 0.0
    %1148 = vmatpush1.msra.mxu0 0.0
    %1149 = vmatprep.subr.mxu0 0.0
    %1150 = vmatpush1.msra.mxu0 0.0
    %1151 = vmatprep.subr.mxu0 0.0
    %1152 = vmatpush1.msra.mxu0 0.0
    %1153 = vmatprep.subr.mxu0 0.0
    %1154 = vmatpush1.msra.mxu0 0.0
    %1155 = vmatprep.subr.mxu0 0.0
    %1156 = vmatpush1.msra.mxu0 0.0
    %1157 = vmatprep.subr.mxu0 0.0
    %1158 = vmatpush1.msra.mxu0 0.0
    %1159 = vmatprep.subr.mxu0 0.0
    %1160 = vmatpush1.msra.mxu0 0.0
    %1161 = vmatprep.subr.mxu0 0.0
    %1162 = vmatpush1.msra.mxu0 0.0
    %1163 = vmatprep.mubr.f32.mxu0 0.0
    %1164 = vmatmul.mubr.f32.gmra.mrb[0].mxu0 %v1097
    %v1165 = vpop.f32.mrb[0].mxu0
    %v1166 = vadd.f32 %v346, %v1165
    %v1167 = vpop.f32.mrb[0].mxu0
    %1168 = vdwg.mxu0
    %v1170 = vrot.slane %v1166, 4
    %v1172 = vadd.f32 %v245, %v1170
    %v1173 = vxor.u32 %v1172, 2147483648
    %v1174 = vmul.f32 %v1173, 1.442695
    %v1175 = vpow.pop %v1174
    %v1176 = vadd.f32 %v1175, 1.0
    %v1177 = vrcp.pop %v1176
    %v1178 = vmul.f32 1.0, %v1177
    %1179 = vrot.lane.b32.xlu0 %v1170, 64
    %v1180 = vpop.permute.xlu0 %1179
    %v1182 = vmul.f32 %v1178, %v1180
    %1184 = vrot.lane.b32.xlu0 %v1182, 64
    %v1185 = vpop.permute.xlu0 %1184
    %v1187 = vadd.f32 %v245, %v1185
    %v1188 = vtanh.pop %v1187
    %v1189 = vsub.f32 1.0, %v1178
    %1191 = vrot.lane.b32.xlu0 %v1188, 96
    %v1192 = vpop.permute.xlu0 %1191
    %v1194 = vmul.f32 %v1189, %v1192
    %v1195 = vrot.slane %v1092, 4
    %1196 = vrot.lane.b32.xlu0 %v1195, 32
    %v1197 = vpop.permute.xlu0 %1196
    %v1199 = vmul.f32 %v1178, %v1197
    %v1200 = vadd.f32 %v1194, %v1199
    %1201 = vset.pattern.permute.xlu0 6
    %1202 = vperm.xlu0 %1201, %v156
    %v1203 = vpop.permute.xlu0 %1202
    %v1206 = vrot.slane %v1200, 4
    %1207 = vrot.lane.b32.xlu0 %v1206, 96
    %v1208 = vpop.permute.xlu0 %1207
    %v1210 = vmul.f32 %v1203, %v1208
    %1211 = vset.pattern.permute.xlu0 6
    %1212 = vperm.xlu0 %1211, %v453
    %v1213 = vpop.permute.xlu0 %1212
    %v1215 = vmul.f32 %v1213, %v1092
    %v1216 = vadd.f32 %v1210, %v1215
    %v1217 = vmul.f32 %v1216, %v1203
    %s1218 = scalar_lea.vmem %s13, 12
    %1219 = vst.msk [vmem:[%s1218] sm:$0x3] %vm466, %v1217
    %v1221 = vsel %vm68, %v1216, 0
    %1223 = vmatprep.subr.mxu0 0.0
    %1224 = vmatpush1.msra.mxu0 %v332
    %1225 = vmatprep.subr.mxu0 0.0
    %1226 = vmatpush1.msra.mxu0 %v333
    %1227 = vmatprep.subr.mxu0 0.0
    %1228 = vmatpush1.msra.mxu0 %v334
    %1229 = vmatprep.subr.mxu0 0.0
    %1230 = vmatpush1.msra.mxu0 %v335
    %1231 = vmatprep.subr.mxu0 0.0
    %1232 = vmatpush1.msra.mxu0 0.0
    %1233 = vmatprep.subr.mxu0 0.0
    %1234 = vmatpush1.msra.mxu0 0.0
    %1235 = vmatprep.subr.mxu0 0.0
    %1236 = vmatpush1.msra.mxu0 0.0
    %1237 = vmatprep.subr.mxu0 0.0
    %1238 = vmatpush1.msra.mxu0 0.0
    %1239 = vmatprep.subr.mxu0 0.0
    %1240 = vmatpush1.msra.mxu0 0.0
    %1241 = vmatprep.subr.mxu0 0.0
    %1242 = vmatpush1.msra.mxu0 0.0
    %1243 = vmatprep.subr.mxu0 0.0
    %1244 = vmatpush1.msra.mxu0 0.0
    %1245 = vmatprep.subr.mxu0 0.0
    %1246 = vmatpush1.msra.mxu0 0.0
    %1247 = vmatprep.subr.mxu0 0.0
    %1248 = vmatpush1.msra.mxu0 0.0
    %1249 = vmatprep.subr.mxu0 0.0
    %1250 = vmatpush1.msra.mxu0 0.0
    %1251 = vmatprep.subr.mxu0 0.0
    %1252 = vmatpush1.msra.mxu0 0.0
    %1253 = vmatprep.subr.mxu0 0.0
    %1254 = vmatpush1.msra.mxu0 0.0
    %1255 = vmatprep.subr.mxu0 0.0
    %1256 = vmatpush1.msra.mxu0 0.0
    %1257 = vmatprep.subr.mxu0 0.0
    %1258 = vmatpush1.msra.mxu0 0.0
    %1259 = vmatprep.subr.mxu0 0.0
    %1260 = vmatpush1.msra.mxu0 0.0
    %1261 = vmatprep.subr.mxu0 0.0
    %1262 = vmatpush1.msra.mxu0 0.0
    %1263 = vmatprep.subr.mxu0 0.0
    %1264 = vmatpush1.msra.mxu0 0.0
    %1265 = vmatprep.subr.mxu0 0.0
    %1266 = vmatpush1.msra.mxu0 0.0
    %1267 = vmatprep.subr.mxu0 0.0
    %1268 = vmatpush1.msra.mxu0 0.0
    %1269 = vmatprep.subr.mxu0 0.0
    %1270 = vmatpush1.msra.mxu0 0.0
    %1271 = vmatprep.subr.mxu0 0.0
    %1272 = vmatpush1.msra.mxu0 0.0
    %1273 = vmatprep.subr.mxu0 0.0
    %1274 = vmatpush1.msra.mxu0 0.0
    %1275 = vmatprep.subr.mxu0 0.0
    %1276 = vmatpush1.msra.mxu0 0.0
    %1277 = vmatprep.subr.mxu0 0.0
    %1278 = vmatpush1.msra.mxu0 0.0
    %1279 = vmatprep.subr.mxu0 0.0
    %1280 = vmatpush1.msra.mxu0 0.0
    %1281 = vmatprep.subr.mxu0 0.0
    %1282 = vmatpush1.msra.mxu0 0.0
    %1283 = vmatprep.subr.mxu0 0.0
    %1284 = vmatpush1.msra.mxu0 0.0
    %1285 = vmatprep.subr.mxu0 0.0
    %1286 = vmatpush1.msra.mxu0 0.0
    %1287 = vmatprep.mubr.f32.mxu0 0.0
    %1288 = vmatmul.mubr.f32.gmra.mrb[0].mxu0 %v1221
    %v1289 = vpop.f32.mrb[0].mxu0
    %v1290 = vadd.f32 %v346, %v1289
    %v1291 = vpop.f32.mrb[0].mxu0
    %1292 = vdwg.mxu0
    %v1294 = vrot.slane %v1290, 2
    %v1296 = vadd.f32 %v245, %v1294
    %v1297 = vxor.u32 %v1296, 2147483648
    %v1298 = vmul.f32 %v1297, 1.442695
    %v1299 = vpow.pop %v1298
    %v1300 = vadd.f32 %v1299, 1.0
    %v1301 = vrcp.pop %v1300
    %v1302 = vmul.f32 1.0, %v1301
    %1303 = vrot.lane.b32.xlu0 %v1294, 64
    %v1304 = vpop.permute.xlu0 %1303
    %v1306 = vmul.f32 %v1302, %v1304
    %1308 = vrot.lane.b32.xlu0 %v1306, 64
    %v1309 = vpop.permute.xlu0 %1308
    %v1311 = vadd.f32 %v245, %v1309
    %v1312 = vtanh.pop %v1311
    %v1313 = vsub.f32 1.0, %v1302
    %1315 = vrot.lane.b32.xlu0 %v1312, 96
    %v1316 = vpop.permute.xlu0 %1315
    %v1318 = vmul.f32 %v1313, %v1316
    %v1319 = vrot.slane %v1216, 2
    %1320 = vrot.lane.b32.xlu0 %v1319, 32
    %v1321 = vpop.permute.xlu0 %1320
    %v1323 = vmul.f32 %v1302, %v1321
    %v1324 = vadd.f32 %v1318, %v1323
    %1325 = vset.pattern.permute.xlu0 7
    %1326 = vperm.xlu0 %1325, %v156
    %v1327 = vpop.permute.xlu0 %1326
    %v1330 = vrot.slane %v1324, 6
    %1331 = vrot.lane.b32.xlu0 %v1330, 96
    %v1332 = vpop.permute.xlu0 %1331
    %v1334 = vmul.f32 %v1327, %v1332
    %1335 = vset.pattern.permute.xlu0 7
    %1336 = vperm.xlu0 %1335, %v453
    %v1337 = vpop.permute.xlu0 %1336
    %v1339 = vmul.f32 %v1337, %v1216
    %v1340 = vadd.f32 %v1334, %v1339
    %v1341 = vmul.f32 %v1340, %v1327
    %s1342 = scalar_lea.vmem %s13, 14
    %1343 = vst.msk [vmem:[%s1342] sm:$0x3] %vm466, %v1341
    %v1345 = vlaneseq
    %v1346 = vshrl.u32 %v1345, 7
    %v1347 = vsub.s32 0, %v1346
    %v1348 = vrot.slane %v341, %v1347
    %1350 = vmatprep.subr.mxu0 0.0
    %1351 = vmatpush1.msra.mxu0 %v337
    %1352 = vmatprep.subr.mxu0 0.0
    %1353 = vmatpush1.msra.mxu0 %v338
    %1354 = vmatprep.subr.mxu0 0.0
    %1355 = vmatpush1.msra.mxu0 %v339
    %1356 = vmatprep.subr.mxu0 0.0
    %1357 = vmatpush1.msra.mxu0 %v340
    %1358 = vmatprep.subr.mxu0 0.0
    %1359 = vmatpush1.msra.mxu0 0.0
    %1360 = vmatprep.subr.mxu0 0.0
    %1361 = vmatpush1.msra.mxu0 0.0
    %1362 = vmatprep.subr.mxu0 0.0
    %1363 = vmatpush1.msra.mxu0 0.0
    %1364 = vmatprep.subr.mxu0 0.0
    %1365 = vmatpush1.msra.mxu0 0.0
    %1366 = vmatprep.subr.mxu0 0.0
    %1367 = vmatpush1.msra.mxu0 0.0
    %1368 = vmatprep.subr.mxu0 0.0
    %1369 = vmatpush1.msra.mxu0 0.0
    %1370 = vmatprep.subr.mxu0 0.0
    %1371 = vmatpush1.msra.mxu0 0.0
    %1372 = vmatprep.subr.mxu0 0.0
    %1373 = vmatpush1.msra.mxu0 0.0
    %1374 = vmatprep.subr.mxu0 0.0
    %1375 = vmatpush1.msra.mxu0 0.0
    %1376 = vmatprep.subr.mxu0 0.0
    %1377 = vmatpush1.msra.mxu0 0.0
    %1378 = vmatprep.subr.mxu0 0.0
    %1379 = vmatpush1.msra.mxu0 0.0
    %1380 = vmatprep.subr.mxu0 0.0
    %1381 = vmatpush1.msra.mxu0 0.0
    %1382 = vmatprep.subr.mxu0 0.0
    %1383 = vmatpush1.msra.mxu0 0.0
    %1384 = vmatprep.subr.mxu0 0.0
    %1385 = vmatpush1.msra.mxu0 0.0
    %1386 = vmatprep.subr.mxu0 0.0
    %1387 = vmatpush1.msra.mxu0 0.0
    %1388 = vmatprep.subr.mxu0 0.0
    %1389 = vmatpush1.msra.mxu0 0.0
    %1390 = vmatprep.subr.mxu0 0.0
    %1391 = vmatpush1.msra.mxu0 0.0
    %1392 = vmatprep.subr.mxu0 0.0
    %1393 = vmatpush1.msra.mxu0 0.0
    %1394 = vmatprep.subr.mxu0 0.0
    %1395 = vmatpush1.msra.mxu0 0.0
    %1396 = vmatprep.subr.mxu0 0.0
    %1397 = vmatpush1.msra.mxu0 0.0
    %1398 = vmatprep.subr.mxu0 0.0
    %1399 = vmatpush1.msra.mxu0 0.0
    %1400 = vmatprep.subr.mxu0 0.0
    %1401 = vmatpush1.msra.mxu0 0.0
    %1402 = vmatprep.subr.mxu0 0.0
    %1403 = vmatpush1.msra.mxu0 0.0
    %1404 = vmatprep.subr.mxu0 0.0
    %1405 = vmatpush1.msra.mxu0 0.0
    %1406 = vmatprep.subr.mxu0 0.0
    %1407 = vmatpush1.msra.mxu0 0.0
    %1408 = vmatprep.subr.mxu0 0.0
    %1409 = vmatpush1.msra.mxu0 0.0
    %1410 = vmatprep.subr.mxu0 0.0
    %1411 = vmatpush1.msra.mxu0 0.0
    %1412 = vmatprep.subr.mxu0 0.0
    %1413 = vmatpush1.msra.mxu0 0.0
    %1414 = vmatprep.mubr.f32.mxu0 0.0
    %1415 = vmatmul.mubr.f32.gmra.mrb[0].mxu0 %v349
    %v1416 = vpop.f32.mrb[0].mxu0
    %v1417 = vadd.f32 %v1348, %v1416
    %v1418 = vpop.f32.mrb[0].mxu0
    %1419 = vdwg.mxu0
    %v1421 = vrot.slane %v1417, 2
    %v1423 = vadd.f32 %v329, %v1421
    %v1424 = vxor.u32 %v1423, 2147483648
    %v1425 = vmul.f32 %v1424, 1.442695
    %v1426 = vpow.pop %v1425
    %v1427 = vadd.f32 %v1426, 1.0
    %v1428 = vrcp.pop %v1427
    %v1429 = vmul.f32 1.0, %v1428
    %1430 = vrot.lane.b32.xlu0 %v1421, 64
    %v1431 = vpop.permute.xlu0 %1430
    %v1433 = vmul.f32 %v1429, %v1431
    %1435 = vrot.lane.b32.xlu0 %v1433, 64
    %v1436 = vpop.permute.xlu0 %1435
    %v1438 = vadd.f32 %v329, %v1436
    %v1439 = vtanh.pop %v1438
    %v1440 = vsub.f32 1.0, %v1429
    %1442 = vrot.lane.b32.xlu0 %v1439, 96
    %v1443 = vpop.permute.xlu0 %1442
    %v1445 = vmul.f32 %v1440, %v1443
    %v1446 = vmul.f32 %v1429, 0.0
    %v1447 = vadd.f32 %v1445, %v1446
    %v1449 = vrot.slane %v1447, 6
    %1450 = vrot.lane.b32.xlu0 %v1449, 96
    %v1451 = vpop.permute.xlu0 %1450
    %v1453 = vmul.f32 %v1327, %v1451
    %v1454 = vmul.f32 %v1337, 0.0
    %v1455 = vadd.f32 %v1453, %v1454
    %v1456 = vmul.f32 %v1455, %v1327
    %s1457 = scalar_lea.vmem %s14, 14
    %1458 = vst.msk [vmem:[%s1457] sm:$0x3] %vm466, %v1456
    %v1460 = vsel %vm68, %v1455, 0
    %1462 = vmatprep.subr.mxu0 0.0
    %1463 = vmatpush1.msra.mxu0 %v337
    %1464 = vmatprep.subr.mxu0 0.0
    %1465 = vmatpush1.msra.mxu0 %v338
    %1466 = vmatprep.subr.mxu0 0.0
    %1467 = vmatpush1.msra.mxu0 %v339
    %1468 = vmatprep.subr.mxu0 0.0
    %1469 = vmatpush1.msra.mxu0 %v340
    %1470 = vmatprep.subr.mxu0 0.0
    %1471 = vmatpush1.msra.mxu0 0.0
    %1472 = vmatprep.subr.mxu0 0.0
    %1473 = vmatpush1.msra.mxu0 0.0
    %1474 = vmatprep.subr.mxu0 0.0
    %1475 = vmatpush1.msra.mxu0 0.0
    %1476 = vmatprep.subr.mxu0 0.0
    %1477 = vmatpush1.msra.mxu0 0.0
    %1478 = vmatprep.subr.mxu0 0.0
    %1479 = vmatpush1.msra.mxu0 0.0
    %1480 = vmatprep.subr.mxu0 0.0
    %1481 = vmatpush1.msra.mxu0 0.0
    %1482 = vmatprep.subr.mxu0 0.0
    %1483 = vmatpush1.msra.mxu0 0.0
    %1484 = vmatprep.subr.mxu0 0.0
    %1485 = vmatpush1.msra.mxu0 0.0
    %1486 = vmatprep.subr.mxu0 0.0
    %1487 = vmatpush1.msra.mxu0 0.0
    %1488 = vmatprep.subr.mxu0 0.0
    %1489 = vmatpush1.msra.mxu0 0.0
    %1490 = vmatprep.subr.mxu0 0.0
    %1491 = vmatpush1.msra.mxu0 0.0
    %1492 = vmatprep.subr.mxu0 0.0
    %1493 = vmatpush1.msra.mxu0 0.0
    %1494 = vmatprep.subr.mxu0 0.0
    %1495 = vmatpush1.msra.mxu0 0.0
    %1496 = vmatprep.subr.mxu0 0.0
    %1497 = vmatpush1.msra.mxu0 0.0
    %1498 = vmatprep.subr.mxu0 0.0
    %1499 = vmatpush1.msra.mxu0 0.0
    %1500 = vmatprep.subr.mxu0 0.0
    %1501 = vmatpush1.msra.mxu0 0.0
    %1502 = vmatprep.subr.mxu0 0.0
    %1503 = vmatpush1.msra.mxu0 0.0
    %1504 = vmatprep.subr.mxu0 0.0
    %1505 = vmatpush1.msra.mxu0 0.0
    %1506 = vmatprep.subr.mxu0 0.0
    %1507 = vmatpush1.msra.mxu0 0.0
    %1508 = vmatprep.subr.mxu0 0.0
    %1509 = vmatpush1.msra.mxu0 0.0
    %1510 = vmatprep.subr.mxu0 0.0
    %1511 = vmatpush1.msra.mxu0 0.0
    %1512 = vmatprep.subr.mxu0 0.0
    %1513 = vmatpush1.msra.mxu0 0.0
    %1514 = vmatprep.subr.mxu0 0.0
    %1515 = vmatpush1.msra.mxu0 0.0
    %1516 = vmatprep.subr.mxu0 0.0
    %1517 = vmatpush1.msra.mxu0 0.0
    %1518 = vmatprep.subr.mxu0 0.0
    %1519 = vmatpush1.msra.mxu0 0.0
    %1520 = vmatprep.subr.mxu0 0.0
    %1521 = vmatpush1.msra.mxu0 0.0
    %1522 = vmatprep.subr.mxu0 0.0
    %1523 = vmatpush1.msra.mxu0 0.0
    %1524 = vmatprep.subr.mxu0 0.0
    %1525 = vmatpush1.msra.mxu0 0.0
    %1526 = vmatprep.mubr.f32.mxu0 0.0
    %1527 = vmatmul.mubr.f32.gmra.mrb[0].mxu0 %v1460
    %v1528 = vpop.f32.mrb[0].mxu0
    %v1529 = vadd.f32 %v1348, %v1528
    %v1530 = vpop.f32.mrb[0].mxu0
    %1531 = vdwg.mxu0
    %v1533 = vrot.slane %v1529, 4
    %v1535 = vadd.f32 %v329, %v1533
    %v1536 = vxor.u32 %v1535, 2147483648
    %v1537 = vmul.f32 %v1536, 1.442695
    %v1538 = vpow.pop %v1537
    %v1539 = vadd.f32 %v1538, 1.0
    %v1540 = vrcp.pop %v1539
    %v1541 = vmul.f32 1.0, %v1540
    %1542 = vrot.lane.b32.xlu0 %v1533, 64
    %v1543 = vpop.permute.xlu0 %1542
    %v1545 = vmul.f32 %v1541, %v1543
    %1547 = vrot.lane.b32.xlu0 %v1545, 64
    %v1548 = vpop.permute.xlu0 %1547
    %v1550 = vadd.f32 %v329, %v1548
    %v1551 = vtanh.pop %v1550
    %v1552 = vsub.f32 1.0, %v1541
    %1554 = vrot.lane.b32.xlu0 %v1551, 96
    %v1555 = vpop.permute.xlu0 %1554
    %v1557 = vmul.f32 %v1552, %v1555
    %v1558 = vrot.slane %v1455, 4
    %1559 = vrot.lane.b32.xlu0 %v1558, 32
    %v1560 = vpop.permute.xlu0 %1559
    %v1562 = vmul.f32 %v1541, %v1560
    %v1563 = vadd.f32 %v1557, %v1562
    %v1565 = vrot.slane %v1563, 4
    %1566 = vrot.lane.b32.xlu0 %v1565, 96
    %v1567 = vpop.permute.xlu0 %1566
    %v1569 = vmul.f32 %v1203, %v1567
    %v1570 = vmul.f32 %v1213, %v1455
    %v1571 = vadd.f32 %v1569, %v1570
    %v1572 = vmul.f32 %v1571, %v1203
    %s1573 = scalar_lea.vmem %s14, 12
    %1574 = vst.msk [vmem:[%s1573] sm:$0x3] %vm466, %v1572
    %v1576 = vsel %vm68, %v1571, 0
    %1578 = vmatprep.subr.mxu0 0.0
    %1579 = vmatpush1.msra.mxu0 %v337
    %1580 = vmatprep.subr.mxu0 0.0
    %1581 = vmatpush1.msra.mxu0 %v338
    %1582 = vmatprep.subr.mxu0 0.0
    %1583 = vmatpush1.msra.mxu0 %v339
    %1584 = vmatprep.subr.mxu0 0.0
    %1585 = vmatpush1.msra.mxu0 %v340
    %1586 = vmatprep.subr.mxu0 0.0
    %1587 = vmatpush1.msra.mxu0 0.0
    %1588 = vmatprep.subr.mxu0 0.0
    %1589 = vmatpush1.msra.mxu0 0.0
    %1590 = vmatprep.subr.mxu0 0.0
    %1591 = vmatpush1.msra.mxu0 0.0
    %1592 = vmatprep.subr.mxu0 0.0
    %1593 = vmatpush1.msra.mxu0 0.0
    %1594 = vmatprep.subr.mxu0 0.0
    %1595 = vmatpush1.msra.mxu0 0.0
    %1596 = vmatprep.subr.mxu0 0.0
    %1597 = vmatpush1.msra.mxu0 0.0
    %1598 = vmatprep.subr.mxu0 0.0
    %1599 = vmatpush1.msra.mxu0 0.0
    %1600 = vmatprep.subr.mxu0 0.0
    %1601 = vmatpush1.msra.mxu0 0.0
    %1602 = vmatprep.subr.mxu0 0.0
    %1603 = vmatpush1.msra.mxu0 0.0
    %1604 = vmatprep.subr.mxu0 0.0
    %1605 = vmatpush1.msra.mxu0 0.0
    %1606 = vmatprep.subr.mxu0 0.0
    %1607 = vmatpush1.msra.mxu0 0.0
    %1608 = vmatprep.subr.mxu0 0.0
    %1609 = vmatpush1.msra.mxu0 0.0
    %1610 = vmatprep.subr.mxu0 0.0
    %1611 = vmatpush1.msra.mxu0 0.0
    %1612 = vmatprep.subr.mxu0 0.0
    %1613 = vmatpush1.msra.mxu0 0.0
    %1614 = vmatprep.subr.mxu0 0.0
    %1615 = vmatpush1.msra.mxu0 0.0
    %1616 = vmatprep.subr.mxu0 0.0
    %1617 = vmatpush1.msra.mxu0 0.0
    %1618 = vmatprep.subr.mxu0 0.0
    %1619 = vmatpush1.msra.mxu0 0.0
    %1620 = vmatprep.subr.mxu0 0.0
    %1621 = vmatpush1.msra.mxu0 0.0
    %1622 = vmatprep.subr.mxu0 0.0
    %1623 = vmatpush1.msra.mxu0 0.0
    %1624 = vmatprep.subr.mxu0 0.0
    %1625 = vmatpush1.msra.mxu0 0.0
    %1626 = vmatprep.subr.mxu0 0.0
    %1627 = vmatpush1.msra.mxu0 0.0
    %1628 = vmatprep.subr.mxu0 0.0
    %1629 = vmatpush1.msra.mxu0 0.0
    %1630 = vmatprep.subr.mxu0 0.0
    %1631 = vmatpush1.msra.mxu0 0.0
    %1632 = vmatprep.subr.mxu0 0.0
    %1633 = vmatpush1.msra.mxu0 0.0
    %1634 = vmatprep.subr.mxu0 0.0
    %1635 = vmatpush1.msra.mxu0 0.0
    %1636 = vmatprep.subr.mxu0 0.0
    %1637 = vmatpush1.msra.mxu0 0.0
    %1638 = vmatprep.subr.mxu0 0.0
    %1639 = vmatpush1.msra.mxu0 0.0
    %1640 = vmatprep.subr.mxu0 0.0
    %1641 = vmatpush1.msra.mxu0 0.0
    %1642 = vmatprep.mubr.f32.mxu0 0.0
    %1643 = vmatmul.mubr.f32.gmra.mrb[0].mxu0 %v1576
    %v1644 = vpop.f32.mrb[0].mxu0
    %v1645 = vadd.f32 %v1348, %v1644
    %v1646 = vpop.f32.mrb[0].mxu0
    %1647 = vdwg.mxu0
    %v1649 = vrot.slane %v1645, 6
    %v1651 = vadd.f32 %v329, %v1649
    %v1652 = vxor.u32 %v1651, 2147483648
    %v1653 = vmul.f32 %v1652, 1.442695
    %v1654 = vpow.pop %v1653
    %v1655 = vadd.f32 %v1654, 1.0
    %v1656 = vrcp.pop %v1655
    %v1657 = vmul.f32 1.0, %v1656
    %1658 = vrot.lane.b32.xlu0 %v1649, 64
    %v1659 = vpop.permute.xlu0 %1658
    %v1661 = vmul.f32 %v1657, %v1659
    %1663 = vrot.lane.b32.xlu0 %v1661, 64
    %v1664 = vpop.permute.xlu0 %1663
    %v1666 = vadd.f32 %v329, %v1664
    %v1667 = vtanh.pop %v1666
    %v1668 = vsub.f32 1.0, %v1657
    %1670 = vrot.lane.b32.xlu0 %v1667, 96
    %v1671 = vpop.permute.xlu0 %1670
    %v1673 = vmul.f32 %v1668, %v1671
    %v1674 = vrot.slane %v1571, 6
    %1675 = vrot.lane.b32.xlu0 %v1674, 32
    %v1676 = vpop.permute.xlu0 %1675
    %v1678 = vmul.f32 %v1657, %v1676
    %v1679 = vadd.f32 %v1673, %v1678
    %v1681 = vrot.slane %v1679, 2
    %1682 = vrot.lane.b32.xlu0 %v1681, 96
    %v1683 = vpop.permute.xlu0 %1682
    %v1685 = vmul.f32 %v1075, %v1683
    %v1686 = vmul.f32 %v1085, %v1571
    %v1687 = vadd.f32 %v1685, %v1686
    %v1688 = vmul.f32 %v1687, %v1075
    %s1689 = scalar_lea.vmem %s14, 10
    %1690 = vst.msk [vmem:[%s1689] sm:$0x3] %vm466, %v1688
    %v1692 = vsel %vm68, %v1687, 0
    %1694 = vmatprep.subr.mxu0 0.0
    %1695 = vmatpush1.msra.mxu0 %v337
    %1696 = vmatprep.subr.mxu0 0.0
    %1697 = vmatpush1.msra.mxu0 %v338
    %1698 = vmatprep.subr.mxu0 0.0
    %1699 = vmatpush1.msra.mxu0 %v339
    %1700 = vmatprep.subr.mxu0 0.0
    %1701 = vmatpush1.msra.mxu0 %v340
    %1702 = vmatprep.subr.mxu0 0.0
    %1703 = vmatpush1.msra.mxu0 0.0
    %1704 = vmatprep.subr.mxu0 0.0
    %1705 = vmatpush1.msra.mxu0 0.0
    %1706 = vmatprep.subr.mxu0 0.0
    %1707 = vmatpush1.msra.mxu0 0.0
    %1708 = vmatprep.subr.mxu0 0.0
    %1709 = vmatpush1.msra.mxu0 0.0
    %1710 = vmatprep.subr.mxu0 0.0
    %1711 = vmatpush1.msra.mxu0 0.0
    %1712 = vmatprep.subr.mxu0 0.0
    %1713 = vmatpush1.msra.mxu0 0.0
    %1714 = vmatprep.subr.mxu0 0.0
    %1715 = vmatpush1.msra.mxu0 0.0
    %1716 = vmatprep.subr.mxu0 0.0
    %1717 = vmatpush1.msra.mxu0 0.0
    %1718 = vmatprep.subr.mxu0 0.0
    %1719 = vmatpush1.msra.mxu0 0.0
    %1720 = vmatprep.subr.mxu0 0.0
    %1721 = vmatpush1.msra.mxu0 0.0
    %1722 = vmatprep.subr.mxu0 0.0
    %1723 = vmatpush1.msra.mxu0 0.0
    %1724 = vmatprep.subr.mxu0 0.0
    %1725 = vmatpush1.msra.mxu0 0.0
    %1726 = vmatprep.subr.mxu0 0.0
    %1727 = vmatpush1.msra.mxu0 0.0
    %1728 = vmatprep.subr.mxu0 0.0
    %1729 = vmatpush1.msra.mxu0 0.0
    %1730 = vmatprep.subr.mxu0 0.0
    %1731 = vmatpush1.msra.mxu0 0.0
    %1732 = vmatprep.subr.mxu0 0.0
    %1733 = vmatpush1.msra.mxu0 0.0
    %1734 = vmatprep.subr.mxu0 0.0
    %1735 = vmatpush1.msra.mxu0 0.0
    %1736 = vmatprep.subr.mxu0 0.0
    %1737 = vmatpush1.msra.mxu0 0.0
    %1738 = vmatprep.subr.mxu0 0.0
    %1739 = vmatpush1.msra.mxu0 0.0
    %1740 = vmatprep.subr.mxu0 0.0
    %1741 = vmatpush1.msra.mxu0 0.0
    %1742 = vmatprep.subr.mxu0 0.0
    %1743 = vmatpush1.msra.mxu0 0.0
    %1744 = vmatprep.subr.mxu0 0.0
    %1745 = vmatpush1.msra.mxu0 0.0
    %1746 = vmatprep.subr.mxu0 0.0
    %1747 = vmatpush1.msra.mxu0 0.0
    %1748 = vmatprep.subr.mxu0 0.0
    %1749 = vmatpush1.msra.mxu0 0.0
    %1750 = vmatprep.subr.mxu0 0.0
    %1751 = vmatpush1.msra.mxu0 0.0
    %1752 = vmatprep.subr.mxu0 0.0
    %1753 = vmatpush1.msra.mxu0 0.0
    %1754 = vmatprep.subr.mxu0 0.0
    %1755 = vmatpush1.msra.mxu0 0.0
    %1756 = vmatprep.subr.mxu0 0.0
    %1757 = vmatpush1.msra.mxu0 0.0
    %1758 = vmatprep.mubr.f32.mxu0 0.0
    %1759 = vmatmul.mubr.f32.gmra.mrb[0].mxu0 %v1692
    %v1760 = vpop.f32.mrb[0].mxu0
    %v1761 = vadd.f32 %v1348, %v1760
    %v1762 = vpop.f32.mrb[0].mxu0
    %1763 = vdwg.mxu0
    %v1764 = vadd.f32 %v329, %v1761
    %v1765 = vxor.u32 %v1764, 2147483648
    %v1766 = vmul.f32 %v1765, 1.442695
    %v1767 = vpow.pop %v1766
    %v1768 = vadd.f32 %v1767, 1.0
    %v1769 = vrcp.pop %v1768
    %v1770 = vmul.f32 1.0, %v1769
    %1772 = vrot.lane.b32.xlu0 %v1761, 64
    %v1773 = vpop.permute.xlu0 %1772
    %v1775 = vmul.f32 %v1770, %v1773
    %1777 = vrot.lane.b32.xlu0 %v1775, 64
    %v1778 = vpop.permute.xlu0 %1777
    %v1780 = vadd.f32 %v329, %v1778
    %v1781 = vtanh.pop %v1780
    %v1782 = vsub.f32 1.0, %v1770
    %1784 = vrot.lane.b32.xlu0 %v1781, 96
    %v1785 = vpop.permute.xlu0 %1784
    %v1787 = vmul.f32 %v1782, %v1785
    %1788 = vrot.lane.b32.xlu0 %v1687, 32
    %v1789 = vpop.permute.xlu0 %1788
    %v1791 = vmul.f32 %v1770, %v1789
    %v1792 = vadd.f32 %v1787, %v1791
    %v1793 = vmul.f32 %v948, %v1792
    %v1794 = vmul.f32 %v953, %v1687
    %1796 = vrot.lane.b32.xlu0 %v1794, 32
    %v1797 = vpop.permute.xlu0 %1796
    %v1799 = vadd.f32 %v1793, %v1797
    %v1800 = vmul.f32 %v1799, %v948
    %1802 = vrot.lane.b32.xlu0 %v1800, 96
    %v1803 = vpop.permute.xlu0 %1802
    %s1805 = scalar_lea.vmem %s14, 8
    %1806 = vst.msk [vmem:[%s1805] sm:$0x3] %vm466, %v1803
    %1808 = vrot.lane.b32.xlu0 %v1799, 96
    %v1809 = vpop.permute.xlu0 %1808
    %v1810 = vsel %vm68, %v1809, 0
    %1812 = vmatprep.subr.mxu0 0.0
    %1813 = vmatpush1.msra.mxu0 %v337
    %1814 = vmatprep.subr.mxu0 0.0
    %1815 = vmatpush1.msra.mxu0 %v338
    %1816 = vmatprep.subr.mxu0 0.0
    %1817 = vmatpush1.msra.mxu0 %v339
    %1818 = vmatprep.subr.mxu0 0.0
    %1819 = vmatpush1.msra.mxu0 %v340
    %1820 = vmatprep.subr.mxu0 0.0
    %1821 = vmatpush1.msra.mxu0 0.0
    %1822 = vmatprep.subr.mxu0 0.0
    %1823 = vmatpush1.msra.mxu0 0.0
    %1824 = vmatprep.subr.mxu0 0.0
    %1825 = vmatpush1.msra.mxu0 0.0
    %1826 = vmatprep.subr.mxu0 0.0
    %1827 = vmatpush1.msra.mxu0 0.0
    %1828 = vmatprep.subr.mxu0 0.0
    %1829 = vmatpush1.msra.mxu0 0.0
    %1830 = vmatprep.subr.mxu0 0.0
    %1831 = vmatpush1.msra.mxu0 0.0
    %1832 = vmatprep.subr.mxu0 0.0
    %1833 = vmatpush1.msra.mxu0 0.0
    %1834 = vmatprep.subr.mxu0 0.0
    %1835 = vmatpush1.msra.mxu0 0.0
    %1836 = vmatprep.subr.mxu0 0.0
    %1837 = vmatpush1.msra.mxu0 0.0
    %1838 = vmatprep.subr.mxu0 0.0
    %1839 = vmatpush1.msra.mxu0 0.0
    %1840 = vmatprep.subr.mxu0 0.0
    %1841 = vmatpush1.msra.mxu0 0.0
    %1842 = vmatprep.subr.mxu0 0.0
    %1843 = vmatpush1.msra.mxu0 0.0
    %1844 = vmatprep.subr.mxu0 0.0
    %1845 = vmatpush1.msra.mxu0 0.0
    %1846 = vmatprep.subr.mxu0 0.0
    %1847 = vmatpush1.msra.mxu0 0.0
    %1848 = vmatprep.subr.mxu0 0.0
    %1849 = vmatpush1.msra.mxu0 0.0
    %1850 = vmatprep.subr.mxu0 0.0
    %1851 = vmatpush1.msra.mxu0 0.0
    %1852 = vmatprep.subr.mxu0 0.0
    %1853 = vmatpush1.msra.mxu0 0.0
    %1854 = vmatprep.subr.mxu0 0.0
    %1855 = vmatpush1.msra.mxu0 0.0
    %1856 = vmatprep.subr.mxu0 0.0
    %1857 = vmatpush1.msra.mxu0 0.0
    %1858 = vmatprep.subr.mxu0 0.0
    %1859 = vmatpush1.msra.mxu0 0.0
    %1860 = vmatprep.subr.mxu0 0.0
    %1861 = vmatpush1.msra.mxu0 0.0
    %1862 = vmatprep.subr.mxu0 0.0
    %1863 = vmatpush1.msra.mxu0 0.0
    %1864 = vmatprep.subr.mxu0 0.0
    %1865 = vmatpush1.msra.mxu0 0.0
    %1866 = vmatprep.subr.mxu0 0.0
    %1867 = vmatpush1.msra.mxu0 0.0
    %1868 = vmatprep.subr.mxu0 0.0
    %1869 = vmatpush1.msra.mxu0 0.0
    %1870 = vmatprep.subr.mxu0 0.0
    %1871 = vmatpush1.msra.mxu0 0.0
    %1872 = vmatprep.subr.mxu0 0.0
    %1873 = vmatpush1.msra.mxu0 0.0
    %1874 = vmatprep.subr.mxu0 0.0
    %1875 = vmatpush1.msra.mxu0 0.0
    %1876 = vmatprep.mubr.f32.mxu0 0.0
    %1877 = vmatmul.mubr.f32.gmra.mrb[0].mxu0 %v1810
    %v1878 = vpop.f32.mrb[0].mxu0
    %v1879 = vadd.f32 %v1348, %v1878
    %v1880 = vpop.f32.mrb[0].mxu0
    %1881 = vdwg.mxu0
    %v1883 = vrot.slane %v1879, 2
    %v1885 = vadd.f32 %v324, %v1883
    %v1886 = vxor.u32 %v1885, 2147483648
    %v1887 = vmul.f32 %v1886, 1.442695
    %v1888 = vpow.pop %v1887
    %v1889 = vadd.f32 %v1888, 1.0
    %v1890 = vrcp.pop %v1889
    %v1891 = vmul.f32 1.0, %v1890
    %1892 = vrot.lane.b32.xlu0 %v1883, 64
    %v1893 = vpop.permute.xlu0 %1892
    %v1895 = vmul.f32 %v1891, %v1893
    %1897 = vrot.lane.b32.xlu0 %v1895, 64
    %v1898 = vpop.permute.xlu0 %1897
    %v1900 = vadd.f32 %v324, %v1898
    %v1901 = vtanh.pop %v1900
    %v1902 = vsub.f32 1.0, %v1891
    %1904 = vrot.lane.b32.xlu0 %v1901, 96
    %v1905 = vpop.permute.xlu0 %1904
    %v1907 = vmul.f32 %v1902, %v1905
    %v1908 = vrot.slane %v1799, 2
    %v1910 = vmul.f32 %v1891, %v1908
    %v1911 = vadd.f32 %v1907, %v1910
    %v1913 = vrot.slane %v1911, 6
    %1914 = vrot.lane.b32.xlu0 %v1913, 96
    %v1915 = vpop.permute.xlu0 %1914
    %v1917 = vmul.f32 %v827, %v1915
    %v1918 = vmul.f32 %v837, %v1799
    %1920 = vrot.lane.b32.xlu0 %v1918, 96
    %v1921 = vpop.permute.xlu0 %1920
    %v1923 = vadd.f32 %v1917, %v1921
    %v1924 = vmul.f32 %v1923, %v827
    %s1925 = scalar_lea.vmem %s14, 6
    %1926 = vst.msk [vmem:[%s1925] sm:$0x3] %vm466, %v1924
    %v1928 = vsel %vm68, %v1923, 0
    %1930 = vmatprep.subr.mxu0 0.0
    %1931 = vmatpush1.msra.mxu0 %v337
    %1932 = vmatprep.subr.mxu0 0.0
    %1933 = vmatpush1.msra.mxu0 %v338
    %1934 = vmatprep.subr.mxu0 0.0
    %1935 = vmatpush1.msra.mxu0 %v339
    %1936 = vmatprep.subr.mxu0 0.0
    %1937 = vmatpush1.msra.mxu0 %v340
    %1938 = vmatprep.subr.mxu0 0.0
    %1939 = vmatpush1.msra.mxu0 0.0
    %1940 = vmatprep.subr.mxu0 0.0
    %1941 = vmatpush1.msra.mxu0 0.0
    %1942 = vmatprep.subr.mxu0 0.0
    %1943 = vmatpush1.msra.mxu0 0.0
    %1944 = vmatprep.subr.mxu0 0.0
    %1945 = vmatpush1.msra.mxu0 0.0
    %1946 = vmatprep.subr.mxu0 0.0
    %1947 = vmatpush1.msra.mxu0 0.0
    %1948 = vmatprep.subr.mxu0 0.0
    %1949 = vmatpush1.msra.mxu0 0.0
    %1950 = vmatprep.subr.mxu0 0.0
    %1951 = vmatpush1.msra.mxu0 0.0
    %1952 = vmatprep.subr.mxu0 0.0
    %1953 = vmatpush1.msra.mxu0 0.0
    %1954 = vmatprep.subr.mxu0 0.0
    %1955 = vmatpush1.msra.mxu0 0.0
    %1956 = vmatprep.subr.mxu0 0.0
    %1957 = vmatpush1.msra.mxu0 0.0
    %1958 = vmatprep.subr.mxu0 0.0
    %1959 = vmatpush1.msra.mxu0 0.0
    %1960 = vmatprep.subr.mxu0 0.0
    %1961 = vmatpush1.msra.mxu0 0.0
    %1962 = vmatprep.subr.mxu0 0.0
    %1963 = vmatpush1.msra.mxu0 0.0
    %1964 = vmatprep.subr.mxu0 0.0
    %1965 = vmatpush1.msra.mxu0 0.0
    %1966 = vmatprep.subr.mxu0 0.0
    %1967 = vmatpush1.msra.mxu0 0.0
    %1968 = vmatprep.subr.mxu0 0.0
    %1969 = vmatpush1.msra.mxu0 0.0
    %1970 = vmatprep.subr.mxu0 0.0
    %1971 = vmatpush1.msra.mxu0 0.0
    %1972 = vmatprep.subr.mxu0 0.0
    %1973 = vmatpush1.msra.mxu0 0.0
    %1974 = vmatprep.subr.mxu0 0.0
    %1975 = vmatpush1.msra.mxu0 0.0
    %1976 = vmatprep.subr.mxu0 0.0
    %1977 = vmatpush1.msra.mxu0 0.0
    %1978 = vmatprep.subr.mxu0 0.0
    %1979 = vmatpush1.msra.mxu0 0.0
    %1980 = vmatprep.subr.mxu0 0.0
    %1981 = vmatpush1.msra.mxu0 0.0
    %1982 = vmatprep.subr.mxu0 0.0
    %1983 = vmatpush1.msra.mxu0 0.0
    %1984 = vmatprep.subr.mxu0 0.0
    %1985 = vmatpush1.msra.mxu0 0.0
    %1986 = vmatprep.subr.mxu0 0.0
    %1987 = vmatpush1.msra.mxu0 0.0
    %1988 = vmatprep.subr.mxu0 0.0
    %1989 = vmatpush1.msra.mxu0 0.0
    %1990 = vmatprep.subr.mxu0 0.0
    %1991 = vmatpush1.msra.mxu0 0.0
    %1992 = vmatprep.subr.mxu0 0.0
    %1993 = vmatpush1.msra.mxu0 0.0
    %1994 = vmatprep.mubr.f32.mxu0 0.0
    %1995 = vmatmul.mubr.f32.gmra.mrb[0].mxu0 %v1928
    %v1996 = vpop.f32.mrb[0].mxu0
    %v1997 = vadd.f32 %v1348, %v1996
    %v1998 = vpop.f32.mrb[0].mxu0
    %1999 = vdwg.mxu0
    %v2001 = vrot.slane %v1997, 4
    %v2003 = vadd.f32 %v324, %v2001
    %v2004 = vxor.u32 %v2003, 2147483648
    %v2005 = vmul.f32 %v2004, 1.442695
    %v2006 = vpow.pop %v2005
    %v2007 = vadd.f32 %v2006, 1.0
    %v2008 = vrcp.pop %v2007
    %v2009 = vmul.f32 1.0, %v2008
    %2010 = vrot.lane.b32.xlu0 %v2001, 64
    %v2011 = vpop.permute.xlu0 %2010
    %v2013 = vmul.f32 %v2009, %v2011
    %2015 = vrot.lane.b32.xlu0 %v2013, 64
    %v2016 = vpop.permute.xlu0 %2015
    %v2018 = vadd.f32 %v324, %v2016
    %v2019 = vtanh.pop %v2018
    %v2020 = vsub.f32 1.0, %v2009
    %2022 = vrot.lane.b32.xlu0 %v2019, 96
    %v2023 = vpop.permute.xlu0 %2022
    %v2025 = vmul.f32 %v2020, %v2023
    %v2026 = vrot.slane %v1923, 4
    %2027 = vrot.lane.b32.xlu0 %v2026, 32
    %v2028 = vpop.permute.xlu0 %2027
    %v2030 = vmul.f32 %v2009, %v2028
    %v2031 = vadd.f32 %v2025, %v2030
    %v2033 = vrot.slane %v2031, 4
    %2034 = vrot.lane.b32.xlu0 %v2033, 96
    %v2035 = vpop.permute.xlu0 %2034
    %v2037 = vmul.f32 %v703, %v2035
    %v2038 = vmul.f32 %v713, %v1923
    %v2039 = vadd.f32 %v2037, %v2038
    %v2040 = vmul.f32 %v2039, %v703
    %s2041 = scalar_lea.vmem %s14, 4
    %2042 = vst.msk [vmem:[%s2041] sm:$0x3] %vm466, %v2040
    %v2044 = vsel %vm68, %v2039, 0
    %2046 = vmatprep.subr.mxu0 0.0
    %2047 = vmatpush1.msra.mxu0 %v337
    %2048 = vmatprep.subr.mxu0 0.0
    %2049 = vmatpush1.msra.mxu0 %v338
    %2050 = vmatprep.subr.mxu0 0.0
    %2051 = vmatpush1.msra.mxu0 %v339
    %2052 = vmatprep.subr.mxu0 0.0
    %2053 = vmatpush1.msra.mxu0 %v340
    %2054 = vmatprep.subr.mxu0 0.0
    %2055 = vmatpush1.msra.mxu0 0.0
    %2056 = vmatprep.subr.mxu0 0.0
    %2057 = vmatpush1.msra.mxu0 0.0
    %2058 = vmatprep.subr.mxu0 0.0
    %2059 = vmatpush1.msra.mxu0 0.0
    %2060 = vmatprep.subr.mxu0 0.0
    %2061 = vmatpush1.msra.mxu0 0.0
    %2062 = vmatprep.subr.mxu0 0.0
    %2063 = vmatpush1.msra.mxu0 0.0
    %2064 = vmatprep.subr.mxu0 0.0
    %2065 = vmatpush1.msra.mxu0 0.0
    %2066 = vmatprep.subr.mxu0 0.0
    %2067 = vmatpush1.msra.mxu0 0.0
    %2068 = vmatprep.subr.mxu0 0.0
    %2069 = vmatpush1.msra.mxu0 0.0
    %2070 = vmatprep.subr.mxu0 0.0
    %2071 = vmatpush1.msra.mxu0 0.0
    %2072 = vmatprep.subr.mxu0 0.0
    %2073 = vmatpush1.msra.mxu0 0.0
    %2074 = vmatprep.subr.mxu0 0.0
    %2075 = vmatpush1.msra.mxu0 0.0
    %2076 = vmatprep.subr.mxu0 0.0
    %2077 = vmatpush1.msra.mxu0 0.0
    %2078 = vmatprep.subr.mxu0 0.0
    %2079 = vmatpush1.msra.mxu0 0.0
    %2080 = vmatprep.subr.mxu0 0.0
    %2081 = vmatpush1.msra.mxu0 0.0
    %2082 = vmatprep.subr.mxu0 0.0
    %2083 = vmatpush1.msra.mxu0 0.0
    %2084 = vmatprep.subr.mxu0 0.0
    %2085 = vmatpush1.msra.mxu0 0.0
    %2086 = vmatprep.subr.mxu0 0.0
    %2087 = vmatpush1.msra.mxu0 0.0
    %2088 = vmatprep.subr.mxu0 0.0
    %2089 = vmatpush1.msra.mxu0 0.0
    %2090 = vmatprep.subr.mxu0 0.0
    %2091 = vmatpush1.msra.mxu0 0.0
    %2092 = vmatprep.subr.mxu0 0.0
    %2093 = vmatpush1.msra.mxu0 0.0
    %2094 = vmatprep.subr.mxu0 0.0
    %2095 = vmatpush1.msra.mxu0 0.0
    %2096 = vmatprep.subr.mxu0 0.0
    %2097 = vmatpush1.msra.mxu0 0.0
    %2098 = vmatprep.subr.mxu0 0.0
    %2099 = vmatpush1.msra.mxu0 0.0
    %2100 = vmatprep.subr.mxu0 0.0
    %2101 = vmatpush1.msra.mxu0 0.0
    %2102 = vmatprep.subr.mxu0 0.0
    %2103 = vmatpush1.msra.mxu0 0.0
    %2104 = vmatprep.subr.mxu0 0.0
    %2105 = vmatpush1.msra.mxu0 0.0
    %2106 = vmatprep.subr.mxu0 0.0
    %2107 = vmatpush1.msra.mxu0 0.0
    %2108 = vmatprep.subr.mxu0 0.0
    %2109 = vmatpush1.msra.mxu0 0.0
    %2110 = vmatprep.mubr.f32.mxu0 0.0
    %2111 = vmatmul.mubr.f32.gmra.mrb[0].mxu0 %v2044
    %v2112 = vpop.f32.mrb[0].mxu0
    %v2113 = vadd.f32 %v1348, %v2112
    %v2114 = vpop.f32.mrb[0].mxu0
    %2115 = vdwg.mxu0
    %v2117 = vrot.slane %v2113, 6
    %v2119 = vadd.f32 %v324, %v2117
    %v2120 = vxor.u32 %v2119, 2147483648
    %v2121 = vmul.f32 %v2120, 1.442695
    %v2122 = vpow.pop %v2121
    %v2123 = vadd.f32 %v2122, 1.0
    %v2124 = vrcp.pop %v2123
    %v2125 = vmul.f32 1.0, %v2124
    %2126 = vrot.lane.b32.xlu0 %v2117, 64
    %v2127 = vpop.permute.xlu0 %2126
    %v2129 = vmul.f32 %v2125, %v2127
    %2131 = vrot.lane.b32.xlu0 %v2129, 64
    %v2132 = vpop.permute.xlu0 %2131
    %v2134 = vadd.f32 %v324, %v2132
    %v2135 = vtanh.pop %v2134
    %v2136 = vsub.f32 1.0, %v2125
    %2138 = vrot.lane.b32.xlu0 %v2135, 96
    %v2139 = vpop.permute.xlu0 %2138
    %v2141 = vmul.f32 %v2136, %v2139
    %v2142 = vrot.slane %v2039, 6
    %2143 = vrot.lane.b32.xlu0 %v2142, 32
    %v2144 = vpop.permute.xlu0 %2143
    %v2146 = vmul.f32 %v2125, %v2144
    %v2147 = vadd.f32 %v2141, %v2146
    %v2149 = vrot.slane %v2147, 2
    %2150 = vrot.lane.b32.xlu0 %v2149, 96
    %v2151 = vpop.permute.xlu0 %2150
    %v2153 = vmul.f32 %v575, %v2151
    %v2154 = vmul.f32 %v585, %v2039
    %v2155 = vadd.f32 %v2153, %v2154
    %v2156 = vmul.f32 %v2155, %v575
    %s2157 = scalar_lea.vmem %s14, 2
    %2158 = vst.msk [vmem:[%s2157] sm:$0x3] %vm466, %v2156
    %v2160 = vsel %vm68, %v2155, 0
    %2162 = vmatprep.subr.mxu0 0.0
    %2163 = vmatpush1.msra.mxu0 %v337
    %2164 = vmatprep.subr.mxu0 0.0
    %2165 = vmatpush1.msra.mxu0 %v338
    %2166 = vmatprep.subr.mxu0 0.0
    %2167 = vmatpush1.msra.mxu0 %v339
    %2168 = vmatprep.subr.mxu0 0.0
    %2169 = vmatpush1.msra.mxu0 %v340
    %2170 = vmatprep.subr.mxu0 0.0
    %2171 = vmatpush1.msra.mxu0 0.0
    %2172 = vmatprep.subr.mxu0 0.0
    %2173 = vmatpush1.msra.mxu0 0.0
    %2174 = vmatprep.subr.mxu0 0.0
    %2175 = vmatpush1.msra.mxu0 0.0
    %2176 = vmatprep.subr.mxu0 0.0
    %2177 = vmatpush1.msra.mxu0 0.0
    %2178 = vmatprep.subr.mxu0 0.0
    %2179 = vmatpush1.msra.mxu0 0.0
    %2180 = vmatprep.subr.mxu0 0.0
    %2181 = vmatpush1.msra.mxu0 0.0
    %2182 = vmatprep.subr.mxu0 0.0
    %2183 = vmatpush1.msra.mxu0 0.0
    %2184 = vmatprep.subr.mxu0 0.0
    %2185 = vmatpush1.msra.mxu0 0.0
    %2186 = vmatprep.subr.mxu0 0.0
    %2187 = vmatpush1.msra.mxu0 0.0
    %2188 = vmatprep.subr.mxu0 0.0
    %2189 = vmatpush1.msra.mxu0 0.0
    %2190 = vmatprep.subr.mxu0 0.0
    %2191 = vmatpush1.msra.mxu0 0.0
    %2192 = vmatprep.subr.mxu0 0.0
    %2193 = vmatpush1.msra.mxu0 0.0
    %2194 = vmatprep.subr.mxu0 0.0
    %2195 = vmatpush1.msra.mxu0 0.0
    %2196 = vmatprep.subr.mxu0 0.0
    %2197 = vmatpush1.msra.mxu0 0.0
    %2198 = vmatprep.subr.mxu0 0.0
    %2199 = vmatpush1.msra.mxu0 0.0
    %2200 = vmatprep.subr.mxu0 0.0
    %2201 = vmatpush1.msra.mxu0 0.0
    %2202 = vmatprep.subr.mxu0 0.0
    %2203 = vmatpush1.msra.mxu0 0.0
    %2204 = vmatprep.subr.mxu0 0.0
    %2205 = vmatpush1.msra.mxu0 0.0
    %2206 = vmatprep.subr.mxu0 0.0
    %2207 = vmatpush1.msra.mxu0 0.0
    %2208 = vmatprep.subr.mxu0 0.0
    %2209 = vmatpush1.msra.mxu0 0.0
    %2210 = vmatprep.subr.mxu0 0.0
    %2211 = vmatpush1.msra.mxu0 0.0
    %2212 = vmatprep.subr.mxu0 0.0
    %2213 = vmatpush1.msra.mxu0 0.0
    %2214 = vmatprep.subr.mxu0 0.0
    %2215 = vmatpush1.msra.mxu0 0.0
    %2216 = vmatprep.subr.mxu0 0.0
    %2217 = vmatpush1.msra.mxu0 0.0
    %2218 = vmatprep.subr.mxu0 0.0
    %2219 = vmatpush1.msra.mxu0 0.0
    %2220 = vmatprep.subr.mxu0 0.0
    %2221 = vmatpush1.msra.mxu0 0.0
    %2222 = vmatprep.subr.mxu0 0.0
    %2223 = vmatpush1.msra.mxu0 0.0
    %2224 = vmatprep.subr.mxu0 0.0
    %2225 = vmatpush1.msra.mxu0 0.0
    %2226 = vmatprep.mubr.f32.mxu0 0.0
    %2227 = vmatmul.mubr.f32.gmra.mrb[0].mxu0 %v2160
    %v2228 = vpop.f32.mrb[0].mxu0
    %v2229 = vadd.f32 %v1348, %v2228
    %v2230 = vpop.f32.mrb[0].mxu0
    %2231 = vdwg.mxu0
    %v2232 = vadd.f32 %v324, %v2229
    %v2233 = vxor.u32 %v2232, 2147483648
    %v2234 = vmul.f32 %v2233, 1.442695
    %v2235 = vpow.pop %v2234
    %v2236 = vadd.f32 %v2235, 1.0
    %v2237 = vrcp.pop %v2236
    %v2238 = vmul.f32 1.0, %v2237
    %2240 = vrot.lane.b32.xlu0 %v2229, 64
    %v2241 = vpop.permute.xlu0 %2240
    %v2243 = vmul.f32 %v2238, %v2241
    %2245 = vrot.lane.b32.xlu0 %v2243, 64
    %v2246 = vpop.permute.xlu0 %2245
    %v2248 = vadd.f32 %v324, %v2246
    %v2249 = vtanh.pop %v2248
    %v2250 = vsub.f32 1.0, %v2238
    %2252 = vrot.lane.b32.xlu0 %v2249, 96
    %v2253 = vpop.permute.xlu0 %2252
    %v2255 = vmul.f32 %v2250, %v2253
    %2256 = vrot.lane.b32.xlu0 %v2155, 32
    %v2257 = vpop.permute.xlu0 %2256
    %v2259 = vmul.f32 %v2238, %v2257
    %v2260 = vadd.f32 %v2255, %v2259
    %v2261 = vmul.f32 %v450, %v2260
    %v2262 = vmul.f32 %v457, %v2155
    %2264 = vrot.lane.b32.xlu0 %v2262, 32
    %v2265 = vpop.permute.xlu0 %2264
    %v2267 = vadd.f32 %v2261, %v2265
    %v2268 = vmul.f32 %v2267, %v450
    %2270 = vrot.lane.b32.xlu0 %v2268, 96
    %v2271 = vpop.permute.xlu0 %2270
    %2273 = vst.msk [vmem:[%s14] sm:$0x3] %vm466, %v2271
    %v2274 = vld [vmem:[%s11] sm:$0xff]
    %v2275 = vld [vmem:[%s11 + $0x8] sm:$0xff]
    %v2276 = vld [vmem:[%s11 + $0x10] sm:$0xff]
    %v2277 = vld [vmem:[%s11 + $0x18] sm:$0xff]
    %v2278 = vld [vmem:[%s11 + $0x20] sm:$0xff]
    %v2279 = vld [vmem:[%s11 + $0x28] sm:$0xff]
    %v2280 = vld [vmem:[%s11 + $0x30] sm:$0xff]
    %v2281 = vld [vmem:[%s11 + $0x38] sm:$0xff]
    %2283 = vrot.lane.b32.xlu0 %v2267, 96
    %v2284 = vpop.permute.xlu0 %2283
    %v2285 = vsel %vm68, %v2284, 0
    %2287 = vmatprep.subr.mxu0 0.0
    %2288 = vmatpush1.msra.mxu0 %v2278
    %2289 = vmatprep.subr.mxu0 0.0
    %2290 = vmatpush1.msra.mxu0 %v2279
    %2291 = vmatprep.subr.mxu0 0.0
    %2292 = vmatpush1.msra.mxu0 %v2280
    %2293 = vmatprep.subr.mxu0 0.0
    %2294 = vmatpush1.msra.mxu0 %v2281
    %2295 = vmatprep.subr.mxu0 0.0
    %2296 = vmatpush1.msra.mxu0 0.0
    %2297 = vmatprep.subr.mxu0 0.0
    %2298 = vmatpush1.msra.mxu0 0.0
    %2299 = vmatprep.subr.mxu0 0.0
    %2300 = vmatpush1.msra.mxu0 0.0
    %2301 = vmatprep.subr.mxu0 0.0
    %2302 = vmatpush1.msra.mxu0 0.0
    %2303 = vmatprep.subr.mxu0 0.0
    %2304 = vmatpush1.msra.mxu0 0.0
    %2305 = vmatprep.subr.mxu0 0.0
    %2306 = vmatpush1.msra.mxu0 0.0
    %2307 = vmatprep.subr.mxu0 0.0
    %2308 = vmatpush1.msra.mxu0 0.0
    %2309 = vmatprep.subr.mxu0 0.0
    %2310 = vmatpush1.msra.mxu0 0.0
    %2311 = vmatprep.subr.mxu0 0.0
    %2312 = vmatpush1.msra.mxu0 0.0
    %2313 = vmatprep.subr.mxu0 0.0
    %2314 = vmatpush1.msra.mxu0 0.0
    %2315 = vmatprep.subr.mxu0 0.0
    %2316 = vmatpush1.msra.mxu0 0.0
    %2317 = vmatprep.subr.mxu0 0.0
    %2318 = vmatpush1.msra.mxu0 0.0
    %2319 = vmatprep.subr.mxu0 0.0
    %2320 = vmatpush1.msra.mxu0 0.0
    %2321 = vmatprep.subr.mxu0 0.0
    %2322 = vmatpush1.msra.mxu0 0.0
    %2323 = vmatprep.subr.mxu0 0.0
    %2324 = vmatpush1.msra.mxu0 0.0
    %2325 = vmatprep.subr.mxu0 0.0
    %2326 = vmatpush1.msra.mxu0 0.0
    %2327 = vmatprep.subr.mxu0 0.0
    %2328 = vmatpush1.msra.mxu0 0.0
    %2329 = vmatprep.subr.mxu0 0.0
    %2330 = vmatpush1.msra.mxu0 0.0
    %2331 = vmatprep.subr.mxu0 0.0
    %2332 = vmatpush1.msra.mxu0 0.0
    %2333 = vmatprep.subr.mxu0 0.0
    %2334 = vmatpush1.msra.mxu0 0.0
    %2335 = vmatprep.subr.mxu0 0.0
    %2336 = vmatpush1.msra.mxu0 0.0
    %2337 = vmatprep.subr.mxu0 0.0
    %2338 = vmatpush1.msra.mxu0 0.0
    %2339 = vmatprep.subr.mxu0 0.0
    %2340 = vmatpush1.msra.mxu0 0.0
    %2341 = vmatprep.subr.mxu0 0.0
    %2342 = vmatpush1.msra.mxu0 0.0
    %2343 = vmatprep.subr.mxu0 0.0
    %2344 = vmatpush1.msra.mxu0 0.0
    %2345 = vmatprep.subr.mxu0 0.0
    %2346 = vmatpush1.msra.mxu0 0.0
    %2347 = vmatprep.subr.mxu0 0.0
    %2348 = vmatpush1.msra.mxu0 0.0
    %2349 = vmatprep.subr.mxu0 0.0
    %2350 = vmatpush1.msra.mxu0 0.0
    %2351 = vmatprep.mubr.f32.mxu0 0.0
    %2352 = vmatmul.mubr.f32.gmra.mrb[0].mxu0 %v2285
    %v2353 = vpop.f32.mrb[0].mxu0
    %v2354 = vadd.f32 0.0, %v2353
    %v2355 = vpop.f32.mrb[0].mxu0
    %2356 = vdwg.mxu0
    %v2358 = vsel %vm68, %v1340, 0
    %2360 = vmatprep.subr.mxu0 0.0
    %2361 = vmatpush1.msra.mxu0 %v2274
    %2362 = vmatprep.subr.mxu0 0.0
    %2363 = vmatpush1.msra.mxu0 %v2275
    %2364 = vmatprep.subr.mxu0 0.0
    %2365 = vmatpush1.msra.mxu0 %v2276
    %2366 = vmatprep.subr.mxu0 0.0
    %2367 = vmatpush1.msra.mxu0 %v2277
    %2368 = vmatprep.subr.mxu0 0.0
    %2369 = vmatpush1.msra.mxu0 0.0
    %2370 = vmatprep.subr.mxu0 0.0
    %2371 = vmatpush1.msra.mxu0 0.0
    %2372 = vmatprep.subr.mxu0 0.0
    %2373 = vmatpush1.msra.mxu0 0.0
    %2374 = vmatprep.subr.mxu0 0.0
    %2375 = vmatpush1.msra.mxu0 0.0
    %2376 = vmatprep.subr.mxu0 0.0
    %2377 = vmatpush1.msra.mxu0 0.0
    %2378 = vmatprep.subr.mxu0 0.0
    %2379 = vmatpush1.msra.mxu0 0.0
    %2380 = vmatprep.subr.mxu0 0.0
    %2381 = vmatpush1.msra.mxu0 0.0
    %2382 = vmatprep.subr.mxu0 0.0
    %2383 = vmatpush1.msra.mxu0 0.0
    %2384 = vmatprep.subr.mxu0 0.0
    %2385 = vmatpush1.msra.mxu0 0.0
    %2386 = vmatprep.subr.mxu0 0.0
    %2387 = vmatpush1.msra.mxu0 0.0
    %2388 = vmatprep.subr.mxu0 0.0
    %2389 = vmatpush1.msra.mxu0 0.0
    %2390 = vmatprep.subr.mxu0 0.0
    %2391 = vmatpush1.msra.mxu0 0.0
    %2392 = vmatprep.subr.mxu0 0.0
    %2393 = vmatpush1.msra.mxu0 0.0
    %2394 = vmatprep.subr.mxu0 0.0
    %2395 = vmatpush1.msra.mxu0 0.0
    %2396 = vmatprep.subr.mxu0 0.0
    %2397 = vmatpush1.msra.mxu0 0.0
    %2398 = vmatprep.subr.mxu0 0.0
    %2399 = vmatpush1.msra.mxu0 0.0
    %2400 = vmatprep.subr.mxu0 0.0
    %2401 = vmatpush1.msra.mxu0 0.0
    %2402 = vmatprep.subr.mxu0 0.0
    %2403 = vmatpush1.msra.mxu0 0.0
    %2404 = vmatprep.subr.mxu0 0.0
    %2405 = vmatpush1.msra.mxu0 0.0
    %2406 = vmatprep.subr.mxu0 0.0
    %2407 = vmatpush1.msra.mxu0 0.0
    %2408 = vmatprep.subr.mxu0 0.0
    %2409 = vmatpush1.msra.mxu0 0.0
    %2410 = vmatprep.subr.mxu0 0.0
    %2411 = vmatpush1.msra.mxu0 0.0
    %2412 = vmatprep.subr.mxu0 0.0
    %2413 = vmatpush1.msra.mxu0 0.0
    %2414 = vmatprep.subr.mxu0 0.0
    %2415 = vmatpush1.msra.mxu0 0.0
    %2416 = vmatprep.subr.mxu0 0.0
    %2417 = vmatpush1.msra.mxu0 0.0
    %2418 = vmatprep.subr.mxu0 0.0
    %2419 = vmatpush1.msra.mxu0 0.0
    %2420 = vmatprep.subr.mxu0 0.0
    %2421 = vmatpush1.msra.mxu0 0.0
    %2422 = vmatprep.subr.mxu0 0.0
    %2423 = vmatpush1.msra.mxu0 0.0
    %2424 = vmatprep.mubr.f32.mxu0 0.0
    %2425 = vmatmul.mubr.f32.gmra.mrb[0].mxu0 %v2358
    %v2426 = vpop.f32.mrb[0].mxu0
    %v2427 = vadd.f32 %v2354, %v2426
    %v2428 = vpop.f32.mrb[0].mxu0
    %2429 = vdwg.mxu0
    %v2430 = vld [vmem:[%s12] sm:$0x1]
    %v2432 = vlaneseq
    %v2433 = vshrl.u32 %v2432, 7
    %v2434 = vsub.s32 0, %v2433
    %v2435 = vrot.slane %v2430, %v2434
    %v2437 = vadd.f32 %v2427, %v2435
    %v2438 = vtanh.pop %v2437
    %2439 = vst.msk [vmem:[#allocation2] sm:$0x3] %vm466, %v2438
    // Predicated region
    $region54: #{encoder_forward.1} parent=1 // pred_check
      _
    $region55: #{encoder_forward.1} parent=1 // pred_check_branch
      %2441 = sbr.rel (0) target = $region57
    $region56: #{encoder_forward.1} parent=1 // pred_region
      _
    $region57: #{encoder_forward.1} parent=1 // pred_fallthru
      _
    // Predicated region
    $region58: #{encoder_forward.1} parent=1 // pred_check
      _
    $region59: #{encoder_forward.1} parent=1 // pred_check_branch
      %2443 = sbr.rel (0) target = $region61
    $region60: #{encoder_forward.1} parent=1 // pred_region
      _
    $region61: #{encoder_forward.1} parent=1 // pred_fallthru
      _
    // Predicated region
    $region62: #{encoder_forward.1} parent=1 // pred_check
      _
    $region63: #{encoder_forward.1} parent=1 // pred_check_branch
      %2445 = sbr.rel (0) target = $region65
    $region64: #{encoder_forward.1} parent=1 // pred_region
      %s2447 = ssub.s32 32, 32
      %2448 = vsyncadd [#allocation3], %s2447
      %s2450 = sshll.u32 [#allocation2], 4
      %s2451 = int_to_ptr.vmem [resolvable:$true] %s2450
      %2453 = dma.vmem_to_hbm [thread:$0]  %s2451, 32, %s15, [#allocation3]
    $region65: #{encoder_forward.1} parent=1 // pred_fallthru
      _
    // Predicated region
    $region66: #{encoder_forward.1} parent=1 // pred_check
      _
    $region67: #{encoder_forward.1} parent=1 // pred_check_branch
      %2455 = sbr.rel (0) target = $region69
    $region68: #{encoder_forward.1} parent=1 // pred_region
      _
    $region69: #{encoder_forward.1} parent=1 // pred_fallthru
      _
    // Predicated region
    $region70: #{encoder_forward.1} parent=1 // pred_check
      _
    $region71: #{encoder_forward.1} parent=1 // pred_check_branch
      %2457 = sbr.rel (0) target = $region73
    $region72: #{encoder_forward.1} parent=1 // pred_region
      _
    $region73: #{encoder_forward.1} parent=1 // pred_fallthru
      _
    // Predicated region
    $region74: #{encoder_forward.1} parent=1 // pred_check
      _
    $region75: #{encoder_forward.1} parent=1 // pred_check_branch
      %2459 = sbr.rel (0) target = $region77
    $region76: #{encoder_forward.1} parent=1 // pred_region
      %2460 = dma.done [#allocation3], 32
    $region77: #{encoder_forward.1} parent=1 // pred_fallthru
      _
    %2461 = vsyncpa [#allocation3], 1

</llo_original>
